<compile_context>
chip_gen: v6e
topology: v6e:2x2x1
jax: 0.10.0
libtpu: 0.0.40
codegen_flags: <defaults>
</compile_context>

<pallas_src>
import functools

import jax
import jax.numpy as jnp
from jax.experimental import pallas as pl
from jax.experimental.pallas import tpu as pltpu

N_HOPS = 3
PADDING_IDX = 0


def sdm_kernel(a_uj_ref, c_uj_ref, m_a_ref, m_c_ref, mask_ref,
               w1a_ref, b1a_ref, w2a_q_ref, w2a_m_ref, b2a_ref,
               w1c_ref, b1c_ref, w2c_q_ref, w2c_m_ref, b2c_ref,
               gate_w_ref, gate_b_ref, trans_w_ref, trans_b_ref,
               o_ref):
    a_uj = a_uj_ref[...]            # (TB, 2E)
    c_uj = c_uj_ref[...]            # (TB, 2E)
    m_a = m_a_ref[...]              # (TB, S, E)
    m_c = m_c_ref[...]              # (TB, S, E)
    mask = mask_ref[...]            # (TB, S)

    TB, S, E = m_a.shape

    dot = functools.partial(jnp.dot, preferred_element_type=jnp.float32)

    # ---------------- hop-invariant precompute (layer-wise tying) ----------------
    # q_a0 = W1_A([a_u ; a_j]) ; q_o = W1_C([c_u ; c_j])   (dropout = identity)
    q_a = dot(a_uj, w1a_ref[...]) + b1a_ref[...]                        # (TB, E)
    q_o = dot(c_uj, w1c_ref[...]) + b1c_ref[...]                        # (TB, E)

    # A-side memory projection (constant across hops) + its per-(b,s) squared norm.
    ma_w2 = dot(m_a.reshape(TB * S, E), w2a_m_ref[...]).reshape(TB, S, E)
    ma_norm2 = jnp.sum(ma_w2 * ma_w2, axis=2)                           # (TB, S)

    # C-side (output) path: fully hop-invariant except the attention weights, and
    # since weights is a scalar along E,
    #   (sq_o * w[:,:,None]) @ trans_w == w[:,:,None] * (sq_o @ trans_w)
    # so the trans matmul is folded into the precompute.  mc_w2 / q_m_o / sq_o are
    # transient: only sq_ow stays live across the hop loop.
    qo_part = dot(q_o, w2c_q_ref[...]) + b2c_ref[...]                   # (TB, E)
    q_m_o = (dot(m_c.reshape(TB * S, E), w2c_m_ref[...]).reshape(TB, S, E)
             + qo_part[:, None, :])                                     # (TB, S, E)
    sq_o = q_m_o * q_m_o                                                # (TB, S, E)
    sq_ow = dot(sq_o.reshape(TB * S, E), trans_w_ref[...]).reshape(TB, S, E)

    w2a_q = w2a_q_ref[...]
    b2a = b2a_ref[...]
    gate_w = gate_w_ref[...]
    gate_b = gate_b_ref[...]
    trans_b = trans_b_ref[...]

    o = jnp.zeros((TB, E), dtype=jnp.float32)
    for hop in range(N_HOPS):
        if hop > 0:
            gated = jax.nn.sigmoid(dot(o, gate_w) + gate_b)             # (TB, E)
            q_a = (1.0 - gated) * q_a + gated * o

        # ---- MaskedAttention: softmax(-||ma_w2 + qa_part||^2 * mask) ----
        # ||m + q||^2 expanded as ||m||^2 + 2*m.q + ||q||^2; the cross term is a
        # VPU multiply + lane reduce (no degenerate width-1 MXU call).
        qa_part = dot(q_a, w2a_q) + b2a                                 # (TB, E)
        cross = jnp.sum(ma_w2 * qa_part[:, None, :], axis=2)            # (TB, S)
        qa_norm2 = jnp.sum(qa_part * qa_part, axis=1, keepdims=True)    # (TB, 1)
        # logits <= 0 by construction (dist >= 0, mask > 0) -> exp is safe without
        # the max-subtraction.
        logits = -(ma_norm2 + 2.0 * cross + qa_norm2) * mask            # (TB, S)
        e = jnp.exp(logits)
        weights = e * pl.reciprocal(jnp.sum(e, axis=1, keepdims=True),
                                    approx=True)                        # (TB, S)

        # ---- OutputModule (trans matmul hoisted): o = -sum_s relu(w*sq_ow + b) ----
        t = jnp.maximum(weights[:, :, None] * sq_ow + trans_b, 0.0)     # (TB, S, E)
        o = -jnp.sum(t, axis=1)                                         # (TB, E)

    # Final sum_func (E -> 1) + negate is done in the wrapper (lane-dense output).
    o_ref[...] = o


def _vmem_budget_bytes():
    # Per-generation VMEM budget: ~75% of physical (v7x: 64 MiB -> 48 MiB,
    # v5e/v6e: 128 MiB -> 96 MiB).  Conservative fallback = 48 MiB (v7x-safe).
    cap = 64 * 1024 * 1024
    try:
        info = pltpu.get_tpu_info()
        cap = int(getattr(info, "vmem_capacity_bytes", cap))
    except Exception:
        pass
    return (cap * 3) // 4


def _pick_batch_tile(B, S, E, vmem_budget):
    """Largest useful multiple-of-8 batch tile that fits the VMEM budget and keeps
    >= 4 grid steps (so each v7x TensorCore still gets >= 2 pipelined steps)."""
    if B < 8:
        return B
    # Bytes per batch row: double-buffered pipelined tiles + an estimate of the
    # in-kernel f32 intermediates (ma_w2, sq_ow, transient C-side slabs).
    per_row = 8 * (2 * S * E + 5 * E + S) + 24 * S * E
    cap = (vmem_budget // 2) // max(per_row, 1)          # keep half for weights/scratch
    cap = max(8, min(512, (cap // 8) * 8))
    target = max(8, ((B // 4) // 8) * 8) if B >= 32 else (B // 8) * 8
    tb = min(cap, max(8, target), B)
    tb = (tb // 8) * 8
    for t in range(tb, 7, -8):                            # largest mult-of-8 divisor of B
        if B % t == 0:
            return t
    return B                                              # fallback: whole batch in one tile


def sdm_forward(params, x, u, j, *, batch_tile=None):
    """x: (B, S) int32 item ids, u: (B,) int32 user ids, j: (B,) int32 item ids."""
    B, S = x.shape
    E = params["A_item_emb"].shape[1]

    # ---- glue: embedding gathers + concat + mask construction (plain JAX) ----
    # TODO(synk): fuse the m_a/m_c gathers into the kernel (scalar-prefetch x, keep
    # the item tables at memory_space=pl.ANY and DMA-gather rows) to avoid the HBM
    # round trip of 2x(B,S,E); optionally carry them as bf16 to halve DMA bytes.
    a_uj = jnp.concatenate([params["A_user_emb"][u], params["A_item_emb"][j]], axis=1)
    c_uj = jnp.concatenate([params["C_user_emb"][u], params["C_item_emb"][j]], axis=1)
    m_a = params["A_item_emb"][x]          # (B, S, E)
    m_c = params["C_item_emb"][x]          # (B, S, E)
    # _make_mask: non-padding -> 1.0; padding (id == 0) -> 65535.0
    mask = jnp.where(x == PADDING_IDX, 65535.0, 1.0).astype(jnp.float32)

    # Pre-split W2 weights into query / memory halves (no in-kernel slicing).
    w2a_q, w2a_m = params["A_W2_w"][:E], params["A_W2_w"][E:]
    w2c_q, w2c_m = params["C_W2_w"][:E], params["C_W2_w"][E:]

    # ---- per-generation tiling: batch tile from the VMEM budget ----
    vmem_budget = _vmem_budget_bytes()
    TB = batch_tile if batch_tile is not None else _pick_batch_tile(B, S, E, vmem_budget)
    if TB <= 0 or B % TB != 0:
        TB = B
    grid = (pl.cdiv(B, TB),)
    # Note: S should be a multiple of 8 so the (TB,S,E)->(TB*S,E) reshapes are free
    # relayouts rather than VMEM copies.

    def tile2(d1):
        return pl.BlockSpec((TB, d1), lambda i: (i, 0))

    def tile3(d1, d2):
        return pl.BlockSpec((TB, d1, d2), lambda i: (i, 0, 0))

    def const2(d0, d1):
        return pl.BlockSpec((d0, d1), lambda i: (0, 0))

    args = (a_uj, c_uj, m_a, m_c, mask,
            params["A_W1_w"], params["A_W1_b"], w2a_q, w2a_m, params["A_W2_b"],
            params["C_W1_w"], params["C_W1_b"], w2c_q, w2c_m, params["C_W2_b"],
            params["gate_w"], params["gate_b"], params["trans_w"], params["trans_b"])

    in_specs = [
        tile2(2 * E), tile2(2 * E), tile3(S, E), tile3(S, E), tile2(S),
        const2(2 * E, E), const2(1, E), const2(E, E), const2(E, E), const2(1, E),
        const2(2 * E, E), const2(1, E), const2(E, E), const2(E, E), const2(1, E),
        const2(E, E), const2(1, E), const2(E, E), const2(1, E),
    ]

    o = pl.pallas_call(
        sdm_kernel,
        out_shape=jax.ShapeDtypeStruct((B, E), jnp.float32),
        grid_spec=pltpu.PrefetchScalarGridSpec(
            num_scalar_prefetch=0,
            grid=grid,
            in_specs=in_specs,
            out_specs=pl.BlockSpec((TB, E), lambda i: (i, 0)),
        ),
        compiler_params=pltpu.CompilerParams(
            dimension_semantics=("parallel",),
            vmem_limit_bytes=int(vmem_budget),
        ),
    )(*args)

    # ret_sum=True, sum_mapping=True: return -sum_func(o_last).  The (E,1) matmul is
    # lane-sparse, so it stays in XLA (free) instead of a width-1 masked store.
    return -(o @ params["sum_w"] + params["sum_b"])       # (B, 1)


def init_params(key, n_users, n_items, embedding_size):
    E = embedding_size
    ks = jax.random.split(key, 16)

    def he_normal(k, shape, fan_in):
        return (jax.random.normal(k, shape, jnp.float32)
                * jnp.sqrt(2.0 / fan_in)).astype(jnp.float32)

    def lecun_uniform(k, shape, fan_in):
        lim = jnp.sqrt(3.0 / fan_in)
        return jax.random.uniform(k, shape, jnp.float32, -lim, lim)

    # Embeddings ~ N(0, 0.01), padding row zeroed.
    def emb(k, n):
        w = 0.01 * jax.random.normal(k, (n, E), jnp.float32)
        return w.at[PADDING_IDX].set(0.0)

    params = {
        "A_user_emb": emb(ks[0], n_users),
        "A_item_emb": emb(ks[1], n_items),
        "C_user_emb": emb(ks[2], n_users),
        "C_item_emb": emb(ks[3], n_items),
        # Linear(2E -> E), stored transposed: (2E, E); bias as (1, E).
        "A_W1_w": he_normal(ks[4], (2 * E, E), 2 * E), "A_W1_b": jnp.zeros((1, E), jnp.float32),
        "A_W2_w": he_normal(ks[5], (2 * E, E), 2 * E), "A_W2_b": jnp.zeros((1, E), jnp.float32),
        "C_W1_w": he_normal(ks[6], (2 * E, E), 2 * E), "C_W1_b": jnp.zeros((1, E), jnp.float32),
        "C_W2_w": he_normal(ks[7], (2 * E, E), 2 * E), "C_W2_b": jnp.zeros((1, E), jnp.float32),
        # Gate / output transform: Linear(E -> E), transposed (E, E).
        "gate_w": lecun_uniform(ks[8], (E, E), E), "gate_b": jnp.zeros((1, E), jnp.float32),
        "trans_w": lecun_uniform(ks[9], (E, E), E), "trans_b": jnp.zeros((1, E), jnp.float32),
        # Final sum_func: Linear(E -> 1), lecun-uniform, transposed (E, 1).
        "sum_w": lecun_uniform(ks[10], (E, 1), E), "sum_b": jnp.zeros((1, 1), jnp.float32),
    }
    return params


if __name__ == "__main__":
    # Small shapes; B chosen so the auto-picked batch tile gives a >= 4-step grid
    # (TB = 16 -> grid = (4,)) and the kernel actually pipelines / megacore-shards.
    B, S, E = 64, 8, 32
    n_users, n_items = 10, 20

    key = jax.random.PRNGKey(0)
    k_p, k_x, k_u, k_j = jax.random.split(key, 4)

    params = init_params(k_p, n_users, n_items, E)

    # x may contain PADDING_IDX (0) entries -> exercises the mask path.
    x = jax.random.randint(k_x, (B, S), 0, n_items, dtype=jnp.int32)
    u = jax.random.randint(k_u, (B,), 1, n_users, dtype=jnp.int32)
    j = jax.random.randint(k_j, (B,), 1, n_items, dtype=jnp.int32)

    # TODO(synk): nn.Dropout (p=0.5) is stochastic; implemented as eval-mode identity.
    out = sdm_forward(params, x, u, j)
    jax.block_until_ready(out)
    assert out.shape == (B, 1) and out.dtype == jnp.float32
    assert bool(jnp.all(jnp.isfinite(out)))
    print("KERNEL_OK")
</pallas_src>

<mosaic_0001>
module attributes {stable_mosaic.version = 11 : i64} {
  func.func @sdm_kernel(%arg0: i32, %arg1: memref<16x64xf32, #tpu.memory_space<vmem>>, %arg2: memref<16x64xf32, #tpu.memory_space<vmem>>, %arg3: memref<16x8x32xf32, #tpu.memory_space<vmem>>, %arg4: memref<16x8x32xf32, #tpu.memory_space<vmem>>, %arg5: memref<16x8xf32, #tpu.memory_space<vmem>>, %arg6: memref<64x32xf32, #tpu.memory_space<vmem>>, %arg7: memref<1x32xf32, #tpu.memory_space<vmem>>, %arg8: memref<32x32xf32, #tpu.memory_space<vmem>>, %arg9: memref<32x32xf32, #tpu.memory_space<vmem>>, %arg10: memref<1x32xf32, #tpu.memory_space<vmem>>, %arg11: memref<64x32xf32, #tpu.memory_space<vmem>>, %arg12: memref<1x32xf32, #tpu.memory_space<vmem>>, %arg13: memref<32x32xf32, #tpu.memory_space<vmem>>, %arg14: memref<32x32xf32, #tpu.memory_space<vmem>>, %arg15: memref<1x32xf32, #tpu.memory_space<vmem>>, %arg16: memref<32x32xf32, #tpu.memory_space<vmem>>, %arg17: memref<1x32xf32, #tpu.memory_space<vmem>>, %arg18: memref<32x32xf32, #tpu.memory_space<vmem>>, %arg19: memref<1x32xf32, #tpu.memory_space<vmem>>, %arg20: memref<16x32xf32, #tpu.memory_space<vmem>>) attributes {dimension_semantics = [#tpu.dimension_semantics<parallel>], iteration_bounds = array<i64: 4>, scalar_prefetch = 0 : i64, scratch_operands = 0 : i64, tpu.core_type = #tpu.core_type<tc>, window_params = [{transform_indices = @transform_0, window_bounds = array<i64: 16, 64>}, {transform_indices = @transform_1, window_bounds = array<i64: 16, 64>}, {transform_indices = @transform_2, window_bounds = array<i64: 16, 8, 32>}, {transform_indices = @transform_3, window_bounds = array<i64: 16, 8, 32>}, {transform_indices = @transform_4, window_bounds = array<i64: 16, 8>}, {pipeline_mode = #tpu.pipeline_mode<synchronous>, transform_indices = @transform_5, window_bounds = array<i64: 64, 32>}, {pipeline_mode = #tpu.pipeline_mode<synchronous>, transform_indices = @transform_6, window_bounds = array<i64: 1, 32>}, {pipeline_mode = #tpu.pipeline_mode<synchronous>, transform_indices = @transform_7, window_bounds = array<i64: 32, 32>}, {pipeline_mode = #tpu.pipeline_mode<synchronous>, transform_indices = @transform_8, window_bounds = array<i64: 32, 32>}, {pipeline_mode = #tpu.pipeline_mode<synchronous>, transform_indices = @transform_9, window_bounds = array<i64: 1, 32>}, {pipeline_mode = #tpu.pipeline_mode<synchronous>, transform_indices = @transform_10, window_bounds = array<i64: 64, 32>}, {pipeline_mode = #tpu.pipeline_mode<synchronous>, transform_indices = @transform_11, window_bounds = array<i64: 1, 32>}, {pipeline_mode = #tpu.pipeline_mode<synchronous>, transform_indices = @transform_12, window_bounds = array<i64: 32, 32>}, {pipeline_mode = #tpu.pipeline_mode<synchronous>, transform_indices = @transform_13, window_bounds = array<i64: 32, 32>}, {pipeline_mode = #tpu.pipeline_mode<synchronous>, transform_indices = @transform_14, window_bounds = array<i64: 1, 32>}, {pipeline_mode = #tpu.pipeline_mode<synchronous>, transform_indices = @transform_15, window_bounds = array<i64: 32, 32>}, {pipeline_mode = #tpu.pipeline_mode<synchronous>, transform_indices = @transform_16, window_bounds = array<i64: 1, 32>}, {pipeline_mode = #tpu.pipeline_mode<synchronous>, transform_indices = @transform_17, window_bounds = array<i64: 32, 32>}, {pipeline_mode = #tpu.pipeline_mode<synchronous>, transform_indices = @transform_18, window_bounds = array<i64: 1, 32>}, {transform_indices = @transform_19, window_bounds = array<i64: 16, 32>}]} {
    %c0 = arith.constant 0 : index
    %c0_0 = arith.constant 0 : index
    %0 = vector.load %arg1[%c0, %c0_0] : memref<16x64xf32, #tpu.memory_space<vmem>>, vector<16x64xf32>
    %c0_1 = arith.constant 0 : index
    %c0_2 = arith.constant 0 : index
    %1 = vector.load %arg2[%c0_1, %c0_2] : memref<16x64xf32, #tpu.memory_space<vmem>>, vector<16x64xf32>
    %c0_3 = arith.constant 0 : index
    %c0_4 = arith.constant 0 : index
    %c0_5 = arith.constant 0 : index
    %2 = vector.load %arg3[%c0_3, %c0_4, %c0_5] : memref<16x8x32xf32, #tpu.memory_space<vmem>>, vector<16x8x32xf32>
    %c0_6 = arith.constant 0 : index
    %c0_7 = arith.constant 0 : index
    %c0_8 = arith.constant 0 : index
    %3 = vector.load %arg4[%c0_6, %c0_7, %c0_8] : memref<16x8x32xf32, #tpu.memory_space<vmem>>, vector<16x8x32xf32>
    %c0_9 = arith.constant 0 : index
    %c0_10 = arith.constant 0 : index
    %4 = vector.load %arg5[%c0_9, %c0_10] : memref<16x8xf32, #tpu.memory_space<vmem>>, vector<16x8xf32>
    %c0_11 = arith.constant 0 : index
    %c0_12 = arith.constant 0 : index
    %5 = vector.load %arg6[%c0_11, %c0_12] : memref<64x32xf32, #tpu.memory_space<vmem>>, vector<64x32xf32>
    %cst = arith.constant dense<0.000000e+00> : vector<16x32xf32>
    %6 = tpu.matmul %0, %5, %cst {dimension_numbers = #tpu.dot_dimension_numbers<[1], [0], [0], [1], [0, 0, 1, 1], [], []>} : vector<16x64xf32>, vector<64x32xf32>, vector<16x32xf32> -> vector<16x32xf32>
    %c0_13 = arith.constant 0 : index
    %c0_14 = arith.constant 0 : index
    %7 = vector.load %arg7[%c0_13, %c0_14] : memref<1x32xf32, #tpu.memory_space<vmem>>, vector<1x32xf32>
    %8 = vector.broadcast %7 : vector<1x32xf32> to vector<16x32xf32>
    %9 = arith.addf %6, %8 : vector<16x32xf32>
    %c0_15 = arith.constant 0 : index
    %c0_16 = arith.constant 0 : index
    %10 = vector.load %arg11[%c0_15, %c0_16] : memref<64x32xf32, #tpu.memory_space<vmem>>, vector<64x32xf32>
    %cst_17 = arith.constant dense<0.000000e+00> : vector<16x32xf32>
    %11 = tpu.matmul %1, %10, %cst_17 {dimension_numbers = #tpu.dot_dimension_numbers<[1], [0], [0], [1], [0, 0, 1, 1], [], []>} : vector<16x64xf32>, vector<64x32xf32>, vector<16x32xf32> -> vector<16x32xf32>
    %c0_18 = arith.constant 0 : index
    %c0_19 = arith.constant 0 : index
    %12 = vector.load %arg12[%c0_18, %c0_19] : memref<1x32xf32, #tpu.memory_space<vmem>>, vector<1x32xf32>
    %13 = vector.broadcast %12 : vector<1x32xf32> to vector<16x32xf32>
    %14 = arith.addf %11, %13 : vector<16x32xf32>
    %15 = vector.shape_cast %2 : vector<16x8x32xf32> to vector<128x32xf32>
    %c0_20 = arith.constant 0 : index
    %c0_21 = arith.constant 0 : index
    %16 = vector.load %arg9[%c0_20, %c0_21] : memref<32x32xf32, #tpu.memory_space<vmem>>, vector<32x32xf32>
    %cst_22 = arith.constant dense<0.000000e+00> : vector<128x32xf32>
    %17 = tpu.matmul %15, %16, %cst_22 {dimension_numbers = #tpu.dot_dimension_numbers<[1], [0], [0], [1], [0, 0, 1, 1], [], []>} : vector<128x32xf32>, vector<32x32xf32>, vector<128x32xf32> -> vector<128x32xf32>
    %18 = vector.shape_cast %17 : vector<128x32xf32> to vector<16x8x32xf32>
    %19 = arith.mulf %18, %18 : vector<16x8x32xf32>
    %cst_23 = arith.constant dense<0.000000e+00> : vector<16x8xf32>
    %20 = vector.multi_reduction <add>, %19, %cst_23 [2] : vector<16x8x32xf32> to vector<16x8xf32>
    %c0_24 = arith.constant 0 : index
    %c0_25 = arith.constant 0 : index
    %21 = vector.load %arg13[%c0_24, %c0_25] : memref<32x32xf32, #tpu.memory_space<vmem>>, vector<32x32xf32>
    %cst_26 = arith.constant dense<0.000000e+00> : vector<16x32xf32>
    %22 = tpu.matmul %14, %21, %cst_26 {dimension_numbers = #tpu.dot_dimension_numbers<[1], [0], [0], [1], [0, 0, 1, 1], [], []>} : vector<16x32xf32>, vector<32x32xf32>, vector<16x32xf32> -> vector<16x32xf32>
    %c0_27 = arith.constant 0 : index
    %c0_28 = arith.constant 0 : index
    %23 = vector.load %arg15[%c0_27, %c0_28] : memref<1x32xf32, #tpu.memory_space<vmem>>, vector<1x32xf32>
    %24 = vector.broadcast %23 : vector<1x32xf32> to vector<16x32xf32>
    %25 = arith.addf %22, %24 : vector<16x32xf32>
    %26 = vector.shape_cast %3 : vector<16x8x32xf32> to vector<128x32xf32>
    %c0_29 = arith.constant 0 : index
    %c0_30 = arith.constant 0 : index
    %27 = vector.load %arg14[%c0_29, %c0_30] : memref<32x32xf32, #tpu.memory_space<vmem>>, vector<32x32xf32>
    %cst_31 = arith.constant dense<0.000000e+00> : vector<128x32xf32>
    %28 = tpu.matmul %26, %27, %cst_31 {dimension_numbers = #tpu.dot_dimension_numbers<[1], [0], [0], [1], [0, 0, 1, 1], [], []>} : vector<128x32xf32>, vector<32x32xf32>, vector<128x32xf32> -> vector<128x32xf32>
    %29 = vector.shape_cast %28 : vector<128x32xf32> to vector<16x8x32xf32>
    %30 = vector.shape_cast %25 : vector<16x32xf32> to vector<16x1x32xf32>
    %31 = vector.broadcast %30 : vector<16x1x32xf32> to vector<16x8x32xf32>
    %32 = arith.addf %29, %31 : vector<16x8x32xf32>
    %33 = arith.mulf %32, %32 : vector<16x8x32xf32>
    %34 = vector.shape_cast %33 : vector<16x8x32xf32> to vector<128x32xf32>
    %c0_32 = arith.constant 0 : index
    %c0_33 = arith.constant 0 : index
    %35 = vector.load %arg18[%c0_32, %c0_33] : memref<32x32xf32, #tpu.memory_space<vmem>>, vector<32x32xf32>
    %cst_34 = arith.constant dense<0.000000e+00> : vector<128x32xf32>
    %36 = tpu.matmul %34, %35, %cst_34 {dimension_numbers = #tpu.dot_dimension_numbers<[1], [0], [0], [1], [0, 0, 1, 1], [], []>} : vector<128x32xf32>, vector<32x32xf32>, vector<128x32xf32> -> vector<128x32xf32>
    %37 = vector.shape_cast %36 : vector<128x32xf32> to vector<16x8x32xf32>
    %c0_35 = arith.constant 0 : index
    %c0_36 = arith.constant 0 : index
    %38 = vector.load %arg8[%c0_35, %c0_36] : memref<32x32xf32, #tpu.memory_space<vmem>>, vector<32x32xf32>
    %c0_37 = arith.constant 0 : index
    %c0_38 = arith.constant 0 : index
    %39 = vector.load %arg10[%c0_37, %c0_38] : memref<1x32xf32, #tpu.memory_space<vmem>>, vector<1x32xf32>
    %c0_39 = arith.constant 0 : index
    %c0_40 = arith.constant 0 : index
    %40 = vector.load %arg16[%c0_39, %c0_40] : memref<32x32xf32, #tpu.memory_space<vmem>>, vector<32x32xf32>
    %c0_41 = arith.constant 0 : index
    %c0_42 = arith.constant 0 : index
    %41 = vector.load %arg17[%c0_41, %c0_42] : memref<1x32xf32, #tpu.memory_space<vmem>>, vector<1x32xf32>
    %c0_43 = arith.constant 0 : index
    %c0_44 = arith.constant 0 : index
    %42 = vector.load %arg19[%c0_43, %c0_44] : memref<1x32xf32, #tpu.memory_space<vmem>>, vector<1x32xf32>
    %cst_45 = arith.constant dense<0.000000e+00> : vector<16x32xf32>
    %43 = tpu.matmul %9, %38, %cst_45 {dimension_numbers = #tpu.dot_dimension_numbers<[1], [0], [0], [1], [0, 0, 1, 1], [], []>} : vector<16x32xf32>, vector<32x32xf32>, vector<16x32xf32> -> vector<16x32xf32>
    %44 = vector.broadcast %39 : vector<1x32xf32> to vector<16x32xf32>
    %45 = arith.addf %43, %44 : vector<16x32xf32>
    %46 = vector.shape_cast %45 : vector<16x32xf32> to vector<16x1x32xf32>
    %47 = vector.broadcast %46 : vector<16x1x32xf32> to vector<16x8x32xf32>
    %48 = arith.mulf %18, %47 : vector<16x8x32xf32>
    %cst_46 = arith.constant dense<0.000000e+00> : vector<16x8xf32>
    %49 = vector.multi_reduction <add>, %48, %cst_46 [2] : vector<16x8x32xf32> to vector<16x8xf32>
    %50 = arith.mulf %45, %45 : vector<16x32xf32>
    %cst_47 = arith.constant dense<0.000000e+00> : vector<16xf32>
    %51 = vector.multi_reduction <add>, %50, %cst_47 [1] : vector<16x32xf32> to vector<16xf32>
    %52 = vector.shape_cast %51 : vector<16xf32> to vector<16x1xf32>
    %cst_48 = arith.constant 2.000000e+00 : f32
    %53 = vector.broadcast %cst_48 : f32 to vector<16x8xf32>
    %54 = arith.mulf %53, %49 : vector<16x8xf32>
    %55 = arith.addf %20, %54 : vector<16x8xf32>
    %56 = vector.broadcast %52 : vector<16x1xf32> to vector<16x8xf32>
    %57 = arith.addf %55, %56 : vector<16x8xf32>
    %cst_49 = arith.constant 0.000000e+00 : f32
    %58 = vector.broadcast %cst_49 : f32 to vector<16x8xf32>
    %59 = arith.subf %58, %57 : vector<16x8xf32>
    %60 = arith.mulf %59, %4 : vector<16x8xf32>
    %61 = math.exp %60 : vector<16x8xf32>
    %cst_50 = arith.constant dense<0.000000e+00> : vector<16xf32>
    %62 = vector.multi_reduction <add>, %61, %cst_50 [1] : vector<16x8xf32> to vector<16xf32>
    %63 = vector.shape_cast %62 : vector<16xf32> to vector<16x1xf32>
    %64 = tpu.reciprocal %63 {approx = true} : vector<16x1xf32> -> vector<16x1xf32>
    %65 = vector.broadcast %64 : vector<16x1xf32> to vector<16x8xf32>
    %66 = arith.mulf %61, %65 : vector<16x8xf32>
    %67 = vector.shape_cast %66 : vector<16x8xf32> to vector<16x8x1xf32>
    %68 = vector.broadcast %67 : vector<16x8x1xf32> to vector<16x8x32xf32>
    %69 = arith.mulf %68, %37 : vector<16x8x32xf32>
    %70 = vector.shape_cast %42 : vector<1x32xf32> to vector<1x1x32xf32>
    %71 = vector.broadcast %70 : vector<1x1x32xf32> to vector<16x8x32xf32>
    %72 = arith.addf %69, %71 : vector<16x8x32xf32>
    %cst_51 = arith.constant 0.000000e+00 : f32
    %73 = vector.broadcast %cst_51 : f32 to vector<16x8x32xf32>
    %74 = arith.maximumf %72, %73 : vector<16x8x32xf32>
    %cst_52 = arith.constant dense<0.000000e+00> : vector<16x32xf32>
    %75 = vector.multi_reduction <add>, %74, %cst_52 [1] : vector<16x8x32xf32> to vector<16x32xf32>
    %cst_53 = arith.constant 0.000000e+00 : f32
    %76 = vector.broadcast %cst_53 : f32 to vector<16x32xf32>
    %77 = arith.subf %76, %75 : vector<16x32xf32>
    %cst_54 = arith.constant dense<0.000000e+00> : vector<16x32xf32>
    %78 = tpu.matmul %77, %40, %cst_54 {dimension_numbers = #tpu.dot_dimension_numbers<[1], [0], [0], [1], [0, 0, 1, 1], [], []>} : vector<16x32xf32>, vector<32x32xf32>, vector<16x32xf32> -> vector<16x32xf32>
    %79 = vector.broadcast %41 : vector<1x32xf32> to vector<16x32xf32>
    %80 = arith.addf %78, %79 : vector<16x32xf32>
    %81 = arith.negf %80 : vector<16x32xf32>
    %82 = math.exp %81 : vector<16x32xf32>
    %cst_55 = arith.constant 1.000000e+00 : f32
    %83 = vector.broadcast %cst_55 : f32 to vector<16x32xf32>
    %84 = arith.addf %83, %82 : vector<16x32xf32>
    %85 = arith.divf %83, %84 : vector<16x32xf32>
    %cst_56 = arith.constant 1.000000e+00 : f32
    %86 = vector.broadcast %cst_56 : f32 to vector<16x32xf32>
    %87 = arith.subf %86, %85 : vector<16x32xf32>
    %88 = arith.mulf %87, %9 : vector<16x32xf32>
    %89 = arith.mulf %85, %77 : vector<16x32xf32>
    %90 = arith.addf %88, %89 : vector<16x32xf32>
    %cst_57 = arith.constant dense<0.000000e+00> : vector<16x32xf32>
    %91 = tpu.matmul %90, %38, %cst_57 {dimension_numbers = #tpu.dot_dimension_numbers<[1], [0], [0], [1], [0, 0, 1, 1], [], []>} : vector<16x32xf32>, vector<32x32xf32>, vector<16x32xf32> -> vector<16x32xf32>
    %92 = vector.broadcast %39 : vector<1x32xf32> to vector<16x32xf32>
    %93 = arith.addf %91, %92 : vector<16x32xf32>
    %94 = vector.shape_cast %93 : vector<16x32xf32> to vector<16x1x32xf32>
    %95 = vector.broadcast %94 : vector<16x1x32xf32> to vector<16x8x32xf32>
    %96 = arith.mulf %18, %95 : vector<16x8x32xf32>
    %cst_58 = arith.constant dense<0.000000e+00> : vector<16x8xf32>
    %97 = vector.multi_reduction <add>, %96, %cst_58 [2] : vector<16x8x32xf32> to vector<16x8xf32>
    %98 = arith.mulf %93, %93 : vector<16x32xf32>
    %cst_59 = arith.constant dense<0.000000e+00> : vector<16xf32>
    %99 = vector.multi_reduction <add>, %98, %cst_59 [1] : vector<16x32xf32> to vector<16xf32>
    %100 = vector.shape_cast %99 : vector<16xf32> to vector<16x1xf32>
    %cst_60 = arith.constant 2.000000e+00 : f32
    %101 = vector.broadcast %cst_60 : f32 to vector<16x8xf32>
    %102 = arith.mulf %101, %97 : vector<16x8xf32>
    %103 = arith.addf %20, %102 : vector<16x8xf32>
    %104 = vector.broadcast %100 : vector<16x1xf32> to vector<16x8xf32>
    %105 = arith.addf %103, %104 : vector<16x8xf32>
    %cst_61 = arith.constant 0.000000e+00 : f32
    %106 = vector.broadcast %cst_61 : f32 to vector<16x8xf32>
    %107 = arith.subf %106, %105 : vector<16x8xf32>
    %108 = arith.mulf %107, %4 : vector<16x8xf32>
    %109 = math.exp %108 : vector<16x8xf32>
    %cst_62 = arith.constant dense<0.000000e+00> : vector<16xf32>
    %110 = vector.multi_reduction <add>, %109, %cst_62 [1] : vector<16x8xf32> to vector<16xf32>
    %111 = vector.shape_cast %110 : vector<16xf32> to vector<16x1xf32>
    %112 = tpu.reciprocal %111 {approx = true} : vector<16x1xf32> -> vector<16x1xf32>
    %113 = vector.broadcast %112 : vector<16x1xf32> to vector<16x8xf32>
    %114 = arith.mulf %109, %113 : vector<16x8xf32>
    %115 = vector.shape_cast %114 : vector<16x8xf32> to vector<16x8x1xf32>
    %116 = vector.broadcast %115 : vector<16x8x1xf32> to vector<16x8x32xf32>
    %117 = arith.mulf %116, %37 : vector<16x8x32xf32>
    %118 = vector.shape_cast %42 : vector<1x32xf32> to vector<1x1x32xf32>
    %119 = vector.broadcast %118 : vector<1x1x32xf32> to vector<16x8x32xf32>
    %120 = arith.addf %117, %119 : vector<16x8x32xf32>
    %cst_63 = arith.constant 0.000000e+00 : f32
    %121 = vector.broadcast %cst_63 : f32 to vector<16x8x32xf32>
    %122 = arith.maximumf %120, %121 : vector<16x8x32xf32>
    %cst_64 = arith.constant dense<0.000000e+00> : vector<16x32xf32>
    %123 = vector.multi_reduction <add>, %122, %cst_64 [1] : vector<16x8x32xf32> to vector<16x32xf32>
    %cst_65 = arith.constant 0.000000e+00 : f32
    %124 = vector.broadcast %cst_65 : f32 to vector<16x32xf32>
    %125 = arith.subf %124, %123 : vector<16x32xf32>
    %cst_66 = arith.constant dense<0.000000e+00> : vector<16x32xf32>
    %126 = tpu.matmul %125, %40, %cst_66 {dimension_numbers = #tpu.dot_dimension_numbers<[1], [0], [0], [1], [0, 0, 1, 1], [], []>} : vector<16x32xf32>, vector<32x32xf32>, vector<16x32xf32> -> vector<16x32xf32>
    %127 = vector.broadcast %41 : vector<1x32xf32> to vector<16x32xf32>
    %128 = arith.addf %126, %127 : vector<16x32xf32>
    %129 = arith.negf %128 : vector<16x32xf32>
    %130 = math.exp %129 : vector<16x32xf32>
    %cst_67 = arith.constant 1.000000e+00 : f32
    %131 = vector.broadcast %cst_67 : f32 to vector<16x32xf32>
    %132 = arith.addf %131, %130 : vector<16x32xf32>
    %133 = arith.divf %131, %132 : vector<16x32xf32>
    %cst_68 = arith.constant 1.000000e+00 : f32
    %134 = vector.broadcast %cst_68 : f32 to vector<16x32xf32>
    %135 = arith.subf %134, %133 : vector<16x32xf32>
    %136 = arith.mulf %135, %90 : vector<16x32xf32>
    %137 = arith.mulf %133, %125 : vector<16x32xf32>
    %138 = arith.addf %136, %137 : vector<16x32xf32>
    %cst_69 = arith.constant dense<0.000000e+00> : vector<16x32xf32>
    %139 = tpu.matmul %138, %38, %cst_69 {dimension_numbers = #tpu.dot_dimension_numbers<[1], [0], [0], [1], [0, 0, 1, 1], [], []>} : vector<16x32xf32>, vector<32x32xf32>, vector<16x32xf32> -> vector<16x32xf32>
    %140 = vector.broadcast %39 : vector<1x32xf32> to vector<16x32xf32>
    %141 = arith.addf %139, %140 : vector<16x32xf32>
    %142 = vector.shape_cast %141 : vector<16x32xf32> to vector<16x1x32xf32>
    %143 = vector.broadcast %142 : vector<16x1x32xf32> to vector<16x8x32xf32>
    %144 = arith.mulf %18, %143 : vector<16x8x32xf32>
    %cst_70 = arith.constant dense<0.000000e+00> : vector<16x8xf32>
    %145 = vector.multi_reduction <add>, %144, %cst_70 [2] : vector<16x8x32xf32> to vector<16x8xf32>
    %146 = arith.mulf %141, %141 : vector<16x32xf32>
    %cst_71 = arith.constant dense<0.000000e+00> : vector<16xf32>
    %147 = vector.multi_reduction <add>, %146, %cst_71 [1] : vector<16x32xf32> to vector<16xf32>
    %148 = vector.shape_cast %147 : vector<16xf32> to vector<16x1xf32>
    %cst_72 = arith.constant 2.000000e+00 : f32
    %149 = vector.broadcast %cst_72 : f32 to vector<16x8xf32>
    %150 = arith.mulf %149, %145 : vector<16x8xf32>
    %151 = arith.addf %20, %150 : vector<16x8xf32>
    %152 = vector.broadcast %148 : vector<16x1xf32> to vector<16x8xf32>
    %153 = arith.addf %151, %152 : vector<16x8xf32>
    %cst_73 = arith.constant 0.000000e+00 : f32
    %154 = vector.broadcast %cst_73 : f32 to vector<16x8xf32>
    %155 = arith.subf %154, %153 : vector<16x8xf32>
    %156 = arith.mulf %155, %4 : vector<16x8xf32>
    %157 = math.exp %156 : vector<16x8xf32>
    %cst_74 = arith.constant dense<0.000000e+00> : vector<16xf32>
    %158 = vector.multi_reduction <add>, %157, %cst_74 [1] : vector<16x8xf32> to vector<16xf32>
    %159 = vector.shape_cast %158 : vector<16xf32> to vector<16x1xf32>
    %160 = tpu.reciprocal %159 {approx = true} : vector<16x1xf32> -> vector<16x1xf32>
    %161 = vector.broadcast %160 : vector<16x1xf32> to vector<16x8xf32>
    %162 = arith.mulf %157, %161 : vector<16x8xf32>
    %163 = vector.shape_cast %162 : vector<16x8xf32> to vector<16x8x1xf32>
    %164 = vector.broadcast %163 : vector<16x8x1xf32> to vector<16x8x32xf32>
    %165 = arith.mulf %164, %37 : vector<16x8x32xf32>
    %166 = vector.shape_cast %42 : vector<1x32xf32> to vector<1x1x32xf32>
    %167 = vector.broadcast %166 : vector<1x1x32xf32> to vector<16x8x32xf32>
    %168 = arith.addf %165, %167 : vector<16x8x32xf32>
    %cst_75 = arith.constant 0.000000e+00 : f32
    %169 = vector.broadcast %cst_75 : f32 to vector<16x8x32xf32>
    %170 = arith.maximumf %168, %169 : vector<16x8x32xf32>
    %cst_76 = arith.constant dense<0.000000e+00> : vector<16x32xf32>
    %171 = vector.multi_reduction <add>, %170, %cst_76 [1] : vector<16x8x32xf32> to vector<16x32xf32>
    %cst_77 = arith.constant 0.000000e+00 : f32
    %172 = vector.broadcast %cst_77 : f32 to vector<16x32xf32>
    %173 = arith.subf %172, %171 : vector<16x32xf32>
    %c0_78 = arith.constant 0 : index
    %c0_79 = arith.constant 0 : index
    %174 = vector.load %arg20[%c0_78, %c0_79] : memref<16x32xf32, #tpu.memory_space<vmem>>, vector<16x32xf32>
    tpu.vector_store %arg20[%c0_78, %c0_79], %173 {strides = array<i32>} : memref<16x32xf32, #tpu.memory_space<vmem>>, vector<16x32xf32>,
    return
  }
  func.func @transform_0(%arg0: i32) -> (i32, i32) {
    %c0_i32 = arith.constant 0 : i32
    %c0_i32_0 = arith.constant 0 : i32
    return %arg0, %c0_i32 : i32, i32
  }
  func.func @transform_1(%arg0: i32) -> (i32, i32) {
    %c0_i32 = arith.constant 0 : i32
    %c0_i32_0 = arith.constant 0 : i32
    return %arg0, %c0_i32 : i32, i32
  }
  func.func @transform_2(%arg0: i32) -> (i32, i32, i32) {
    %c0_i32 = arith.constant 0 : i32
    %c0_i32_0 = arith.constant 0 : i32
    %c0_i32_1 = arith.constant 0 : i32
    return %arg0, %c0_i32, %c0_i32_0 : i32, i32, i32
  }
  func.func @transform_3(%arg0: i32) -> (i32, i32, i32) {
    %c0_i32 = arith.constant 0 : i32
    %c0_i32_0 = arith.constant 0 : i32
    %c0_i32_1 = arith.constant 0 : i32
    return %arg0, %c0_i32, %c0_i32_0 : i32, i32, i32
  }
  func.func @transform_4(%arg0: i32) -> (i32, i32) {
    %c0_i32 = arith.constant 0 : i32
    %c0_i32_0 = arith.constant 0 : i32
    return %arg0, %c0_i32 : i32, i32
  }
  func.func @transform_5(%arg0: i32) -> (i32, i32) {
    %c0_i32 = arith.constant 0 : i32
    %c0_i32_0 = arith.constant 0 : i32
    %c0_i32_1 = arith.constant 0 : i32
    return %c0_i32, %c0_i32_0 : i32, i32
  }
  func.func @transform_6(%arg0: i32) -> (i32, i32) {
    %c0_i32 = arith.constant 0 : i32
    %c0_i32_0 = arith.constant 0 : i32
    %c0_i32_1 = arith.constant 0 : i32
    return %c0_i32, %c0_i32_0 : i32, i32
  }
  func.func @transform_7(%arg0: i32) -> (i32, i32) {
    %c0_i32 = arith.constant 0 : i32
    %c0_i32_0 = arith.constant 0 : i32
    %c0_i32_1 = arith.constant 0 : i32
    return %c0_i32, %c0_i32_0 : i32, i32
  }
  func.func @transform_8(%arg0: i32) -> (i32, i32) {
    %c0_i32 = arith.constant 0 : i32
    %c0_i32_0 = arith.constant 0 : i32
    %c0_i32_1 = arith.constant 0 : i32
    return %c0_i32, %c0_i32_0 : i32, i32
  }
  func.func @transform_9(%arg0: i32) -> (i32, i32) {
    %c0_i32 = arith.constant 0 : i32
    %c0_i32_0 = arith.constant 0 : i32
    %c0_i32_1 = arith.constant 0 : i32
    return %c0_i32, %c0_i32_0 : i32, i32
  }
  func.func @transform_10(%arg0: i32) -> (i32, i32) {
    %c0_i32 = arith.constant 0 : i32
    %c0_i32_0 = arith.constant 0 : i32
    %c0_i32_1 = arith.constant 0 : i32
    return %c0_i32, %c0_i32_0 : i32, i32
  }
  func.func @transform_11(%arg0: i32) -> (i32, i32) {
    %c0_i32 = arith.constant 0 : i32
    %c0_i32_0 = arith.constant 0 : i32
    %c0_i32_1 = arith.constant 0 : i32
    return %c0_i32, %c0_i32_0 : i32, i32
  }
  func.func @transform_12(%arg0: i32) -> (i32, i32) {
    %c0_i32 = arith.constant 0 : i32
    %c0_i32_0 = arith.constant 0 : i32
    %c0_i32_1 = arith.constant 0 : i32
    return %c0_i32, %c0_i32_0 : i32, i32
  }
  func.func @transform_13(%arg0: i32) -> (i32, i32) {
    %c0_i32 = arith.constant 0 : i32
    %c0_i32_0 = arith.constant 0 : i32
    %c0_i32_1 = arith.constant 0 : i32
    return %c0_i32, %c0_i32_0 : i32, i32
  }
  func.func @transform_14(%arg0: i32) -> (i32, i32) {
    %c0_i32 = arith.constant 0 : i32
    %c0_i32_0 = arith.constant 0 : i32
    %c0_i32_1 = arith.constant 0 : i32
    return %c0_i32, %c0_i32_0 : i32, i32
  }
  func.func @transform_15(%arg0: i32) -> (i32, i32) {
    %c0_i32 = arith.constant 0 : i32
    %c0_i32_0 = arith.constant 0 : i32
    %c0_i32_1 = arith.constant 0 : i32
    return %c0_i32, %c0_i32_0 : i32, i32
  }
  func.func @transform_16(%arg0: i32) -> (i32, i32) {
    %c0_i32 = arith.constant 0 : i32
    %c0_i32_0 = arith.constant 0 : i32
    %c0_i32_1 = arith.constant 0 : i32
    return %c0_i32, %c0_i32_0 : i32, i32
  }
  func.func @transform_17(%arg0: i32) -> (i32, i32) {
    %c0_i32 = arith.constant 0 : i32
    %c0_i32_0 = arith.constant 0 : i32
    %c0_i32_1 = arith.constant 0 : i32
    return %c0_i32, %c0_i32_0 : i32, i32
  }
  func.func @transform_18(%arg0: i32) -> (i32, i32) {
    %c0_i32 = arith.constant 0 : i32
    %c0_i32_0 = arith.constant 0 : i32
    %c0_i32_1 = arith.constant 0 : i32
    return %c0_i32, %c0_i32_0 : i32, i32
  }
  func.func @transform_19(%arg0: i32) -> (i32, i32) {
    %c0_i32 = arith.constant 0 : i32
    %c0_i32_0 = arith.constant 0 : i32
    return %arg0, %c0_i32 : i32, i32
  }
}

</mosaic_0001>

<llo_original>
// kernel: tpu_custom_call.1
$region0: #{tpu_custom_call.1}
  #allocation0 [shape = 'u32[]', space=smem, size = 0x4, offset = 0x4, fixed_abs, tag = 'smem constant byte address 0x4 - core index']
  #allocation1 [shape = 'u32[144,128]{1,0:T(1,128)}', space=vmem, size = 0x12000, scoped, tag = 'internal scratch']
  %s0 = inlined_call_operand.vmem [shape: f32[64,64], index: 0, kind: input, shape index: {}]
  %s1 = inlined_call_operand.vmem [shape: f32[64,64], index: 1, kind: input, shape index: {}]
  %s2 = inlined_call_operand.vmem [shape: f32[64,8,32], index: 2, kind: input, shape index: {}]
  %s3 = inlined_call_operand.vmem [shape: f32[64,8,32], index: 3, kind: input, shape index: {}]
  %s4 = inlined_call_operand.vmem [shape: f32[64,8], index: 4, kind: input, shape index: {}]
  %s5 = inlined_call_operand.vmem [shape: f32[64,32], index: 5, kind: input, shape index: {}]
  %s6 = inlined_call_operand.vmem [shape: f32[1,32], index: 6, kind: input, shape index: {}]
  %s7 = inlined_call_operand.vmem [shape: f32[32,32], index: 7, kind: input, shape index: {}]
  %s8 = inlined_call_operand.vmem [shape: f32[32,32], index: 8, kind: input, shape index: {}]
  %s9 = inlined_call_operand.vmem [shape: f32[1,32], index: 9, kind: input, shape index: {}]
  %s10 = inlined_call_operand.vmem [shape: f32[64,32], index: 10, kind: input, shape index: {}]
  %s11 = inlined_call_operand.vmem [shape: f32[1,32], index: 11, kind: input, shape index: {}]
  %s12 = inlined_call_operand.vmem [shape: f32[32,32], index: 12, kind: input, shape index: {}]
  %s13 = inlined_call_operand.vmem [shape: f32[32,32], index: 13, kind: input, shape index: {}]
  %s14 = inlined_call_operand.vmem [shape: f32[1,32], index: 14, kind: input, shape index: {}]
  %s15 = inlined_call_operand.vmem [shape: f32[32,32], index: 15, kind: input, shape index: {}]
  %s16 = inlined_call_operand.vmem [shape: f32[1,32], index: 16, kind: input, shape index: {}]
  %s17 = inlined_call_operand.vmem [shape: f32[32,32], index: 17, kind: input, shape index: {}]
  %s18 = inlined_call_operand.vmem [shape: f32[1,32], index: 18, kind: input, shape index: {}]
  %s19 = inlined_call_operand.vmem [shape: f32[64,32], index: 19, kind: output, shape index: {}]
  %s20 = sld [smem:[#allocation0]]
  $region109: #{tpu_custom_call.1} parent=0
    _
  %s22 = ssub.s32 1, %s20
  %s23 = scalar_select 0, %s22, %s20
  loop: start=0, step=1, limit=6
  $region2: #{tpu_custom_call.1} parent=0 // loop_pre_header
    _
  $region3: #{tpu_custom_call.1} parent=0 // loop_header
    %s25 = sphi 0, %s29
    %p26 = scmp.ge.s32.totalorder %s25, 6
    %s35 = sphi 0, %s37
    %s38 = sphi 0, %s35
    %s39 = sphi 0, %s38
    %s55 = sphi 0, %s39
    %s61 = sphi 0, %s63
    %s64 = sphi 0, %s61
    %s65 = sphi 0, %s64
    %s81 = sphi 0, %s65
    %s87 = sphi 0, %s89
    %s90 = sphi 0, %s87
    %s91 = sphi 0, %s90
    %s107 = sphi 0, %s91
    %s113 = sphi 0, %s115
    %s116 = sphi 0, %s113
    %s117 = sphi 0, %s116
    %s133 = sphi 0, %s117
    %s139 = sphi 0, %s141
    %s142 = sphi 0, %s139
    %s143 = sphi 0, %s142
    %s159 = sphi 0, %s143
    %s163 = sphi 0, %s163
    %s165 = sphi 0, %s163
    %s166 = sphi 0, %s165
    %s180 = sphi 0, %s166
    %s184 = sphi 0, %s184
    %s186 = sphi 0, %s184
    %s187 = sphi 0, %s186
    %s201 = sphi 0, %s187
    %s205 = sphi 0, %s205
    %s207 = sphi 0, %s205
    %s208 = sphi 0, %s207
    %s222 = sphi 0, %s208
    %s226 = sphi 0, %s226
    %s228 = sphi 0, %s226
    %s229 = sphi 0, %s228
    %s243 = sphi 0, %s229
    %s247 = sphi 0, %s247
    %s249 = sphi 0, %s247
    %s250 = sphi 0, %s249
    %s264 = sphi 0, %s250
    %s268 = sphi 0, %s268
    %s270 = sphi 0, %s268
    %s271 = sphi 0, %s270
    %s285 = sphi 0, %s271
    %s289 = sphi 0, %s289
    %s291 = sphi 0, %s289
    %s292 = sphi 0, %s291
    %s306 = sphi 0, %s292
    %s310 = sphi 0, %s310
    %s312 = sphi 0, %s310
    %s313 = sphi 0, %s312
    %s327 = sphi 0, %s313
    %s331 = sphi 0, %s331
    %s333 = sphi 0, %s331
    %s334 = sphi 0, %s333
    %s348 = sphi 0, %s334
    %s352 = sphi 0, %s352
    %s354 = sphi 0, %s352
    %s355 = sphi 0, %s354
    %s369 = sphi 0, %s355
    %s373 = sphi 0, %s373
    %s375 = sphi 0, %s373
    %s376 = sphi 0, %s375
    %s390 = sphi 0, %s376
    %s394 = sphi 0, %s394
    %s396 = sphi 0, %s394
    %s397 = sphi 0, %s396
    %s411 = sphi 0, %s397
    %s415 = sphi 0, %s415
    %s417 = sphi 0, %s415
    %s418 = sphi 0, %s417
    %s432 = sphi 0, %s418
    %s436 = sphi 0, %s436
    %s438 = sphi 0, %s436
    %s439 = sphi 0, %s438
    %s453 = sphi 0, %s439
    %s459 = sphi 0, %s461
    %s462 = sphi 0, %s459
    %s463 = sphi 0, %s462
    %s479 = sphi 0, %s463
  $region4: #{tpu_custom_call.1} parent=0 // loop_header_branch
    %28 = sbr.rel (%p26) target = $region8
  $region5: #{tpu_custom_call.1} parent=0 // loop_body
    %s30 = ssub.s32 %s25, 1
    %s31 = ssub.s32 %s25, 2
    %s32 = sadd.s32 %s25, 1
    %s33 = ssub.s32 %s25, %s32
    %p34 = scmp.eq.s32.totalorder %s33, 0
    %s36 = sadd.s32 %s35, 1
    %s37 = scalar_select %p34, %s35, %s36
    %p40 = pneg %p34
    %p41 = scmp.eq.s32.totalorder %s25, 3
    %p42 = por %p40, %p41
    %p43 = scmp.ne.s32.totalorder %s35, %s38
    %p44 = scmp.eq.s32.totalorder %s25, 0
    %p45 = por %p43, %p44
    %p46 = scmp.ne.s32.totalorder %s35, %s38
    %p47 = scmp.eq.s32.totalorder %s30, 3
    %p48 = por %p46, %p47
    %p49 = scmp.ne.s32.totalorder %s38, %s39
    %p50 = scmp.eq.s32.totalorder %s30, 0
    %p51 = por %p49, %p50
    %p52 = scmp.ne.s32.totalorder %s38, %s39
    %p53 = scmp.eq.s32.totalorder %s31, 3
    %p54 = por %p52, %p53
    %p56 = scmp.ne.s32.totalorder %s39, %s55
    %p57 = scmp.eq.s32.totalorder %s31, 0
    %p58 = por %p56, %p57
    %s59 = ssub.s32 %s25, %s32
    %p60 = scmp.eq.s32.totalorder %s59, 0
    %s62 = sadd.s32 %s61, 1
    %s63 = scalar_select %p60, %s61, %s62
    %p66 = pneg %p60
    %p67 = scmp.eq.s32.totalorder %s25, 3
    %p68 = por %p66, %p67
    %p69 = scmp.ne.s32.totalorder %s61, %s64
    %p70 = scmp.eq.s32.totalorder %s25, 0
    %p71 = por %p69, %p70
    %p72 = scmp.ne.s32.totalorder %s61, %s64
    %p73 = scmp.eq.s32.totalorder %s30, 3
    %p74 = por %p72, %p73
    %p75 = scmp.ne.s32.totalorder %s64, %s65
    %p76 = scmp.eq.s32.totalorder %s30, 0
    %p77 = por %p75, %p76
    %p78 = scmp.ne.s32.totalorder %s64, %s65
    %p79 = scmp.eq.s32.totalorder %s31, 3
    %p80 = por %p78, %p79
    %p82 = scmp.ne.s32.totalorder %s65, %s81
    %p83 = scmp.eq.s32.totalorder %s31, 0
    %p84 = por %p82, %p83
    %s85 = ssub.s32 %s25, %s32
    %p86 = scmp.eq.s32.totalorder %s85, 0
    %s88 = sadd.s32 %s87, 1
    %s89 = scalar_select %p86, %s87, %s88
    %p92 = pneg %p86
    %p93 = scmp.eq.s32.totalorder %s25, 3
    %p94 = por %p92, %p93
    %p95 = scmp.ne.s32.totalorder %s87, %s90
    %p96 = scmp.eq.s32.totalorder %s25, 0
    %p97 = por %p95, %p96
    %p98 = scmp.ne.s32.totalorder %s87, %s90
    %p99 = scmp.eq.s32.totalorder %s30, 3
    %p100 = por %p98, %p99
    %p101 = scmp.ne.s32.totalorder %s90, %s91
    %p102 = scmp.eq.s32.totalorder %s30, 0
    %p103 = por %p101, %p102
    %p104 = scmp.ne.s32.totalorder %s90, %s91
    %p105 = scmp.eq.s32.totalorder %s31, 3
    %p106 = por %p104, %p105
    %p108 = scmp.ne.s32.totalorder %s91, %s107
    %p109 = scmp.eq.s32.totalorder %s31, 0
    %p110 = por %p108, %p109
    %s111 = ssub.s32 %s25, %s32
    %p112 = scmp.eq.s32.totalorder %s111, 0
    %s114 = sadd.s32 %s113, 1
    %s115 = scalar_select %p112, %s113, %s114
    %p118 = pneg %p112
    %p119 = scmp.eq.s32.totalorder %s25, 3
    %p120 = por %p118, %p119
    %p121 = scmp.ne.s32.totalorder %s113, %s116
    %p122 = scmp.eq.s32.totalorder %s25, 0
    %p123 = por %p121, %p122
    %p124 = scmp.ne.s32.totalorder %s113, %s116
    %p125 = scmp.eq.s32.totalorder %s30, 3
    %p126 = por %p124, %p125
    %p127 = scmp.ne.s32.totalorder %s116, %s117
    %p128 = scmp.eq.s32.totalorder %s30, 0
    %p129 = por %p127, %p128
    %p130 = scmp.ne.s32.totalorder %s116, %s117
    %p131 = scmp.eq.s32.totalorder %s31, 3
    %p132 = por %p130, %p131
    %p134 = scmp.ne.s32.totalorder %s117, %s133
    %p135 = scmp.eq.s32.totalorder %s31, 0
    %p136 = por %p134, %p135
    %s137 = ssub.s32 %s25, %s32
    %p138 = scmp.eq.s32.totalorder %s137, 0
    %s140 = sadd.s32 %s139, 1
    %s141 = scalar_select %p138, %s139, %s140
    %p144 = pneg %p138
    %p145 = scmp.eq.s32.totalorder %s25, 3
    %p146 = por %p144, %p145
    %p147 = scmp.ne.s32.totalorder %s139, %s142
    %p148 = scmp.eq.s32.totalorder %s25, 0
    %p149 = por %p147, %p148
    %p150 = scmp.ne.s32.totalorder %s139, %s142
    %p151 = scmp.eq.s32.totalorder %s30, 3
    %p152 = por %p150, %p151
    %p153 = scmp.ne.s32.totalorder %s142, %s143
    %p154 = scmp.eq.s32.totalorder %s30, 0
    %p155 = por %p153, %p154
    %p156 = scmp.ne.s32.totalorder %s142, %s143
    %p157 = scmp.eq.s32.totalorder %s31, 3
    %p158 = por %p156, %p157
    %p160 = scmp.ne.s32.totalorder %s143, %s159
    %p161 = scmp.eq.s32.totalorder %s31, 0
    %p162 = por %p160, %p161
    %s164 = sadd.s32 %s163, 1
    %p167 = scmp.eq.s32.totalorder %s25, 3
    %p168 = scmp.ne.s32.totalorder %s163, %s165
    %p169 = scmp.eq.s32.totalorder %s25, 0
    %p170 = por %p168, %p169
    %p171 = scmp.ne.s32.totalorder %s163, %s165
    %p172 = scmp.eq.s32.totalorder %s30, 3
    %p173 = por %p171, %p172
    %p174 = scmp.ne.s32.totalorder %s165, %s166
    %p175 = scmp.eq.s32.totalorder %s30, 0
    %p176 = por %p174, %p175
    %p177 = scmp.ne.s32.totalorder %s165, %s166
    %p178 = scmp.eq.s32.totalorder %s31, 3
    %p179 = por %p177, %p178
    %p181 = scmp.ne.s32.totalorder %s166, %s180
    %p182 = scmp.eq.s32.totalorder %s31, 0
    %p183 = por %p181, %p182
    %s185 = sadd.s32 %s184, 1
    %p188 = scmp.eq.s32.totalorder %s25, 3
    %p189 = scmp.ne.s32.totalorder %s184, %s186
    %p190 = scmp.eq.s32.totalorder %s25, 0
    %p191 = por %p189, %p190
    %p192 = scmp.ne.s32.totalorder %s184, %s186
    %p193 = scmp.eq.s32.totalorder %s30, 3
    %p194 = por %p192, %p193
    %p195 = scmp.ne.s32.totalorder %s186, %s187
    %p196 = scmp.eq.s32.totalorder %s30, 0
    %p197 = por %p195, %p196
    %p198 = scmp.ne.s32.totalorder %s186, %s187
    %p199 = scmp.eq.s32.totalorder %s31, 3
    %p200 = por %p198, %p199
    %p202 = scmp.ne.s32.totalorder %s187, %s201
    %p203 = scmp.eq.s32.totalorder %s31, 0
    %p204 = por %p202, %p203
    %s206 = sadd.s32 %s205, 1
    %p209 = scmp.eq.s32.totalorder %s25, 3
    %p210 = scmp.ne.s32.totalorder %s205, %s207
    %p211 = scmp.eq.s32.totalorder %s25, 0
    %p212 = por %p210, %p211
    %p213 = scmp.ne.s32.totalorder %s205, %s207
    %p214 = scmp.eq.s32.totalorder %s30, 3
    %p215 = por %p213, %p214
    %p216 = scmp.ne.s32.totalorder %s207, %s208
    %p217 = scmp.eq.s32.totalorder %s30, 0
    %p218 = por %p216, %p217
    %p219 = scmp.ne.s32.totalorder %s207, %s208
    %p220 = scmp.eq.s32.totalorder %s31, 3
    %p221 = por %p219, %p220
    %p223 = scmp.ne.s32.totalorder %s208, %s222
    %p224 = scmp.eq.s32.totalorder %s31, 0
    %p225 = por %p223, %p224
    %s227 = sadd.s32 %s226, 1
    %p230 = scmp.eq.s32.totalorder %s25, 3
    %p231 = scmp.ne.s32.totalorder %s226, %s228
    %p232 = scmp.eq.s32.totalorder %s25, 0
    %p233 = por %p231, %p232
    %p234 = scmp.ne.s32.totalorder %s226, %s228
    %p235 = scmp.eq.s32.totalorder %s30, 3
    %p236 = por %p234, %p235
    %p237 = scmp.ne.s32.totalorder %s228, %s229
    %p238 = scmp.eq.s32.totalorder %s30, 0
    %p239 = por %p237, %p238
    %p240 = scmp.ne.s32.totalorder %s228, %s229
    %p241 = scmp.eq.s32.totalorder %s31, 3
    %p242 = por %p240, %p241
    %p244 = scmp.ne.s32.totalorder %s229, %s243
    %p245 = scmp.eq.s32.totalorder %s31, 0
    %p246 = por %p244, %p245
    %s248 = sadd.s32 %s247, 1
    %p251 = scmp.eq.s32.totalorder %s25, 3
    %p252 = scmp.ne.s32.totalorder %s247, %s249
    %p253 = scmp.eq.s32.totalorder %s25, 0
    %p254 = por %p252, %p253
    %p255 = scmp.ne.s32.totalorder %s247, %s249
    %p256 = scmp.eq.s32.totalorder %s30, 3
    %p257 = por %p255, %p256
    %p258 = scmp.ne.s32.totalorder %s249, %s250
    %p259 = scmp.eq.s32.totalorder %s30, 0
    %p260 = por %p258, %p259
    %p261 = scmp.ne.s32.totalorder %s249, %s250
    %p262 = scmp.eq.s32.totalorder %s31, 3
    %p263 = por %p261, %p262
    %p265 = scmp.ne.s32.totalorder %s250, %s264
    %p266 = scmp.eq.s32.totalorder %s31, 0
    %p267 = por %p265, %p266
    %s269 = sadd.s32 %s268, 1
    %p272 = scmp.eq.s32.totalorder %s25, 3
    %p273 = scmp.ne.s32.totalorder %s268, %s270
    %p274 = scmp.eq.s32.totalorder %s25, 0
    %p275 = por %p273, %p274
    %p276 = scmp.ne.s32.totalorder %s268, %s270
    %p277 = scmp.eq.s32.totalorder %s30, 3
    %p278 = por %p276, %p277
    %p279 = scmp.ne.s32.totalorder %s270, %s271
    %p280 = scmp.eq.s32.totalorder %s30, 0
    %p281 = por %p279, %p280
    %p282 = scmp.ne.s32.totalorder %s270, %s271
    %p283 = scmp.eq.s32.totalorder %s31, 3
    %p284 = por %p282, %p283
    %p286 = scmp.ne.s32.totalorder %s271, %s285
    %p287 = scmp.eq.s32.totalorder %s31, 0
    %p288 = por %p286, %p287
    %s290 = sadd.s32 %s289, 1
    %p293 = scmp.eq.s32.totalorder %s25, 3
    %p294 = scmp.ne.s32.totalorder %s289, %s291
    %p295 = scmp.eq.s32.totalorder %s25, 0
    %p296 = por %p294, %p295
    %p297 = scmp.ne.s32.totalorder %s289, %s291
    %p298 = scmp.eq.s32.totalorder %s30, 3
    %p299 = por %p297, %p298
    %p300 = scmp.ne.s32.totalorder %s291, %s292
    %p301 = scmp.eq.s32.totalorder %s30, 0
    %p302 = por %p300, %p301
    %p303 = scmp.ne.s32.totalorder %s291, %s292
    %p304 = scmp.eq.s32.totalorder %s31, 3
    %p305 = por %p303, %p304
    %p307 = scmp.ne.s32.totalorder %s292, %s306
    %p308 = scmp.eq.s32.totalorder %s31, 0
    %p309 = por %p307, %p308
    %s311 = sadd.s32 %s310, 1
    %p314 = scmp.eq.s32.totalorder %s25, 3
    %p315 = scmp.ne.s32.totalorder %s310, %s312
    %p316 = scmp.eq.s32.totalorder %s25, 0
    %p317 = por %p315, %p316
    %p318 = scmp.ne.s32.totalorder %s310, %s312
    %p319 = scmp.eq.s32.totalorder %s30, 3
    %p320 = por %p318, %p319
    %p321 = scmp.ne.s32.totalorder %s312, %s313
    %p322 = scmp.eq.s32.totalorder %s30, 0
    %p323 = por %p321, %p322
    %p324 = scmp.ne.s32.totalorder %s312, %s313
    %p325 = scmp.eq.s32.totalorder %s31, 3
    %p326 = por %p324, %p325
    %p328 = scmp.ne.s32.totalorder %s313, %s327
    %p329 = scmp.eq.s32.totalorder %s31, 0
    %p330 = por %p328, %p329
    %s332 = sadd.s32 %s331, 1
    %p335 = scmp.eq.s32.totalorder %s25, 3
    %p336 = scmp.ne.s32.totalorder %s331, %s333
    %p337 = scmp.eq.s32.totalorder %s25, 0
    %p338 = por %p336, %p337
    %p339 = scmp.ne.s32.totalorder %s331, %s333
    %p340 = scmp.eq.s32.totalorder %s30, 3
    %p341 = por %p339, %p340
    %p342 = scmp.ne.s32.totalorder %s333, %s334
    %p343 = scmp.eq.s32.totalorder %s30, 0
    %p344 = por %p342, %p343
    %p345 = scmp.ne.s32.totalorder %s333, %s334
    %p346 = scmp.eq.s32.totalorder %s31, 3
    %p347 = por %p345, %p346
    %p349 = scmp.ne.s32.totalorder %s334, %s348
    %p350 = scmp.eq.s32.totalorder %s31, 0
    %p351 = por %p349, %p350
    %s353 = sadd.s32 %s352, 1
    %p356 = scmp.eq.s32.totalorder %s25, 3
    %p357 = scmp.ne.s32.totalorder %s352, %s354
    %p358 = scmp.eq.s32.totalorder %s25, 0
    %p359 = por %p357, %p358
    %p360 = scmp.ne.s32.totalorder %s352, %s354
    %p361 = scmp.eq.s32.totalorder %s30, 3
    %p362 = por %p360, %p361
    %p363 = scmp.ne.s32.totalorder %s354, %s355
    %p364 = scmp.eq.s32.totalorder %s30, 0
    %p365 = por %p363, %p364
    %p366 = scmp.ne.s32.totalorder %s354, %s355
    %p367 = scmp.eq.s32.totalorder %s31, 3
    %p368 = por %p366, %p367
    %p370 = scmp.ne.s32.totalorder %s355, %s369
    %p371 = scmp.eq.s32.totalorder %s31, 0
    %p372 = por %p370, %p371
    %s374 = sadd.s32 %s373, 1
    %p377 = scmp.eq.s32.totalorder %s25, 3
    %p378 = scmp.ne.s32.totalorder %s373, %s375
    %p379 = scmp.eq.s32.totalorder %s25, 0
    %p380 = por %p378, %p379
    %p381 = scmp.ne.s32.totalorder %s373, %s375
    %p382 = scmp.eq.s32.totalorder %s30, 3
    %p383 = por %p381, %p382
    %p384 = scmp.ne.s32.totalorder %s375, %s376
    %p385 = scmp.eq.s32.totalorder %s30, 0
    %p386 = por %p384, %p385
    %p387 = scmp.ne.s32.totalorder %s375, %s376
    %p388 = scmp.eq.s32.totalorder %s31, 3
    %p389 = por %p387, %p388
    %p391 = scmp.ne.s32.totalorder %s376, %s390
    %p392 = scmp.eq.s32.totalorder %s31, 0
    %p393 = por %p391, %p392
    %s395 = sadd.s32 %s394, 1
    %p398 = scmp.eq.s32.totalorder %s25, 3
    %p399 = scmp.ne.s32.totalorder %s394, %s396
    %p400 = scmp.eq.s32.totalorder %s25, 0
    %p401 = por %p399, %p400
    %p402 = scmp.ne.s32.totalorder %s394, %s396
    %p403 = scmp.eq.s32.totalorder %s30, 3
    %p404 = por %p402, %p403
    %p405 = scmp.ne.s32.totalorder %s396, %s397
    %p406 = scmp.eq.s32.totalorder %s30, 0
    %p407 = por %p405, %p406
    %p408 = scmp.ne.s32.totalorder %s396, %s397
    %p409 = scmp.eq.s32.totalorder %s31, 3
    %p410 = por %p408, %p409
    %p412 = scmp.ne.s32.totalorder %s397, %s411
    %p413 = scmp.eq.s32.totalorder %s31, 0
    %p414 = por %p412, %p413
    %s416 = sadd.s32 %s415, 1
    %p419 = scmp.eq.s32.totalorder %s25, 3
    %p420 = scmp.ne.s32.totalorder %s415, %s417
    %p421 = scmp.eq.s32.totalorder %s25, 0
    %p422 = por %p420, %p421
    %p423 = scmp.ne.s32.totalorder %s415, %s417
    %p424 = scmp.eq.s32.totalorder %s30, 3
    %p425 = por %p423, %p424
    %p426 = scmp.ne.s32.totalorder %s417, %s418
    %p427 = scmp.eq.s32.totalorder %s30, 0
    %p428 = por %p426, %p427
    %p429 = scmp.ne.s32.totalorder %s417, %s418
    %p430 = scmp.eq.s32.totalorder %s31, 3
    %p431 = por %p429, %p430
    %p433 = scmp.ne.s32.totalorder %s418, %s432
    %p434 = scmp.eq.s32.totalorder %s31, 0
    %p435 = por %p433, %p434
    %s437 = sadd.s32 %s436, 1
    %p440 = scmp.eq.s32.totalorder %s25, 3
    %p441 = scmp.ne.s32.totalorder %s436, %s438
    %p442 = scmp.eq.s32.totalorder %s25, 0
    %p443 = por %p441, %p442
    %p444 = scmp.ne.s32.totalorder %s436, %s438
    %p445 = scmp.eq.s32.totalorder %s30, 3
    %p446 = por %p444, %p445
    %p447 = scmp.ne.s32.totalorder %s438, %s439
    %p448 = scmp.eq.s32.totalorder %s30, 0
    %p449 = por %p447, %p448
    %p450 = scmp.ne.s32.totalorder %s438, %s439
    %p451 = scmp.eq.s32.totalorder %s31, 3
    %p452 = por %p450, %p451
    %p454 = scmp.ne.s32.totalorder %s439, %s453
    %p455 = scmp.eq.s32.totalorder %s31, 0
    %p456 = por %p454, %p455
    %s457 = ssub.s32 %s25, %s32
    %p458 = scmp.eq.s32.totalorder %s457, 0
    %s460 = sadd.s32 %s459, 1
    %s461 = scalar_select %p458, %s459, %s460
    %p464 = pneg %p458
    %p465 = scmp.eq.s32.totalorder %s25, 3
    %p466 = por %p464, %p465
    %p467 = scmp.ne.s32.totalorder %s459, %s462
    %p468 = scmp.eq.s32.totalorder %s25, 0
    %p469 = por %p467, %p468
    %p470 = scmp.ne.s32.totalorder %s459, %s462
    %p471 = scmp.eq.s32.totalorder %s30, 3
    %p472 = por %p470, %p471
    %p473 = scmp.ne.s32.totalorder %s462, %s463
    %p474 = scmp.eq.s32.totalorder %s30, 0
    %p475 = por %p473, %p474
    %p476 = scmp.ne.s32.totalorder %s462, %s463
    %p477 = scmp.eq.s32.totalorder %s31, 3
    %p478 = por %p476, %p477
    %p480 = scmp.ne.s32.totalorder %s463, %s479
    %p481 = scmp.eq.s32.totalorder %s31, 0
    %p482 = por %p480, %p481
    %p483 = scmp.le.s32.totalorder 1, %s25
    %p484 = scmp.lt.s32.totalorder %s25, 5
    %p485 = pnand %p483, %p484
    %p486 = pneg %p485
    // Predicated region
    $region9: #{tpu_custom_call.1} parent=5 // pred_check
      _
    $region10: #{tpu_custom_call.1} parent=5 // pred_check_branch
      %488 = sbr.rel (%p485) target = $region12
    $region11: #{tpu_custom_call.1} parent=5 // pred_region
      %s489 = ssub.s32 %s25, 1
      // Predicated region
      $region13: #{tpu_custom_call.1} parent=11 // pred_check
        %p490 = pneg %p176
      $region14: #{tpu_custom_call.1} parent=11 // pred_check_branch
        %492 = sbr.rel (%p490) target = $region16
      $region15: #{tpu_custom_call.1} parent=11 // pred_region
        _
      $region16: #{tpu_custom_call.1} parent=11 // pred_fallthru
        _
      // Predicated region
      $region17: #{tpu_custom_call.1} parent=11 // pred_check
        %p493 = pneg %p197
      $region18: #{tpu_custom_call.1} parent=11 // pred_check_branch
        %495 = sbr.rel (%p493) target = $region20
      $region19: #{tpu_custom_call.1} parent=11 // pred_region
        _
      $region20: #{tpu_custom_call.1} parent=11 // pred_fallthru
        _
      // Predicated region
      $region21: #{tpu_custom_call.1} parent=11 // pred_check
        %p496 = pneg %p218
      $region22: #{tpu_custom_call.1} parent=11 // pred_check_branch
        %498 = sbr.rel (%p496) target = $region24
      $region23: #{tpu_custom_call.1} parent=11 // pred_region
        _
      $region24: #{tpu_custom_call.1} parent=11 // pred_fallthru
        _
      // Predicated region
      $region25: #{tpu_custom_call.1} parent=11 // pred_check
        %p499 = pneg %p239
      $region26: #{tpu_custom_call.1} parent=11 // pred_check_branch
        %501 = sbr.rel (%p499) target = $region28
      $region27: #{tpu_custom_call.1} parent=11 // pred_region
        _
      $region28: #{tpu_custom_call.1} parent=11 // pred_fallthru
        _
      // Predicated region
      $region29: #{tpu_custom_call.1} parent=11 // pred_check
        %p502 = pneg %p260
      $region30: #{tpu_custom_call.1} parent=11 // pred_check_branch
        %504 = sbr.rel (%p502) target = $region32
      $region31: #{tpu_custom_call.1} parent=11 // pred_region
        _
      $region32: #{tpu_custom_call.1} parent=11 // pred_fallthru
        _
      // Predicated region
      $region33: #{tpu_custom_call.1} parent=11 // pred_check
        %p505 = pneg %p281
      $region34: #{tpu_custom_call.1} parent=11 // pred_check_branch
        %507 = sbr.rel (%p505) target = $region36
      $region35: #{tpu_custom_call.1} parent=11 // pred_region
        _
      $region36: #{tpu_custom_call.1} parent=11 // pred_fallthru
        _
      // Predicated region
      $region37: #{tpu_custom_call.1} parent=11 // pred_check
        %p508 = pneg %p302
      $region38: #{tpu_custom_call.1} parent=11 // pred_check_branch
        %510 = sbr.rel (%p508) target = $region40
      $region39: #{tpu_custom_call.1} parent=11 // pred_region
        _
      $region40: #{tpu_custom_call.1} parent=11 // pred_fallthru
        _
      // Predicated region
      $region41: #{tpu_custom_call.1} parent=11 // pred_check
        %p511 = pneg %p323
      $region42: #{tpu_custom_call.1} parent=11 // pred_check_branch
        %513 = sbr.rel (%p511) target = $region44
      $region43: #{tpu_custom_call.1} parent=11 // pred_region
        _
      $region44: #{tpu_custom_call.1} parent=11 // pred_fallthru
        _
      // Predicated region
      $region45: #{tpu_custom_call.1} parent=11 // pred_check
        %p514 = pneg %p344
      $region46: #{tpu_custom_call.1} parent=11 // pred_check_branch
        %516 = sbr.rel (%p514) target = $region48
      $region47: #{tpu_custom_call.1} parent=11 // pred_region
        _
      $region48: #{tpu_custom_call.1} parent=11 // pred_fallthru
        _
      // Predicated region
      $region49: #{tpu_custom_call.1} parent=11 // pred_check
        %p517 = pneg %p365
      $region50: #{tpu_custom_call.1} parent=11 // pred_check_branch
        %519 = sbr.rel (%p517) target = $region52
      $region51: #{tpu_custom_call.1} parent=11 // pred_region
        _
      $region52: #{tpu_custom_call.1} parent=11 // pred_fallthru
        _
      // Predicated region
      $region53: #{tpu_custom_call.1} parent=11 // pred_check
        %p520 = pneg %p386
      $region54: #{tpu_custom_call.1} parent=11 // pred_check_branch
        %522 = sbr.rel (%p520) target = $region56
      $region55: #{tpu_custom_call.1} parent=11 // pred_region
        _
      $region56: #{tpu_custom_call.1} parent=11 // pred_fallthru
        _
      // Predicated region
      $region57: #{tpu_custom_call.1} parent=11 // pred_check
        %p523 = pneg %p407
      $region58: #{tpu_custom_call.1} parent=11 // pred_check_branch
        %525 = sbr.rel (%p523) target = $region60
      $region59: #{tpu_custom_call.1} parent=11 // pred_region
        _
      $region60: #{tpu_custom_call.1} parent=11 // pred_fallthru
        _
      // Predicated region
      $region61: #{tpu_custom_call.1} parent=11 // pred_check
        %p526 = pneg %p428
      $region62: #{tpu_custom_call.1} parent=11 // pred_check_branch
        %528 = sbr.rel (%p526) target = $region64
      $region63: #{tpu_custom_call.1} parent=11 // pred_region
        _
      $region64: #{tpu_custom_call.1} parent=11 // pred_fallthru
        _
      // Predicated region
      $region65: #{tpu_custom_call.1} parent=11 // pred_check
        %p529 = pneg %p449
      $region66: #{tpu_custom_call.1} parent=11 // pred_check_branch
        %531 = sbr.rel (%p529) target = $region68
      $region67: #{tpu_custom_call.1} parent=11 // pred_region
        _
      $region68: #{tpu_custom_call.1} parent=11 // pred_fallthru
        _
    $region12: #{tpu_custom_call.1} parent=5 // pred_fallthru
      _
    %p532 = scmp.lt.s32.totalorder %s25, 4
    // Predicated region
    $region69: #{tpu_custom_call.1} parent=5 // pred_check
      %p533 = pneg %p532
    $region70: #{tpu_custom_call.1} parent=5 // pred_check_branch
      %535 = sbr.rel (%p533) target = $region72
    $region71: #{tpu_custom_call.1} parent=5 // pred_region
      // Predicated region
      $region73: #{tpu_custom_call.1} parent=71 // pred_check
        %p536 = pneg %p45
      $region74: #{tpu_custom_call.1} parent=71 // pred_check_branch
        %538 = sbr.rel (%p536) target = $region76
      $region75: #{tpu_custom_call.1} parent=71 // pred_region
        %s539 = smul.u32 2, %s25
        %p540 = scmp.lt.s32.totalorder %s539, 7
        %s541 = scalar_select %p540, %s539, 7
        %s542 = smul.addr %s541, 8
        %s543 = scalar_lea.vmem %s0, %s542
        %s544 = smul.u32 2, %s25
      $region76: #{tpu_custom_call.1} parent=71 // pred_fallthru
        _
      // Predicated region
      $region77: #{tpu_custom_call.1} parent=71 // pred_check
        %p545 = pneg %p71
      $region78: #{tpu_custom_call.1} parent=71 // pred_check_branch
        %547 = sbr.rel (%p545) target = $region80
      $region79: #{tpu_custom_call.1} parent=71 // pred_region
        %s548 = smul.u32 2, %s25
        %p549 = scmp.lt.s32.totalorder %s548, 7
        %s550 = scalar_select %p549, %s548, 7
        %s551 = smul.addr %s550, 8
        %s552 = scalar_lea.vmem %s1, %s551
        %s553 = smul.u32 2, %s25
      $region80: #{tpu_custom_call.1} parent=71 // pred_fallthru
        _
      // Predicated region
      $region81: #{tpu_custom_call.1} parent=71 // pred_check
        %p554 = pneg %p97
      $region82: #{tpu_custom_call.1} parent=71 // pred_check_branch
        %556 = sbr.rel (%p554) target = $region84
      $region83: #{tpu_custom_call.1} parent=71 // pred_region
        %s557 = smul.u32 16, %s25
        %p558 = scmp.lt.s32.totalorder %s557, 63
        %s559 = scalar_select %p558, %s557, 63
        %s560 = smul.addr %s559, 8
        %s561 = scalar_lea.vmem %s2, %s560
        %s562 = smul.u32 16, %s25
      $region84: #{tpu_custom_call.1} parent=71 // pred_fallthru
        _
      // Predicated region
      $region85: #{tpu_custom_call.1} parent=71 // pred_check
        %p563 = pneg %p123
      $region86: #{tpu_custom_call.1} parent=71 // pred_check_branch
        %565 = sbr.rel (%p563) target = $region88
      $region87: #{tpu_custom_call.1} parent=71 // pred_region
        %s566 = smul.u32 16, %s25
        %p567 = scmp.lt.s32.totalorder %s566, 63
        %s568 = scalar_select %p567, %s566, 63
        %s569 = smul.addr %s568, 8
        %s570 = scalar_lea.vmem %s3, %s569
        %s571 = smul.u32 16, %s25
      $region88: #{tpu_custom_call.1} parent=71 // pred_fallthru
        _
      // Predicated region
      $region89: #{tpu_custom_call.1} parent=71 // pred_check
        %p572 = pneg %p149
      $region90: #{tpu_custom_call.1} parent=71 // pred_check_branch
        %574 = sbr.rel (%p572) target = $region92
      $region91: #{tpu_custom_call.1} parent=71 // pred_region
        %s575 = smul.u32 2, %s25
        %p576 = scmp.lt.s32.totalorder %s575, 7
        %s577 = scalar_select %p576, %s575, 7
        %s578 = smul.addr %s577, 8
        %s579 = scalar_lea.vmem %s4, %s578
        %s580 = smul.u32 2, %s25
      $region92: #{tpu_custom_call.1} parent=71 // pred_fallthru
        _
    $region72: #{tpu_custom_call.1} parent=5 // pred_fallthru
      _
    %p581 = scmp.le.s32.totalorder 1, %s25
    %p582 = scmp.lt.s32.totalorder %s25, 5
    %p583 = pnand %p581, %p582
    %p584 = pneg %p583
    // Predicated region
    $region93: #{tpu_custom_call.1} parent=5 // pred_check
      _
    $region94: #{tpu_custom_call.1} parent=5 // pred_check_branch
      %586 = sbr.rel (%p583) target = $region96
    $region95: #{tpu_custom_call.1} parent=5 // pred_region
      %s587 = ssub.s32 %s25, 1
      %s588 = smul.u32 2, %s30
      %p589 = scmp.lt.s32.totalorder %s588, 7
      %s590 = scalar_select %p589, %s588, 7
      %s591 = smul.addr %s590, 8
      %s592 = scalar_lea.vmem %s0, %s591
      %p593 = pneg %p51
      %p594 = pneg %p48
      %s595 = smul.u32 2, %s30
      %p596 = scmp.lt.s32.totalorder %s595, 7
      %s597 = scalar_select %p596, %s595, 7
      %s598 = smul.addr %s597, 8
      %s599 = scalar_lea.vmem %s1, %s598
      %p600 = pneg %p77
      %p601 = pneg %p74
      %s602 = smul.u32 16, %s30
      %p603 = scmp.lt.s32.totalorder %s602, 63
      %s604 = scalar_select %p603, %s602, 63
      %s605 = smul.addr %s604, 8
      %s606 = scalar_lea.vmem %s2, %s605
      %p607 = pneg %p103
      %p608 = pneg %p100
      %s609 = smul.u32 16, %s30
      %p610 = scmp.lt.s32.totalorder %s609, 63
      %s611 = scalar_select %p610, %s609, 63
      %s612 = smul.addr %s611, 8
      %s613 = scalar_lea.vmem %s3, %s612
      %p614 = pneg %p129
      %p615 = pneg %p126
      %s616 = smul.u32 2, %s30
      %p617 = scmp.lt.s32.totalorder %s616, 7
      %s618 = scalar_select %p617, %s616, 7
      %s619 = smul.addr %s618, 8
      %s620 = scalar_lea.vmem %s4, %s619
      %p621 = pneg %p155
      %p622 = pneg %p152
      %p623 = pneg %p176
      %p624 = pneg %p173
      %p625 = pneg %p197
      %p626 = pneg %p194
      %p627 = pneg %p218
      %p628 = pneg %p215
      %p629 = pneg %p239
      %p630 = pneg %p236
      %p631 = pneg %p260
      %p632 = pneg %p257
      %p633 = pneg %p281
      %p634 = pneg %p278
      %p635 = pneg %p302
      %p636 = pneg %p299
      %p637 = pneg %p323
      %p638 = pneg %p320
      %p639 = pneg %p344
      %p640 = pneg %p341
      %p641 = pneg %p365
      %p642 = pneg %p362
      %p643 = pneg %p386
      %p644 = pneg %p383
      %p645 = pneg %p407
      %p646 = pneg %p404
      %p647 = pneg %p428
      %p648 = pneg %p425
      %p649 = pneg %p449
      %p650 = pneg %p446
      %p651 = pneg %p475
      %p652 = pneg %p472
      %s653 = smul.u32 2, %s30
      %p654 = scmp.lt.s32.totalorder %s653, 7
      %s655 = scalar_select %p654, %s653, 7
      %s656 = smul.addr %s655, 8
      %s657 = scalar_lea.vmem %s19, %s656
      %s658 = smul.u32 2, %s30
      %p659 = scmp.lt.s32.totalorder %s658, 7
      %s660 = scalar_select %p659, %s658, 7
      %s661 = smul.addr %s660, 8
      %s662 = scalar_lea.vmem %s0, %s661
      %s663 = smul.u32 2, %s30
      %s664 = smul.u32 2, %s30
      %p665 = scmp.lt.s32.totalorder %s664, 7
      %s666 = scalar_select %p665, %s664, 7
      %s667 = smul.addr %s666, 8
      %s668 = scalar_lea.vmem %s1, %s667
      %s669 = smul.u32 2, %s30
      %s670 = smul.u32 16, %s30
      %p671 = scmp.lt.s32.totalorder %s670, 63
      %s672 = scalar_select %p671, %s670, 63
      %s673 = smul.addr %s672, 8
      %s674 = scalar_lea.vmem %s2, %s673
      %s675 = smul.u32 16, %s30
      %s676 = smul.u32 16, %s30
      %p677 = scmp.lt.s32.totalorder %s676, 63
      %s678 = scalar_select %p677, %s676, 63
      %s679 = smul.addr %s678, 8
      %s680 = scalar_lea.vmem %s3, %s679
      %s681 = smul.u32 16, %s30
      %s682 = smul.u32 2, %s30
      %p683 = scmp.lt.s32.totalorder %s682, 7
      %s684 = scalar_select %p683, %s682, 7
      %s685 = smul.addr %s684, 8
      %s686 = scalar_lea.vmem %s4, %s685
      %s687 = smul.u32 2, %s30
      %s688 = smul.u32 2, %s30
      %p689 = scmp.lt.s32.totalorder %s688, 7
      %s690 = scalar_select %p689, %s688, 7
      %s691 = smul.addr %s690, 8
      %s692 = scalar_lea.vmem %s19, %s691
      %s693 = smul.u32 2, %s30
      %v694 = vld [vmem:[%s662] sm:$0xff]
      %v695 = vld [vmem:[%s662 + $0x8] sm:$0xff]
      %v696 = vld [vmem:[%s668] sm:$0xff]
      %v697 = vld [vmem:[%s668 + $0x8] sm:$0xff]
      %v698 = vld [vmem:[%s674] sm:$0xff]
      %v699 = vld [vmem:[%s674 + $0x8] sm:$0xff]
      %v700 = vld [vmem:[%s674 + $0x10] sm:$0xff]
      %v701 = vld [vmem:[%s674 + $0x18] sm:$0xff]
      %v702 = vld [vmem:[%s674 + $0x20] sm:$0xff]
      %v703 = vld [vmem:[%s674 + $0x28] sm:$0xff]
      %v704 = vld [vmem:[%s674 + $0x30] sm:$0xff]
      %v705 = vld [vmem:[%s674 + $0x38] sm:$0xff]
      %v706 = vld [vmem:[%s674 + $0x40] sm:$0xff]
      %v707 = vld [vmem:[%s674 + $0x48] sm:$0xff]
      %v708 = vld [vmem:[%s674 + $0x50] sm:$0xff]
      %v709 = vld [vmem:[%s674 + $0x58] sm:$0xff]
      %v710 = vld [vmem:[%s674 + $0x60] sm:$0xff]
      %v711 = vld [vmem:[%s674 + $0x68] sm:$0xff]
      %v712 = vld [vmem:[%s674 + $0x70] sm:$0xff]
      %v713 = vld [vmem:[%s674 + $0x78] sm:$0xff]
      %v714 = vld [vmem:[%s680] sm:$0xff]
      %v715 = vld [vmem:[%s680 + $0x8] sm:$0xff]
      %v716 = vld [vmem:[%s680 + $0x10] sm:$0xff]
      %v717 = vld [vmem:[%s680 + $0x18] sm:$0xff]
      %v718 = vld [vmem:[%s680 + $0x20] sm:$0xff]
      %v719 = vld [vmem:[%s680 + $0x28] sm:$0xff]
      %v720 = vld [vmem:[%s680 + $0x30] sm:$0xff]
      %v721 = vld [vmem:[%s680 + $0x38] sm:$0xff]
      %v722 = vld [vmem:[%s680 + $0x40] sm:$0xff]
      %v723 = vld [vmem:[%s680 + $0x48] sm:$0xff]
      %v724 = vld [vmem:[%s680 + $0x50] sm:$0xff]
      %v725 = vld [vmem:[%s680 + $0x58] sm:$0xff]
      %v726 = vld [vmem:[%s680 + $0x60] sm:$0xff]
      %v727 = vld [vmem:[%s680 + $0x68] sm:$0xff]
      %v728 = vld [vmem:[%s680 + $0x70] sm:$0xff]
      %v729 = vld [vmem:[%s680 + $0x78] sm:$0xff]
      %v730 = vld [vmem:[%s686] sm:$0xff]
      %v731 = vld [vmem:[%s686 + $0x8] sm:$0xff]
      %v732 = vld [vmem:[%s5] sm:$0xff]
      %v733 = vld [vmem:[%s5 + $0x8] sm:$0xff]
      %v734 = vld [vmem:[%s5 + $0x10] sm:$0xff]
      %v735 = vld [vmem:[%s5 + $0x18] sm:$0xff]
      %v736 = vld [vmem:[%s5 + $0x20] sm:$0xff]
      %v737 = vld [vmem:[%s5 + $0x28] sm:$0xff]
      %v738 = vld [vmem:[%s5 + $0x30] sm:$0xff]
      %v739 = vld [vmem:[%s5 + $0x38] sm:$0xff]
      %v740 = vld [vmem:[%s6] sm:$0x1]
      %v742 = vlaneseq
      %v743 = vshrl.u32 %v742, 7
      %v744 = vsub.s32 0, %v743
      %v745 = vrot.slane %v740, %v744
      %vm747 = vcmask 523264
      %v749 = vsel %vm747, %v694, 0
      %v752 = vsel %vm747, %v695, 0
      %754 = vmatprep.subr.mxu0 0.0
      %755 = vmatpush1.msra.mxu0 0.0
      %756 = vmatprep.subr.mxu0 0.0
      %757 = vmatpush1.msra.mxu0 0.0
      %758 = vmatprep.subr.mxu0 0.0
      %759 = vmatpush1.msra.mxu0 0.0
      %760 = vmatprep.subr.mxu0 0.0
      %761 = vmatpush1.msra.mxu0 0.0
      %762 = vmatprep.subr.mxu0 0.0
      %763 = vmatpush1.msra.mxu0 0.0
      %764 = vmatprep.subr.mxu0 0.0
      %765 = vmatpush1.msra.mxu0 0.0
      %766 = vmatprep.subr.mxu0 0.0
      %767 = vmatpush1.msra.mxu0 0.0
      %768 = vmatprep.subr.mxu0 0.0
      %769 = vmatpush1.msra.mxu0 0.0
      %770 = vmatprep.subr.mxu0 0.0
      %771 = vmatpush1.msra.mxu0 %v739
      %772 = vmatprep.subr.mxu0 0.0
      %773 = vmatpush1.msra.mxu0 %v738
      %774 = vmatprep.subr.mxu0 0.0
      %775 = vmatpush1.msra.mxu0 %v737
      %776 = vmatprep.subr.mxu0 0.0
      %777 = vmatpush1.msra.mxu0 %v736
      %778 = vmatprep.subr.mxu0 0.0
      %779 = vmatpush1.msra.mxu0 %v735
      %780 = vmatprep.subr.mxu0 0.0
      %781 = vmatpush1.msra.mxu0 %v734
      %782 = vmatprep.subr.mxu0 0.0
      %783 = vmatpush1.msra.mxu0 %v733
      %784 = vmatprep.subr.mxu0 0.0
      %785 = vmatpush1.msra.mxu0 %v732
      %786 = vmatprep.subr.mxu0 0.0
      %787 = vmatpush2.msra.mxu0 0.0
      %788 = vmatprep.subr.mxu0 0.0
      %789 = vmatpush2.msra.mxu0 0.0
      %790 = vmatprep.subr.mxu0 0.0
      %791 = vmatpush2.msra.mxu0 0.0
      %792 = vmatprep.subr.mxu0 0.0
      %793 = vmatpush2.msra.mxu0 0.0
      %794 = vmatprep.subr.mxu0 0.0
      %795 = vmatpush2.msra.mxu0 0.0
      %796 = vmatprep.subr.mxu0 0.0
      %797 = vmatpush2.msra.mxu0 0.0
      %798 = vmatprep.subr.mxu0 0.0
      %799 = vmatpush2.msra.mxu0 0.0
      %800 = vmatprep.subr.mxu0 0.0
      %801 = vmatpush2.msra.mxu0 0.0
      %802 = vmatprep.subr.mxu0 0.0
      %803 = vmatpush2.msra.mxu0 0.0
      %804 = vmatprep.subr.mxu0 0.0
      %805 = vmatpush2.msra.mxu0 0.0
      %806 = vmatprep.subr.mxu0 0.0
      %807 = vmatpush2.msra.mxu0 0.0
      %808 = vmatprep.subr.mxu0 0.0
      %809 = vmatpush2.msra.mxu0 0.0
      %810 = vmatprep.subr.mxu0 0.0
      %811 = vmatpush2.msra.mxu0 0.0
      %812 = vmatprep.subr.mxu0 0.0
      %813 = vmatpush2.msra.mxu0 0.0
      %814 = vmatprep.subr.mxu0 0.0
      %815 = vmatpush2.msra.mxu0 0.0
      %816 = vmatprep.subr.mxu0 0.0
      %817 = vmatpush2.msra.mxu0 0.0
      %818 = vmatprep.mubr.f32.mxu0 0.0
      %819 = vmatmul.mubr.f32.gmra.mxu0 %v749
      %v820 = vpop.f32.mrf.mxu0
      %v821 = vadd.f32 %v745, %v820
      %v822 = vpop.f32.mrf.mxu0
      %823 = vmatprep.mubr.f32.mxu0 0.0
      %824 = vmatmul.mubr.f32.gmra.mxu0 %v752
      %v825 = vpop.f32.mrf.mxu0
      %v826 = vadd.f32 %v745, %v825
      %v827 = vpop.f32.mrf.mxu0
      %828 = vdwg.mxu0
      %v829 = vld [vmem:[%s10] sm:$0xff]
      %v830 = vld [vmem:[%s10 + $0x8] sm:$0xff]
      %v831 = vld [vmem:[%s10 + $0x10] sm:$0xff]
      %v832 = vld [vmem:[%s10 + $0x18] sm:$0xff]
      %v833 = vld [vmem:[%s10 + $0x20] sm:$0xff]
      %v834 = vld [vmem:[%s10 + $0x28] sm:$0xff]
      %v835 = vld [vmem:[%s10 + $0x30] sm:$0xff]
      %v836 = vld [vmem:[%s10 + $0x38] sm:$0xff]
      %v837 = vld [vmem:[%s11] sm:$0x1]
      %v839 = vlaneseq
      %v840 = vshrl.u32 %v839, 7
      %v841 = vsub.s32 0, %v840
      %v842 = vrot.slane %v837, %v841
      %v845 = vsel %vm747, %v696, 0
      %v848 = vsel %vm747, %v697, 0
      %850 = vmatprep.subr.mxu0 0.0
      %851 = vmatpush1.msra.mxu0 0.0
      %852 = vmatprep.subr.mxu0 0.0
      %853 = vmatpush1.msra.mxu0 0.0
      %854 = vmatprep.subr.mxu0 0.0
      %855 = vmatpush1.msra.mxu0 0.0
      %856 = vmatprep.subr.mxu0 0.0
      %857 = vmatpush1.msra.mxu0 0.0
      %858 = vmatprep.subr.mxu0 0.0
      %859 = vmatpush1.msra.mxu0 0.0
      %860 = vmatprep.subr.mxu0 0.0
      %861 = vmatpush1.msra.mxu0 0.0
      %862 = vmatprep.subr.mxu0 0.0
      %863 = vmatpush1.msra.mxu0 0.0
      %864 = vmatprep.subr.mxu0 0.0
      %865 = vmatpush1.msra.mxu0 0.0
      %866 = vmatprep.subr.mxu0 0.0
      %867 = vmatpush1.msra.mxu0 %v836
      %868 = vmatprep.subr.mxu0 0.0
      %869 = vmatpush1.msra.mxu0 %v835
      %870 = vmatprep.subr.mxu0 0.0
      %871 = vmatpush1.msra.mxu0 %v834
      %872 = vmatprep.subr.mxu0 0.0
      %873 = vmatpush1.msra.mxu0 %v833
      %874 = vmatprep.subr.mxu0 0.0
      %875 = vmatpush1.msra.mxu0 %v832
      %876 = vmatprep.subr.mxu0 0.0
      %877 = vmatpush1.msra.mxu0 %v831
      %878 = vmatprep.subr.mxu0 0.0
      %879 = vmatpush1.msra.mxu0 %v830
      %880 = vmatprep.subr.mxu0 0.0
      %881 = vmatpush1.msra.mxu0 %v829
      %882 = vmatprep.subr.mxu0 0.0
      %883 = vmatpush2.msra.mxu0 0.0
      %884 = vmatprep.subr.mxu0 0.0
      %885 = vmatpush2.msra.mxu0 0.0
      %886 = vmatprep.subr.mxu0 0.0
      %887 = vmatpush2.msra.mxu0 0.0
      %888 = vmatprep.subr.mxu0 0.0
      %889 = vmatpush2.msra.mxu0 0.0
      %890 = vmatprep.subr.mxu0 0.0
      %891 = vmatpush2.msra.mxu0 0.0
      %892 = vmatprep.subr.mxu0 0.0
      %893 = vmatpush2.msra.mxu0 0.0
      %894 = vmatprep.subr.mxu0 0.0
      %895 = vmatpush2.msra.mxu0 0.0
      %896 = vmatprep.subr.mxu0 0.0
      %897 = vmatpush2.msra.mxu0 0.0
      %898 = vmatprep.subr.mxu0 0.0
      %899 = vmatpush2.msra.mxu0 0.0
      %900 = vmatprep.subr.mxu0 0.0
      %901 = vmatpush2.msra.mxu0 0.0
      %902 = vmatprep.subr.mxu0 0.0
      %903 = vmatpush2.msra.mxu0 0.0
      %904 = vmatprep.subr.mxu0 0.0
      %905 = vmatpush2.msra.mxu0 0.0
      %906 = vmatprep.subr.mxu0 0.0
      %907 = vmatpush2.msra.mxu0 0.0
      %908 = vmatprep.subr.mxu0 0.0
      %909 = vmatpush2.msra.mxu0 0.0
      %910 = vmatprep.subr.mxu0 0.0
      %911 = vmatpush2.msra.mxu0 0.0
      %912 = vmatprep.subr.mxu0 0.0
      %913 = vmatpush2.msra.mxu0 0.0
      %914 = vmatprep.mubr.f32.mxu0 0.0
      %915 = vmatmul.mubr.f32.gmra.mxu0 %v845
      %v916 = vpop.f32.mrf.mxu0
      %v917 = vadd.f32 %v842, %v916
      %v918 = vpop.f32.mrf.mxu0
      %919 = vmatprep.mubr.f32.mxu0 0.0
      %920 = vmatmul.mubr.f32.gmra.mxu0 %v848
      %v921 = vpop.f32.mrf.mxu0
      %v922 = vadd.f32 %v842, %v921
      %v923 = vpop.f32.mrf.mxu0
      %924 = vdwg.mxu0
      %v925 = vld [vmem:[%s8] sm:$0xff]
      %v926 = vld [vmem:[%s8 + $0x8] sm:$0xff]
      %v927 = vld [vmem:[%s8 + $0x10] sm:$0xff]
      %v928 = vld [vmem:[%s8 + $0x18] sm:$0xff]
      %vm929 = vcmask 261120
      %v931 = vsel %vm929, %v698, 0
      %v934 = vsel %vm929, %v699, 0
      %v937 = vsel %vm929, %v700, 0
      %v940 = vsel %vm929, %v701, 0
      %v943 = vsel %vm929, %v702, 0
      %v946 = vsel %vm929, %v703, 0
      %v949 = vsel %vm929, %v704, 0
      %v952 = vsel %vm929, %v705, 0
      %v955 = vsel %vm929, %v706, 0
      %v958 = vsel %vm929, %v707, 0
      %v961 = vsel %vm929, %v708, 0
      %v964 = vsel %vm929, %v709, 0
      %v967 = vsel %vm929, %v710, 0
      %v970 = vsel %vm929, %v711, 0
      %v973 = vsel %vm929, %v712, 0
      %v976 = vsel %vm929, %v713, 0
      %978 = vmatprep.subr.mxu0 0.0
      %979 = vmatpush1.msra.mxu0 0.0
      %980 = vmatprep.subr.mxu0 0.0
      %981 = vmatpush1.msra.mxu0 0.0
      %982 = vmatprep.subr.mxu0 0.0
      %983 = vmatpush1.msra.mxu0 0.0
      %984 = vmatprep.subr.mxu0 0.0
      %985 = vmatpush1.msra.mxu0 0.0
      %986 = vmatprep.subr.mxu0 0.0
      %987 = vmatpush1.msra.mxu0 0.0
      %988 = vmatprep.subr.mxu0 0.0
      %989 = vmatpush1.msra.mxu0 0.0
      %990 = vmatprep.subr.mxu0 0.0
      %991 = vmatpush1.msra.mxu0 0.0
      %992 = vmatprep.subr.mxu0 0.0
      %993 = vmatpush1.msra.mxu0 0.0
      %994 = vmatprep.subr.mxu0 0.0
      %995 = vmatpush1.msra.mxu0 0.0
      %996 = vmatprep.subr.mxu0 0.0
      %997 = vmatpush1.msra.mxu0 0.0
      %998 = vmatprep.subr.mxu0 0.0
      %999 = vmatpush1.msra.mxu0 0.0
      %1000 = vmatprep.subr.mxu0 0.0
      %1001 = vmatpush1.msra.mxu0 0.0
      %1002 = vmatprep.subr.mxu0 0.0
      %1003 = vmatpush1.msra.mxu0 %v928
      %1004 = vmatprep.subr.mxu0 0.0
      %1005 = vmatpush1.msra.mxu0 %v927
      %1006 = vmatprep.subr.mxu0 0.0
      %1007 = vmatpush1.msra.mxu0 %v926
      %1008 = vmatprep.subr.mxu0 0.0
      %1009 = vmatpush1.msra.mxu0 %v925
      %1010 = vmatprep.subr.mxu0 0.0
      %1011 = vmatpush2.msra.mxu0 0.0
      %1012 = vmatprep.subr.mxu0 0.0
      %1013 = vmatpush2.msra.mxu0 0.0
      %1014 = vmatprep.subr.mxu0 0.0
      %1015 = vmatpush2.msra.mxu0 0.0
      %1016 = vmatprep.subr.mxu0 0.0
      %1017 = vmatpush2.msra.mxu0 0.0
      %1018 = vmatprep.subr.mxu0 0.0
      %1019 = vmatpush2.msra.mxu0 0.0
      %1020 = vmatprep.subr.mxu0 0.0
      %1021 = vmatpush2.msra.mxu0 0.0
      %1022 = vmatprep.subr.mxu0 0.0
      %1023 = vmatpush2.msra.mxu0 0.0
      %1024 = vmatprep.subr.mxu0 0.0
      %1025 = vmatpush2.msra.mxu0 0.0
      %1026 = vmatprep.subr.mxu0 0.0
      %1027 = vmatpush2.msra.mxu0 0.0
      %1028 = vmatprep.subr.mxu0 0.0
      %1029 = vmatpush2.msra.mxu0 0.0
      %1030 = vmatprep.subr.mxu0 0.0
      %1031 = vmatpush2.msra.mxu0 0.0
      %1032 = vmatprep.subr.mxu0 0.0
      %1033 = vmatpush2.msra.mxu0 0.0
      %1034 = vmatprep.subr.mxu0 0.0
      %1035 = vmatpush2.msra.mxu0 0.0
      %1036 = vmatprep.subr.mxu0 0.0
      %1037 = vmatpush2.msra.mxu0 0.0
      %1038 = vmatprep.subr.mxu0 0.0
      %1039 = vmatpush2.msra.mxu0 0.0
      %1040 = vmatprep.subr.mxu0 0.0
      %1041 = vmatpush2.msra.mxu0 0.0
      %1042 = vmatprep.mubr.f32.mxu0 0.0
      %1043 = vmatmul.mubr.f32.gmra.mxu0 %v931
      %v1044 = vpop.f32.mrf.mxu0
      %v1045 = vadd.f32 0.0, %v1044
      %v1046 = vpop.f32.mrf.mxu0
      %1047 = vmatprep.mubr.f32.mxu0 0.0
      %1048 = vmatmul.mubr.f32.gmra.mxu0 %v934
      %v1049 = vpop.f32.mrf.mxu0
      %v1050 = vadd.f32 0.0, %v1049
      %v1051 = vpop.f32.mrf.mxu0
      %1052 = vmatprep.mubr.f32.mxu0 0.0
      %1053 = vmatmul.mubr.f32.gmra.mxu0 %v937
      %v1054 = vpop.f32.mrf.mxu0
      %v1055 = vadd.f32 0.0, %v1054
      %v1056 = vpop.f32.mrf.mxu0
      %1057 = vmatprep.mubr.f32.mxu0 0.0
      %1058 = vmatmul.mubr.f32.gmra.mxu0 %v940
      %v1059 = vpop.f32.mrf.mxu0
      %v1060 = vadd.f32 0.0, %v1059
      %v1061 = vpop.f32.mrf.mxu0
      %1062 = vmatprep.mubr.f32.mxu0 0.0
      %1063 = vmatmul.mubr.f32.gmra.mxu0 %v943
      %v1064 = vpop.f32.mrf.mxu0
      %v1065 = vadd.f32 0.0, %v1064
      %v1066 = vpop.f32.mrf.mxu0
      %1067 = vmatprep.mubr.f32.mxu0 0.0
      %1068 = vmatmul.mubr.f32.gmra.mxu0 %v946
      %v1069 = vpop.f32.mrf.mxu0
      %v1070 = vadd.f32 0.0, %v1069
      %v1071 = vpop.f32.mrf.mxu0
      %1072 = vmatprep.mubr.f32.mxu0 0.0
      %1073 = vmatmul.mubr.f32.gmra.mxu0 %v949
      %v1074 = vpop.f32.mrf.mxu0
      %v1075 = vadd.f32 0.0, %v1074
      %v1076 = vpop.f32.mrf.mxu0
      %1077 = vmatprep.mubr.f32.mxu0 0.0
      %1078 = vmatmul.mubr.f32.gmra.mxu0 %v952
      %v1079 = vpop.f32.mrf.mxu0
      %v1080 = vadd.f32 0.0, %v1079
      %v1081 = vpop.f32.mrf.mxu0
      %1082 = vmatprep.mubr.f32.mxu0 0.0
      %1083 = vmatmul.mubr.f32.gmra.mxu0 %v955
      %v1084 = vpop.f32.mrf.mxu0
      %v1085 = vadd.f32 0.0, %v1084
      %v1086 = vpop.f32.mrf.mxu0
      %1087 = vmatprep.mubr.f32.mxu0 0.0
      %1088 = vmatmul.mubr.f32.gmra.mxu0 %v958
      %v1089 = vpop.f32.mrf.mxu0
      %v1090 = vadd.f32 0.0, %v1089
      %v1091 = vpop.f32.mrf.mxu0
      %1092 = vmatprep.mubr.f32.mxu0 0.0
      %1093 = vmatmul.mubr.f32.gmra.mxu0 %v961
      %v1094 = vpop.f32.mrf.mxu0
      %v1095 = vadd.f32 0.0, %v1094
      %v1096 = vpop.f32.mrf.mxu0
      %1097 = vmatprep.mubr.f32.mxu0 0.0
      %1098 = vmatmul.mubr.f32.gmra.mxu0 %v964
      %v1099 = vpop.f32.mrf.mxu0
      %v1100 = vadd.f32 0.0, %v1099
      %v1101 = vpop.f32.mrf.mxu0
      %1102 = vmatprep.mubr.f32.mxu0 0.0
      %1103 = vmatmul.mubr.f32.gmra.mxu0 %v967
      %v1104 = vpop.f32.mrf.mxu0
      %v1105 = vadd.f32 0.0, %v1104
      %v1106 = vpop.f32.mrf.mxu0
      %1107 = vmatprep.mubr.f32.mxu0 0.0
      %1108 = vmatmul.mubr.f32.gmra.mxu0 %v970
      %v1109 = vpop.f32.mrf.mxu0
      %v1110 = vadd.f32 0.0, %v1109
      %v1111 = vpop.f32.mrf.mxu0
      %1112 = vmatprep.mubr.f32.mxu0 0.0
      %1113 = vmatmul.mubr.f32.gmra.mxu0 %v973
      %v1114 = vpop.f32.mrf.mxu0
      %v1115 = vadd.f32 0.0, %v1114
      %v1116 = vpop.f32.mrf.mxu0
      %1117 = vmatprep.mubr.f32.mxu0 0.0
      %1118 = vmatmul.mubr.f32.gmra.mxu0 %v976
      %v1119 = vpop.f32.mrf.mxu0
      %v1120 = vadd.f32 0.0, %v1119
      %v1121 = vpop.f32.mrf.mxu0
      %1122 = vdwg.mxu0
      %v1123 = vmul.f32 %v1045, %v1045
      %v1124 = vmul.f32 %v1050, %v1050
      %v1125 = vmul.f32 %v1055, %v1055
      %v1126 = vmul.f32 %v1060, %v1060
      %v1127 = vmul.f32 %v1065, %v1065
      %v1128 = vmul.f32 %v1070, %v1070
      %v1129 = vmul.f32 %v1075, %v1075
      %v1130 = vmul.f32 %v1080, %v1080
      %v1131 = vmul.f32 %v1085, %v1085
      %v1132 = vmul.f32 %v1090, %v1090
      %v1133 = vmul.f32 %v1095, %v1095
      %v1134 = vmul.f32 %v1100, %v1100
      %v1135 = vmul.f32 %v1105, %v1105
      %v1136 = vmul.f32 %v1110, %v1110
      %v1137 = vmul.f32 %v1115, %v1115
      %v1138 = vmul.f32 %v1120, %v1120
      %v1139 = vsel %vm929, %v1123, 0.0
      %1140 = vadd.xlane.f32.xlu0 %v1139
      %v1141 = vpop.xlane.xlu0 %1140
      %v1142 = vsel %vm929, %v1124, 0.0
      %1143 = vadd.xlane.f32.xlu0 %v1142
      %v1144 = vpop.xlane.xlu0 %1143
      %v1145 = vsel %vm929, %v1125, 0.0
      %1146 = vadd.xlane.f32.xlu0 %v1145
      %v1147 = vpop.xlane.xlu0 %1146
      %v1148 = vsel %vm929, %v1126, 0.0
      %1149 = vadd.xlane.f32.xlu0 %v1148
      %v1150 = vpop.xlane.xlu0 %1149
      %v1151 = vsel %vm929, %v1127, 0.0
      %1152 = vadd.xlane.f32.xlu0 %v1151
      %v1153 = vpop.xlane.xlu0 %1152
      %v1154 = vsel %vm929, %v1128, 0.0
      %1155 = vadd.xlane.f32.xlu0 %v1154
      %v1156 = vpop.xlane.xlu0 %1155
      %v1157 = vsel %vm929, %v1129, 0.0
      %1158 = vadd.xlane.f32.xlu0 %v1157
      %v1159 = vpop.xlane.xlu0 %1158
      %v1160 = vsel %vm929, %v1130, 0.0
      %1161 = vadd.xlane.f32.xlu0 %v1160
      %v1162 = vpop.xlane.xlu0 %1161
      %v1163 = vsel %vm929, %v1131, 0.0
      %1164 = vadd.xlane.f32.xlu0 %v1163
      %v1165 = vpop.xlane.xlu0 %1164
      %v1166 = vsel %vm929, %v1132, 0.0
      %1167 = vadd.xlane.f32.xlu0 %v1166
      %v1168 = vpop.xlane.xlu0 %1167
      %v1169 = vsel %vm929, %v1133, 0.0
      %1170 = vadd.xlane.f32.xlu0 %v1169
      %v1171 = vpop.xlane.xlu0 %1170
      %v1172 = vsel %vm929, %v1134, 0.0
      %1173 = vadd.xlane.f32.xlu0 %v1172
      %v1174 = vpop.xlane.xlu0 %1173
      %v1175 = vsel %vm929, %v1135, 0.0
      %1176 = vadd.xlane.f32.xlu0 %v1175
      %v1177 = vpop.xlane.xlu0 %1176
      %v1178 = vsel %vm929, %v1136, 0.0
      %1179 = vadd.xlane.f32.xlu0 %v1178
      %v1180 = vpop.xlane.xlu0 %1179
      %v1181 = vsel %vm929, %v1137, 0.0
      %1182 = vadd.xlane.f32.xlu0 %v1181
      %v1183 = vpop.xlane.xlu0 %1182
      %v1184 = vsel %vm929, %v1138, 0.0
      %1185 = vadd.xlane.f32.xlu0 %v1184
      %v1186 = vpop.xlane.xlu0 %1185
      %v1187 = vld [vmem:[%s12] sm:$0xff]
      %v1188 = vld [vmem:[%s12 + $0x8] sm:$0xff]
      %v1189 = vld [vmem:[%s12 + $0x10] sm:$0xff]
      %v1190 = vld [vmem:[%s12 + $0x18] sm:$0xff]
      %v1191 = vld [vmem:[%s14] sm:$0x1]
      %v1193 = vlaneseq
      %v1194 = vshrl.u32 %v1193, 7
      %v1195 = vsub.s32 0, %v1194
      %v1196 = vrot.slane %v1191, %v1195
      %v1199 = vsel %vm929, %v917, 0
      %v1202 = vsel %vm929, %v922, 0
      %1204 = vmatprep.subr.mxu0 0.0
      %1205 = vmatpush1.msra.mxu0 0.0
      %1206 = vmatprep.subr.mxu0 0.0
      %1207 = vmatpush1.msra.mxu0 0.0
      %1208 = vmatprep.subr.mxu0 0.0
      %1209 = vmatpush1.msra.mxu0 0.0
      %1210 = vmatprep.subr.mxu0 0.0
      %1211 = vmatpush1.msra.mxu0 0.0
      %1212 = vmatprep.subr.mxu0 0.0
      %1213 = vmatpush1.msra.mxu0 0.0
      %1214 = vmatprep.subr.mxu0 0.0
      %1215 = vmatpush1.msra.mxu0 0.0
      %1216 = vmatprep.subr.mxu0 0.0
      %1217 = vmatpush1.msra.mxu0 0.0
      %1218 = vmatprep.subr.mxu0 0.0
      %1219 = vmatpush1.msra.mxu0 0.0
      %1220 = vmatprep.subr.mxu0 0.0
      %1221 = vmatpush1.msra.mxu0 0.0
      %1222 = vmatprep.subr.mxu0 0.0
      %1223 = vmatpush1.msra.mxu0 0.0
      %1224 = vmatprep.subr.mxu0 0.0
      %1225 = vmatpush1.msra.mxu0 0.0
      %1226 = vmatprep.subr.mxu0 0.0
      %1227 = vmatpush1.msra.mxu0 0.0
      %1228 = vmatprep.subr.mxu0 0.0
      %1229 = vmatpush1.msra.mxu0 %v1190
      %1230 = vmatprep.subr.mxu0 0.0
      %1231 = vmatpush1.msra.mxu0 %v1189
      %1232 = vmatprep.subr.mxu0 0.0
      %1233 = vmatpush1.msra.mxu0 %v1188
      %1234 = vmatprep.subr.mxu0 0.0
      %1235 = vmatpush1.msra.mxu0 %v1187
      %1236 = vmatprep.subr.mxu0 0.0
      %1237 = vmatpush2.msra.mxu0 0.0
      %1238 = vmatprep.subr.mxu0 0.0
      %1239 = vmatpush2.msra.mxu0 0.0
      %1240 = vmatprep.subr.mxu0 0.0
      %1241 = vmatpush2.msra.mxu0 0.0
      %1242 = vmatprep.subr.mxu0 0.0
      %1243 = vmatpush2.msra.mxu0 0.0
      %1244 = vmatprep.subr.mxu0 0.0
      %1245 = vmatpush2.msra.mxu0 0.0
      %1246 = vmatprep.subr.mxu0 0.0
      %1247 = vmatpush2.msra.mxu0 0.0
      %1248 = vmatprep.subr.mxu0 0.0
      %1249 = vmatpush2.msra.mxu0 0.0
      %1250 = vmatprep.subr.mxu0 0.0
      %1251 = vmatpush2.msra.mxu0 0.0
      %1252 = vmatprep.subr.mxu0 0.0
      %1253 = vmatpush2.msra.mxu0 0.0
      %1254 = vmatprep.subr.mxu0 0.0
      %1255 = vmatpush2.msra.mxu0 0.0
      %1256 = vmatprep.subr.mxu0 0.0
      %1257 = vmatpush2.msra.mxu0 0.0
      %1258 = vmatprep.subr.mxu0 0.0
      %1259 = vmatpush2.msra.mxu0 0.0
      %1260 = vmatprep.subr.mxu0 0.0
      %1261 = vmatpush2.msra.mxu0 0.0
      %1262 = vmatprep.subr.mxu0 0.0
      %1263 = vmatpush2.msra.mxu0 0.0
      %1264 = vmatprep.subr.mxu0 0.0
      %1265 = vmatpush2.msra.mxu0 0.0
      %1266 = vmatprep.subr.mxu0 0.0
      %1267 = vmatpush2.msra.mxu0 0.0
      %1268 = vmatprep.mubr.f32.mxu0 0.0
      %1269 = vmatmul.mubr.f32.gmra.mxu0 %v1199
      %v1270 = vpop.f32.mrf.mxu0
      %v1271 = vadd.f32 %v1196, %v1270
      %v1272 = vpop.f32.mrf.mxu0
      %1273 = vmatprep.mubr.f32.mxu0 0.0
      %1274 = vmatmul.mubr.f32.gmra.mxu0 %v1202
      %v1275 = vpop.f32.mrf.mxu0
      %v1276 = vadd.f32 %v1196, %v1275
      %v1277 = vpop.f32.mrf.mxu0
      %1278 = vdwg.mxu0
      %v1279 = vld [vmem:[%s13] sm:$0xff]
      %v1280 = vld [vmem:[%s13 + $0x8] sm:$0xff]
      %v1281 = vld [vmem:[%s13 + $0x10] sm:$0xff]
      %v1282 = vld [vmem:[%s13 + $0x18] sm:$0xff]
      %v1284 = vsel %vm929, %v714, 0
      %v1287 = vsel %vm929, %v715, 0
      %v1290 = vsel %vm929, %v716, 0
      %v1293 = vsel %vm929, %v717, 0
      %v1296 = vsel %vm929, %v718, 0
      %v1299 = vsel %vm929, %v719, 0
      %v1302 = vsel %vm929, %v720, 0
      %v1305 = vsel %vm929, %v721, 0
      %v1308 = vsel %vm929, %v722, 0
      %v1311 = vsel %vm929, %v723, 0
      %v1314 = vsel %vm929, %v724, 0
      %v1317 = vsel %vm929, %v725, 0
      %v1320 = vsel %vm929, %v726, 0
      %v1323 = vsel %vm929, %v727, 0
      %v1326 = vsel %vm929, %v728, 0
      %v1329 = vsel %vm929, %v729, 0
      %1331 = vmatprep.subr.mxu0 0.0
      %1332 = vmatpush1.msra.mxu0 0.0
      %1333 = vmatprep.subr.mxu0 0.0
      %1334 = vmatpush1.msra.mxu0 0.0
      %1335 = vmatprep.subr.mxu0 0.0
      %1336 = vmatpush1.msra.mxu0 0.0
      %1337 = vmatprep.subr.mxu0 0.0
      %1338 = vmatpush1.msra.mxu0 0.0
      %1339 = vmatprep.subr.mxu0 0.0
      %1340 = vmatpush1.msra.mxu0 0.0
      %1341 = vmatprep.subr.mxu0 0.0
      %1342 = vmatpush1.msra.mxu0 0.0
      %1343 = vmatprep.subr.mxu0 0.0
      %1344 = vmatpush1.msra.mxu0 0.0
      %1345 = vmatprep.subr.mxu0 0.0
      %1346 = vmatpush1.msra.mxu0 0.0
      %1347 = vmatprep.subr.mxu0 0.0
      %1348 = vmatpush1.msra.mxu0 0.0
      %1349 = vmatprep.subr.mxu0 0.0
      %1350 = vmatpush1.msra.mxu0 0.0
      %1351 = vmatprep.subr.mxu0 0.0
      %1352 = vmatpush1.msra.mxu0 0.0
      %1353 = vmatprep.subr.mxu0 0.0
      %1354 = vmatpush1.msra.mxu0 0.0
      %1355 = vmatprep.subr.mxu0 0.0
      %1356 = vmatpush1.msra.mxu0 %v1282
      %1357 = vmatprep.subr.mxu0 0.0
      %1358 = vmatpush1.msra.mxu0 %v1281
      %1359 = vmatprep.subr.mxu0 0.0
      %1360 = vmatpush1.msra.mxu0 %v1280
      %1361 = vmatprep.subr.mxu0 0.0
      %1362 = vmatpush1.msra.mxu0 %v1279
      %1363 = vmatprep.subr.mxu0 0.0
      %1364 = vmatpush2.msra.mxu0 0.0
      %1365 = vmatprep.subr.mxu0 0.0
      %1366 = vmatpush2.msra.mxu0 0.0
      %1367 = vmatprep.subr.mxu0 0.0
      %1368 = vmatpush2.msra.mxu0 0.0
      %1369 = vmatprep.subr.mxu0 0.0
      %1370 = vmatpush2.msra.mxu0 0.0
      %1371 = vmatprep.subr.mxu0 0.0
      %1372 = vmatpush2.msra.mxu0 0.0
      %1373 = vmatprep.subr.mxu0 0.0
      %1374 = vmatpush2.msra.mxu0 0.0
      %1375 = vmatprep.subr.mxu0 0.0
      %1376 = vmatpush2.msra.mxu0 0.0
      %1377 = vmatprep.subr.mxu0 0.0
      %1378 = vmatpush2.msra.mxu0 0.0
      %1379 = vmatprep.subr.mxu0 0.0
      %1380 = vmatpush2.msra.mxu0 0.0
      %1381 = vmatprep.subr.mxu0 0.0
      %1382 = vmatpush2.msra.mxu0 0.0
      %1383 = vmatprep.subr.mxu0 0.0
      %1384 = vmatpush2.msra.mxu0 0.0
      %1385 = vmatprep.subr.mxu0 0.0
      %1386 = vmatpush2.msra.mxu0 0.0
      %1387 = vmatprep.subr.mxu0 0.0
      %1388 = vmatpush2.msra.mxu0 0.0
      %1389 = vmatprep.subr.mxu0 0.0
      %1390 = vmatpush2.msra.mxu0 0.0
      %1391 = vmatprep.subr.mxu0 0.0
      %1392 = vmatpush2.msra.mxu0 0.0
      %1393 = vmatprep.subr.mxu0 0.0
      %1394 = vmatpush2.msra.mxu0 0.0
      %1395 = vmatprep.mubr.f32.mxu0 0.0
      %1396 = vmatmul.mubr.f32.gmra.mxu0 %v1284
      %v1397 = vpop.f32.mrf.mxu0
      %v1398 = vadd.f32 0.0, %v1397
      %v1399 = vpop.f32.mrf.mxu0
      %1400 = vmatprep.mubr.f32.mxu0 0.0
      %1401 = vmatmul.mubr.f32.gmra.mxu0 %v1287
      %v1402 = vpop.f32.mrf.mxu0
      %v1403 = vadd.f32 0.0, %v1402
      %v1404 = vpop.f32.mrf.mxu0
      %1405 = vmatprep.mubr.f32.mxu0 0.0
      %1406 = vmatmul.mubr.f32.gmra.mxu0 %v1290
      %v1407 = vpop.f32.mrf.mxu0
      %v1408 = vadd.f32 0.0, %v1407
      %v1409 = vpop.f32.mrf.mxu0
      %1410 = vmatprep.mubr.f32.mxu0 0.0
      %1411 = vmatmul.mubr.f32.gmra.mxu0 %v1293
      %v1412 = vpop.f32.mrf.mxu0
      %v1413 = vadd.f32 0.0, %v1412
      %v1414 = vpop.f32.mrf.mxu0
      %1415 = vmatprep.mubr.f32.mxu0 0.0
      %1416 = vmatmul.mubr.f32.gmra.mxu0 %v1296
      %v1417 = vpop.f32.mrf.mxu0
      %v1418 = vadd.f32 0.0, %v1417
      %v1419 = vpop.f32.mrf.mxu0
      %1420 = vmatprep.mubr.f32.mxu0 0.0
      %1421 = vmatmul.mubr.f32.gmra.mxu0 %v1299
      %v1422 = vpop.f32.mrf.mxu0
      %v1423 = vadd.f32 0.0, %v1422
      %v1424 = vpop.f32.mrf.mxu0
      %1425 = vmatprep.mubr.f32.mxu0 0.0
      %1426 = vmatmul.mubr.f32.gmra.mxu0 %v1302
      %v1427 = vpop.f32.mrf.mxu0
      %v1428 = vadd.f32 0.0, %v1427
      %v1429 = vpop.f32.mrf.mxu0
      %1430 = vmatprep.mubr.f32.mxu0 0.0
      %1431 = vmatmul.mubr.f32.gmra.mxu0 %v1305
      %v1432 = vpop.f32.mrf.mxu0
      %v1433 = vadd.f32 0.0, %v1432
      %v1434 = vpop.f32.mrf.mxu0
      %1435 = vmatprep.mubr.f32.mxu0 0.0
      %1436 = vmatmul.mubr.f32.gmra.mxu0 %v1308
      %v1437 = vpop.f32.mrf.mxu0
      %v1438 = vadd.f32 0.0, %v1437
      %v1439 = vpop.f32.mrf.mxu0
      %1440 = vmatprep.mubr.f32.mxu0 0.0
      %1441 = vmatmul.mubr.f32.gmra.mxu0 %v1311
      %v1442 = vpop.f32.mrf.mxu0
      %v1443 = vadd.f32 0.0, %v1442
      %v1444 = vpop.f32.mrf.mxu0
      %1445 = vmatprep.mubr.f32.mxu0 0.0
      %1446 = vmatmul.mubr.f32.gmra.mxu0 %v1314
      %v1447 = vpop.f32.mrf.mxu0
      %v1448 = vadd.f32 0.0, %v1447
      %v1449 = vpop.f32.mrf.mxu0
      %1450 = vmatprep.mubr.f32.mxu0 0.0
      %1451 = vmatmul.mubr.f32.gmra.mxu0 %v1317
      %v1452 = vpop.f32.mrf.mxu0
      %v1453 = vadd.f32 0.0, %v1452
      %v1454 = vpop.f32.mrf.mxu0
      %1455 = vmatprep.mubr.f32.mxu0 0.0
      %1456 = vmatmul.mubr.f32.gmra.mxu0 %v1320
      %v1457 = vpop.f32.mrf.mxu0
      %v1458 = vadd.f32 0.0, %v1457
      %v1459 = vpop.f32.mrf.mxu0
      %1460 = vmatprep.mubr.f32.mxu0 0.0
      %1461 = vmatmul.mubr.f32.gmra.mxu0 %v1323
      %v1462 = vpop.f32.mrf.mxu0
      %v1463 = vadd.f32 0.0, %v1462
      %v1464 = vpop.f32.mrf.mxu0
      %1465 = vmatprep.mubr.f32.mxu0 0.0
      %1466 = vmatmul.mubr.f32.gmra.mxu0 %v1326
      %v1467 = vpop.f32.mrf.mxu0
      %v1468 = vadd.f32 0.0, %v1467
      %v1469 = vpop.f32.mrf.mxu0
      %1470 = vmatprep.mubr.f32.mxu0 0.0
      %1471 = vmatmul.mubr.f32.gmra.mxu0 %v1329
      %v1472 = vpop.f32.mrf.mxu0
      %v1473 = vadd.f32 0.0, %v1472
      %v1474 = vpop.f32.mrf.mxu0
      %1475 = vdwg.mxu0
      %v1478 = vcombine.high %v1271, %v1271
      %v1480 = vunpack.c.l.s4 1966171168
      %v1481 = vunpack.c.0.s8 %v1480
      %v1482 = vlaneseq
      %v1483 = vshrl.u32 %v1482, 7
      %v1484 = vsub.s32 %v1481, %v1483
      %v1485 = vrot.slane %v1271, %v1484
      %v1487 = vunpack.c.l.s4 1966171168
      %v1488 = vunpack.c.0.s8 %v1487
      %v1489 = vlaneseq
      %v1490 = vshrl.u32 %v1489, 7
      %v1491 = vsub.s32 %v1488, %v1490
      %v1492 = vrot.slane %v1478, %v1491
      %v1493 = vcombine.high %v1485, %v1485
      %v1494 = vcombine.high %v1492, %v1492
      %v1496 = vunpack.c.l.s4 1966171168
      %v1497 = vunpack.c.0.s8 %v1496
      %v1498 = vlaneseq
      %v1499 = vshrl.u32 %v1498, 7
      %v1500 = vsub.s32 %v1497, %v1499
      %v1501 = vrot.slane %v1485, %v1500
      %v1503 = vunpack.c.l.s4 1966171168
      %v1504 = vunpack.c.0.s8 %v1503
      %v1505 = vlaneseq
      %v1506 = vshrl.u32 %v1505, 7
      %v1507 = vsub.s32 %v1504, %v1506
      %v1508 = vrot.slane %v1492, %v1507
      %v1510 = vunpack.c.l.s4 1966171168
      %v1511 = vunpack.c.0.s8 %v1510
      %v1512 = vlaneseq
      %v1513 = vshrl.u32 %v1512, 7
      %v1514 = vsub.s32 %v1511, %v1513
      %v1515 = vrot.slane %v1493, %v1514
      %v1517 = vunpack.c.l.s4 1966171168
      %v1518 = vunpack.c.0.s8 %v1517
      %v1519 = vlaneseq
      %v1520 = vshrl.u32 %v1519, 7
      %v1521 = vsub.s32 %v1518, %v1520
      %v1522 = vrot.slane %v1494, %v1521
      %v1523 = vcombine.high %v1501, %v1501
      %v1524 = vcombine.high %v1508, %v1508
      %v1525 = vcombine.high %v1515, %v1515
      %v1526 = vcombine.high %v1522, %v1522
      %v1527 = vcombine.high %v1276, %v1276
      %v1529 = vunpack.c.l.s4 1966171168
      %v1530 = vunpack.c.0.s8 %v1529
      %v1531 = vlaneseq
      %v1532 = vshrl.u32 %v1531, 7
      %v1533 = vsub.s32 %v1530, %v1532
      %v1534 = vrot.slane %v1276, %v1533
      %v1536 = vunpack.c.l.s4 1966171168
      %v1537 = vunpack.c.0.s8 %v1536
      %v1538 = vlaneseq
      %v1539 = vshrl.u32 %v1538, 7
      %v1540 = vsub.s32 %v1537, %v1539
      %v1541 = vrot.slane %v1527, %v1540
      %v1542 = vcombine.high %v1534, %v1534
      %v1543 = vcombine.high %v1541, %v1541
      %v1545 = vunpack.c.l.s4 1966171168
      %v1546 = vunpack.c.0.s8 %v1545
      %v1547 = vlaneseq
      %v1548 = vshrl.u32 %v1547, 7
      %v1549 = vsub.s32 %v1546, %v1548
      %v1550 = vrot.slane %v1534, %v1549
      %v1552 = vunpack.c.l.s4 1966171168
      %v1553 = vunpack.c.0.s8 %v1552
      %v1554 = vlaneseq
      %v1555 = vshrl.u32 %v1554, 7
      %v1556 = vsub.s32 %v1553, %v1555
      %v1557 = vrot.slane %v1541, %v1556
      %v1559 = vunpack.c.l.s4 1966171168
      %v1560 = vunpack.c.0.s8 %v1559
      %v1561 = vlaneseq
      %v1562 = vshrl.u32 %v1561, 7
      %v1563 = vsub.s32 %v1560, %v1562
      %v1564 = vrot.slane %v1542, %v1563
      %v1566 = vunpack.c.l.s4 1966171168
      %v1567 = vunpack.c.0.s8 %v1566
      %v1568 = vlaneseq
      %v1569 = vshrl.u32 %v1568, 7
      %v1570 = vsub.s32 %v1567, %v1569
      %v1571 = vrot.slane %v1543, %v1570
      %v1572 = vcombine.high %v1550, %v1550
      %v1573 = vcombine.high %v1557, %v1557
      %v1574 = vcombine.high %v1564, %v1564
      %v1575 = vcombine.high %v1571, %v1571
      %v1576 = vlaneseq
      %v1577 = vshrl.u32 %v1576, 7
      %v1578 = vsub.s32 0, %v1577
      %v1579 = vrot.slane %v1501, %v1578
      %v1580 = vlaneseq
      %v1581 = vshrl.u32 %v1580, 7
      %v1582 = vsub.s32 0, %v1581
      %v1583 = vrot.slane %v1515, %v1582
      %v1584 = vlaneseq
      %v1585 = vshrl.u32 %v1584, 7
      %v1586 = vsub.s32 0, %v1585
      %v1587 = vrot.slane %v1523, %v1586
      %v1588 = vlaneseq
      %v1589 = vshrl.u32 %v1588, 7
      %v1590 = vsub.s32 0, %v1589
      %v1591 = vrot.slane %v1525, %v1590
      %v1592 = vlaneseq
      %v1593 = vshrl.u32 %v1592, 7
      %v1594 = vsub.s32 0, %v1593
      %v1595 = vrot.slane %v1508, %v1594
      %v1596 = vlaneseq
      %v1597 = vshrl.u32 %v1596, 7
      %v1598 = vsub.s32 0, %v1597
      %v1599 = vrot.slane %v1522, %v1598
      %v1600 = vlaneseq
      %v1601 = vshrl.u32 %v1600, 7
      %v1602 = vsub.s32 0, %v1601
      %v1603 = vrot.slane %v1524, %v1602
      %v1604 = vlaneseq
      %v1605 = vshrl.u32 %v1604, 7
      %v1606 = vsub.s32 0, %v1605
      %v1607 = vrot.slane %v1526, %v1606
      %v1608 = vlaneseq
      %v1609 = vshrl.u32 %v1608, 7
      %v1610 = vsub.s32 0, %v1609
      %v1611 = vrot.slane %v1550, %v1610
      %v1612 = vlaneseq
      %v1613 = vshrl.u32 %v1612, 7
      %v1614 = vsub.s32 0, %v1613
      %v1615 = vrot.slane %v1564, %v1614
      %v1616 = vlaneseq
      %v1617 = vshrl.u32 %v1616, 7
      %v1618 = vsub.s32 0, %v1617
      %v1619 = vrot.slane %v1572, %v1618
      %v1620 = vlaneseq
      %v1621 = vshrl.u32 %v1620, 7
      %v1622 = vsub.s32 0, %v1621
      %v1623 = vrot.slane %v1574, %v1622
      %v1624 = vlaneseq
      %v1625 = vshrl.u32 %v1624, 7
      %v1626 = vsub.s32 0, %v1625
      %v1627 = vrot.slane %v1557, %v1626
      %v1628 = vlaneseq
      %v1629 = vshrl.u32 %v1628, 7
      %v1630 = vsub.s32 0, %v1629
      %v1631 = vrot.slane %v1571, %v1630
      %v1632 = vlaneseq
      %v1633 = vshrl.u32 %v1632, 7
      %v1634 = vsub.s32 0, %v1633
      %v1635 = vrot.slane %v1573, %v1634
      %v1636 = vlaneseq
      %v1637 = vshrl.u32 %v1636, 7
      %v1638 = vsub.s32 0, %v1637
      %v1639 = vrot.slane %v1575, %v1638
      %v1656 = vadd.f32 %v1398, %v1579
      %v1657 = vadd.f32 %v1403, %v1583
      %v1658 = vadd.f32 %v1408, %v1587
      %v1659 = vadd.f32 %v1413, %v1591
      %v1660 = vadd.f32 %v1418, %v1595
      %v1661 = vadd.f32 %v1423, %v1599
      %v1662 = vadd.f32 %v1428, %v1603
      %v1663 = vadd.f32 %v1433, %v1607
      %v1664 = vadd.f32 %v1438, %v1611
      %v1665 = vadd.f32 %v1443, %v1615
      %v1666 = vadd.f32 %v1448, %v1619
      %v1667 = vadd.f32 %v1453, %v1623
      %v1668 = vadd.f32 %v1458, %v1627
      %v1669 = vadd.f32 %v1463, %v1631
      %v1670 = vadd.f32 %v1468, %v1635
      %v1671 = vadd.f32 %v1473, %v1639
      %v1672 = vmul.f32 %v1656, %v1656
      %v1673 = vmul.f32 %v1657, %v1657
      %v1674 = vmul.f32 %v1658, %v1658
      %v1675 = vmul.f32 %v1659, %v1659
      %v1676 = vmul.f32 %v1660, %v1660
      %v1677 = vmul.f32 %v1661, %v1661
      %v1678 = vmul.f32 %v1662, %v1662
      %v1679 = vmul.f32 %v1663, %v1663
      %v1680 = vmul.f32 %v1664, %v1664
      %v1681 = vmul.f32 %v1665, %v1665
      %v1682 = vmul.f32 %v1666, %v1666
      %v1683 = vmul.f32 %v1667, %v1667
      %v1684 = vmul.f32 %v1668, %v1668
      %v1685 = vmul.f32 %v1669, %v1669
      %v1686 = vmul.f32 %v1670, %v1670
      %v1687 = vmul.f32 %v1671, %v1671
      %v1688 = vld [vmem:[%s17] sm:$0xff]
      %v1689 = vld [vmem:[%s17 + $0x8] sm:$0xff]
      %v1690 = vld [vmem:[%s17 + $0x10] sm:$0xff]
      %v1691 = vld [vmem:[%s17 + $0x18] sm:$0xff]
      %v1693 = vsel %vm929, %v1672, 0
      %v1696 = vsel %vm929, %v1673, 0
      %v1699 = vsel %vm929, %v1674, 0
      %v1702 = vsel %vm929, %v1675, 0
      %v1705 = vsel %vm929, %v1676, 0
      %v1708 = vsel %vm929, %v1677, 0
      %v1711 = vsel %vm929, %v1678, 0
      %v1714 = vsel %vm929, %v1679, 0
      %v1717 = vsel %vm929, %v1680, 0
      %v1720 = vsel %vm929, %v1681, 0
      %v1723 = vsel %vm929, %v1682, 0
      %v1726 = vsel %vm929, %v1683, 0
      %v1729 = vsel %vm929, %v1684, 0
      %v1732 = vsel %vm929, %v1685, 0
      %v1735 = vsel %vm929, %v1686, 0
      %v1738 = vsel %vm929, %v1687, 0
      %1740 = vmatprep.subr.mxu0 0.0
      %1741 = vmatpush1.msra.mxu0 0.0
      %1742 = vmatprep.subr.mxu0 0.0
      %1743 = vmatpush1.msra.mxu0 0.0
      %1744 = vmatprep.subr.mxu0 0.0
      %1745 = vmatpush1.msra.mxu0 0.0
      %1746 = vmatprep.subr.mxu0 0.0
      %1747 = vmatpush1.msra.mxu0 0.0
      %1748 = vmatprep.subr.mxu0 0.0
      %1749 = vmatpush1.msra.mxu0 0.0
      %1750 = vmatprep.subr.mxu0 0.0
      %1751 = vmatpush1.msra.mxu0 0.0
      %1752 = vmatprep.subr.mxu0 0.0
      %1753 = vmatpush1.msra.mxu0 0.0
      %1754 = vmatprep.subr.mxu0 0.0
      %1755 = vmatpush1.msra.mxu0 0.0
      %1756 = vmatprep.subr.mxu0 0.0
      %1757 = vmatpush1.msra.mxu0 0.0
      %1758 = vmatprep.subr.mxu0 0.0
      %1759 = vmatpush1.msra.mxu0 0.0
      %1760 = vmatprep.subr.mxu0 0.0
      %1761 = vmatpush1.msra.mxu0 0.0
      %1762 = vmatprep.subr.mxu0 0.0
      %1763 = vmatpush1.msra.mxu0 0.0
      %1764 = vmatprep.subr.mxu0 0.0
      %1765 = vmatpush1.msra.mxu0 %v1691
      %1766 = vmatprep.subr.mxu0 0.0
      %1767 = vmatpush1.msra.mxu0 %v1690
      %1768 = vmatprep.subr.mxu0 0.0
      %1769 = vmatpush1.msra.mxu0 %v1689
      %1770 = vmatprep.subr.mxu0 0.0
      %1771 = vmatpush1.msra.mxu0 %v1688
      %1772 = vmatprep.subr.mxu0 0.0
      %1773 = vmatpush2.msra.mxu0 0.0
      %1774 = vmatprep.subr.mxu0 0.0
      %1775 = vmatpush2.msra.mxu0 0.0
      %1776 = vmatprep.subr.mxu0 0.0
      %1777 = vmatpush2.msra.mxu0 0.0
      %1778 = vmatprep.subr.mxu0 0.0
      %1779 = vmatpush2.msra.mxu0 0.0
      %1780 = vmatprep.subr.mxu0 0.0
      %1781 = vmatpush2.msra.mxu0 0.0
      %1782 = vmatprep.subr.mxu0 0.0
      %1783 = vmatpush2.msra.mxu0 0.0
      %1784 = vmatprep.subr.mxu0 0.0
      %1785 = vmatpush2.msra.mxu0 0.0
      %1786 = vmatprep.subr.mxu0 0.0
      %1787 = vmatpush2.msra.mxu0 0.0
      %1788 = vmatprep.subr.mxu0 0.0
      %1789 = vmatpush2.msra.mxu0 0.0
      %1790 = vmatprep.subr.mxu0 0.0
      %1791 = vmatpush2.msra.mxu0 0.0
      %1792 = vmatprep.subr.mxu0 0.0
      %1793 = vmatpush2.msra.mxu0 0.0
      %1794 = vmatprep.subr.mxu0 0.0
      %1795 = vmatpush2.msra.mxu0 0.0
      %1796 = vmatprep.subr.mxu0 0.0
      %1797 = vmatpush2.msra.mxu0 0.0
      %1798 = vmatprep.subr.mxu0 0.0
      %1799 = vmatpush2.msra.mxu0 0.0
      %1800 = vmatprep.subr.mxu0 0.0
      %1801 = vmatpush2.msra.mxu0 0.0
      %1802 = vmatprep.subr.mxu0 0.0
      %1803 = vmatpush2.msra.mxu0 0.0
      %1804 = vmatprep.mubr.f32.mxu0 0.0
      %1805 = vmatmul.mubr.f32.gmra.mxu0 %v1693
      %v1806 = vpop.f32.mrf.mxu0
      %v1807 = vadd.f32 0.0, %v1806
      %v1808 = vpop.f32.mrf.mxu0
      %1809 = vmatprep.mubr.f32.mxu0 0.0
      %1810 = vmatmul.mubr.f32.gmra.mxu0 %v1696
      %v1811 = vpop.f32.mrf.mxu0
      %v1812 = vadd.f32 0.0, %v1811
      %v1813 = vpop.f32.mrf.mxu0
      %1814 = vmatprep.mubr.f32.mxu0 0.0
      %1815 = vmatmul.mubr.f32.gmra.mxu0 %v1699
      %v1816 = vpop.f32.mrf.mxu0
      %v1817 = vadd.f32 0.0, %v1816
      %v1818 = vpop.f32.mrf.mxu0
      %1819 = vmatprep.mubr.f32.mxu0 0.0
      %1820 = vmatmul.mubr.f32.gmra.mxu0 %v1702
      %v1821 = vpop.f32.mrf.mxu0
      %v1822 = vadd.f32 0.0, %v1821
      %v1823 = vpop.f32.mrf.mxu0
      %1824 = vmatprep.mubr.f32.mxu0 0.0
      %1825 = vmatmul.mubr.f32.gmra.mxu0 %v1705
      %v1826 = vpop.f32.mrf.mxu0
      %v1827 = vadd.f32 0.0, %v1826
      %v1828 = vpop.f32.mrf.mxu0
      %1829 = vmatprep.mubr.f32.mxu0 0.0
      %1830 = vmatmul.mubr.f32.gmra.mxu0 %v1708
      %v1831 = vpop.f32.mrf.mxu0
      %v1832 = vadd.f32 0.0, %v1831
      %v1833 = vpop.f32.mrf.mxu0
      %1834 = vmatprep.mubr.f32.mxu0 0.0
      %1835 = vmatmul.mubr.f32.gmra.mxu0 %v1711
      %v1836 = vpop.f32.mrf.mxu0
      %v1837 = vadd.f32 0.0, %v1836
      %v1838 = vpop.f32.mrf.mxu0
      %1839 = vmatprep.mubr.f32.mxu0 0.0
      %1840 = vmatmul.mubr.f32.gmra.mxu0 %v1714
      %v1841 = vpop.f32.mrf.mxu0
      %v1842 = vadd.f32 0.0, %v1841
      %v1843 = vpop.f32.mrf.mxu0
      %1844 = vmatprep.mubr.f32.mxu0 0.0
      %1845 = vmatmul.mubr.f32.gmra.mxu0 %v1717
      %v1846 = vpop.f32.mrf.mxu0
      %v1847 = vadd.f32 0.0, %v1846
      %v1848 = vpop.f32.mrf.mxu0
      %1849 = vmatprep.mubr.f32.mxu0 0.0
      %1850 = vmatmul.mubr.f32.gmra.mxu0 %v1720
      %v1851 = vpop.f32.mrf.mxu0
      %v1852 = vadd.f32 0.0, %v1851
      %v1853 = vpop.f32.mrf.mxu0
      %1854 = vmatprep.mubr.f32.mxu0 0.0
      %1855 = vmatmul.mubr.f32.gmra.mxu0 %v1723
      %v1856 = vpop.f32.mrf.mxu0
      %v1857 = vadd.f32 0.0, %v1856
      %v1858 = vpop.f32.mrf.mxu0
      %1859 = vmatprep.mubr.f32.mxu0 0.0
      %1860 = vmatmul.mubr.f32.gmra.mxu0 %v1726
      %v1861 = vpop.f32.mrf.mxu0
      %v1862 = vadd.f32 0.0, %v1861
      %v1863 = vpop.f32.mrf.mxu0
      %1864 = vmatprep.mubr.f32.mxu0 0.0
      %1865 = vmatmul.mubr.f32.gmra.mxu0 %v1729
      %v1866 = vpop.f32.mrf.mxu0
      %v1867 = vadd.f32 0.0, %v1866
      %v1868 = vpop.f32.mrf.mxu0
      %1869 = vmatprep.mubr.f32.mxu0 0.0
      %1870 = vmatmul.mubr.f32.gmra.mxu0 %v1732
      %v1871 = vpop.f32.mrf.mxu0
      %v1872 = vadd.f32 0.0, %v1871
      %v1873 = vpop.f32.mrf.mxu0
      %1874 = vmatprep.mubr.f32.mxu0 0.0
      %1875 = vmatmul.mubr.f32.gmra.mxu0 %v1735
      %v1876 = vpop.f32.mrf.mxu0
      %v1877 = vadd.f32 0.0, %v1876
      %v1878 = vpop.f32.mrf.mxu0
      %1879 = vmatprep.mubr.f32.mxu0 0.0
      %1880 = vmatmul.mubr.f32.gmra.mxu0 %v1738
      %v1881 = vpop.f32.mrf.mxu0
      %v1882 = vadd.f32 0.0, %v1881
      %v1883 = vpop.f32.mrf.mxu0
      %1884 = vdwg.mxu0
      %v1885 = vld [vmem:[%s7] sm:$0xff]
      %v1886 = vld [vmem:[%s7 + $0x8] sm:$0xff]
      %v1887 = vld [vmem:[%s7 + $0x10] sm:$0xff]
      %v1888 = vld [vmem:[%s7 + $0x18] sm:$0xff]
      %v1889 = vld [vmem:[%s9] sm:$0x1]
      %v1890 = vld [vmem:[%s15] sm:$0xff]
      %v1891 = vld [vmem:[%s15 + $0x8] sm:$0xff]
      %v1892 = vld [vmem:[%s15 + $0x10] sm:$0xff]
      %v1893 = vld [vmem:[%s15 + $0x18] sm:$0xff]
      %v1894 = vld [vmem:[%s16] sm:$0x1]
      %v1895 = vld [vmem:[%s18] sm:$0x1]
      %v1897 = vlaneseq
      %v1898 = vshrl.u32 %v1897, 7
      %v1899 = vsub.s32 0, %v1898
      %v1900 = vrot.slane %v1889, %v1899
      %v1903 = vsel %vm929, %v821, 0
      %v1906 = vsel %vm929, %v826, 0
      %1908 = vmatprep.subr.mxu0 0.0
      %1909 = vmatpush1.msra.mxu0 0.0
      %1910 = vmatprep.subr.mxu0 0.0
      %1911 = vmatpush1.msra.mxu0 0.0
      %1912 = vmatprep.subr.mxu0 0.0
      %1913 = vmatpush1.msra.mxu0 0.0
      %1914 = vmatprep.subr.mxu0 0.0
      %1915 = vmatpush1.msra.mxu0 0.0
      %1916 = vmatprep.subr.mxu0 0.0
      %1917 = vmatpush1.msra.mxu0 0.0
      %1918 = vmatprep.subr.mxu0 0.0
      %1919 = vmatpush1.msra.mxu0 0.0
      %1920 = vmatprep.subr.mxu0 0.0
      %1921 = vmatpush1.msra.mxu0 0.0
      %1922 = vmatprep.subr.mxu0 0.0
      %1923 = vmatpush1.msra.mxu0 0.0
      %1924 = vmatprep.subr.mxu0 0.0
      %1925 = vmatpush1.msra.mxu0 0.0
      %1926 = vmatprep.subr.mxu0 0.0
      %1927 = vmatpush1.msra.mxu0 0.0
      %1928 = vmatprep.subr.mxu0 0.0
      %1929 = vmatpush1.msra.mxu0 0.0
      %1930 = vmatprep.subr.mxu0 0.0
      %1931 = vmatpush1.msra.mxu0 0.0
      %1932 = vmatprep.subr.mxu0 0.0
      %1933 = vmatpush1.msra.mxu0 %v1888
      %1934 = vmatprep.subr.mxu0 0.0
      %1935 = vmatpush1.msra.mxu0 %v1887
      %1936 = vmatprep.subr.mxu0 0.0
      %1937 = vmatpush1.msra.mxu0 %v1886
      %1938 = vmatprep.subr.mxu0 0.0
      %1939 = vmatpush1.msra.mxu0 %v1885
      %1940 = vmatprep.subr.mxu0 0.0
      %1941 = vmatpush2.msra.mxu0 0.0
      %1942 = vmatprep.subr.mxu0 0.0
      %1943 = vmatpush2.msra.mxu0 0.0
      %1944 = vmatprep.subr.mxu0 0.0
      %1945 = vmatpush2.msra.mxu0 0.0
      %1946 = vmatprep.subr.mxu0 0.0
      %1947 = vmatpush2.msra.mxu0 0.0
      %1948 = vmatprep.subr.mxu0 0.0
      %1949 = vmatpush2.msra.mxu0 0.0
      %1950 = vmatprep.subr.mxu0 0.0
      %1951 = vmatpush2.msra.mxu0 0.0
      %1952 = vmatprep.subr.mxu0 0.0
      %1953 = vmatpush2.msra.mxu0 0.0
      %1954 = vmatprep.subr.mxu0 0.0
      %1955 = vmatpush2.msra.mxu0 0.0
      %1956 = vmatprep.subr.mxu0 0.0
      %1957 = vmatpush2.msra.mxu0 0.0
      %1958 = vmatprep.subr.mxu0 0.0
      %1959 = vmatpush2.msra.mxu0 0.0
      %1960 = vmatprep.subr.mxu0 0.0
      %1961 = vmatpush2.msra.mxu0 0.0
      %1962 = vmatprep.subr.mxu0 0.0
      %1963 = vmatpush2.msra.mxu0 0.0
      %1964 = vmatprep.subr.mxu0 0.0
      %1965 = vmatpush2.msra.mxu0 0.0
      %1966 = vmatprep.subr.mxu0 0.0
      %1967 = vmatpush2.msra.mxu0 0.0
      %1968 = vmatprep.subr.mxu0 0.0
      %1969 = vmatpush2.msra.mxu0 0.0
      %1970 = vmatprep.subr.mxu0 0.0
      %1971 = vmatpush2.msra.mxu0 0.0
      %1972 = vmatprep.mubr.f32.mxu0 0.0
      %1973 = vmatmul.mubr.f32.gmra.mxu0 %v1903
      %v1974 = vpop.f32.mrf.mxu0
      %v1975 = vadd.f32 %v1900, %v1974
      %v1976 = vpop.f32.mrf.mxu0
      %1977 = vmatprep.mubr.f32.mxu0 0.0
      %1978 = vmatmul.mubr.f32.gmra.mxu0 %v1906
      %v1979 = vpop.f32.mrf.mxu0
      %v1980 = vadd.f32 %v1900, %v1979
      %v1981 = vpop.f32.mrf.mxu0
      %1982 = vdwg.mxu0
      %v1985 = vcombine.high %v1975, %v1975
      %v1987 = vunpack.c.l.s4 1966171168
      %v1988 = vunpack.c.0.s8 %v1987
      %v1989 = vlaneseq
      %v1990 = vshrl.u32 %v1989, 7
      %v1991 = vsub.s32 %v1988, %v1990
      %v1992 = vrot.slane %v1975, %v1991
      %v1994 = vunpack.c.l.s4 1966171168
      %v1995 = vunpack.c.0.s8 %v1994
      %v1996 = vlaneseq
      %v1997 = vshrl.u32 %v1996, 7
      %v1998 = vsub.s32 %v1995, %v1997
      %v1999 = vrot.slane %v1985, %v1998
      %v2000 = vcombine.high %v1992, %v1992
      %v2001 = vcombine.high %v1999, %v1999
      %v2003 = vunpack.c.l.s4 1966171168
      %v2004 = vunpack.c.0.s8 %v2003
      %v2005 = vlaneseq
      %v2006 = vshrl.u32 %v2005, 7
      %v2007 = vsub.s32 %v2004, %v2006
      %v2008 = vrot.slane %v1992, %v2007
      %v2010 = vunpack.c.l.s4 1966171168
      %v2011 = vunpack.c.0.s8 %v2010
      %v2012 = vlaneseq
      %v2013 = vshrl.u32 %v2012, 7
      %v2014 = vsub.s32 %v2011, %v2013
      %v2015 = vrot.slane %v1999, %v2014
      %v2017 = vunpack.c.l.s4 1966171168
      %v2018 = vunpack.c.0.s8 %v2017
      %v2019 = vlaneseq
      %v2020 = vshrl.u32 %v2019, 7
      %v2021 = vsub.s32 %v2018, %v2020
      %v2022 = vrot.slane %v2000, %v2021
      %v2024 = vunpack.c.l.s4 1966171168
      %v2025 = vunpack.c.0.s8 %v2024
      %v2026 = vlaneseq
      %v2027 = vshrl.u32 %v2026, 7
      %v2028 = vsub.s32 %v2025, %v2027
      %v2029 = vrot.slane %v2001, %v2028
      %v2030 = vcombine.high %v2008, %v2008
      %v2031 = vcombine.high %v2015, %v2015
      %v2032 = vcombine.high %v2022, %v2022
      %v2033 = vcombine.high %v2029, %v2029
      %v2034 = vcombine.high %v1980, %v1980
      %v2036 = vunpack.c.l.s4 1966171168
      %v2037 = vunpack.c.0.s8 %v2036
      %v2038 = vlaneseq
      %v2039 = vshrl.u32 %v2038, 7
      %v2040 = vsub.s32 %v2037, %v2039
      %v2041 = vrot.slane %v1980, %v2040
      %v2043 = vunpack.c.l.s4 1966171168
      %v2044 = vunpack.c.0.s8 %v2043
      %v2045 = vlaneseq
      %v2046 = vshrl.u32 %v2045, 7
      %v2047 = vsub.s32 %v2044, %v2046
      %v2048 = vrot.slane %v2034, %v2047
      %v2049 = vcombine.high %v2041, %v2041
      %v2050 = vcombine.high %v2048, %v2048
      %v2052 = vunpack.c.l.s4 1966171168
      %v2053 = vunpack.c.0.s8 %v2052
      %v2054 = vlaneseq
      %v2055 = vshrl.u32 %v2054, 7
      %v2056 = vsub.s32 %v2053, %v2055
      %v2057 = vrot.slane %v2041, %v2056
      %v2059 = vunpack.c.l.s4 1966171168
      %v2060 = vunpack.c.0.s8 %v2059
      %v2061 = vlaneseq
      %v2062 = vshrl.u32 %v2061, 7
      %v2063 = vsub.s32 %v2060, %v2062
      %v2064 = vrot.slane %v2048, %v2063
      %v2066 = vunpack.c.l.s4 1966171168
      %v2067 = vunpack.c.0.s8 %v2066
      %v2068 = vlaneseq
      %v2069 = vshrl.u32 %v2068, 7
      %v2070 = vsub.s32 %v2067, %v2069
      %v2071 = vrot.slane %v2049, %v2070
      %v2073 = vunpack.c.l.s4 1966171168
      %v2074 = vunpack.c.0.s8 %v2073
      %v2075 = vlaneseq
      %v2076 = vshrl.u32 %v2075, 7
      %v2077 = vsub.s32 %v2074, %v2076
      %v2078 = vrot.slane %v2050, %v2077
      %v2079 = vcombine.high %v2057, %v2057
      %v2080 = vcombine.high %v2064, %v2064
      %v2081 = vcombine.high %v2071, %v2071
      %v2082 = vcombine.high %v2078, %v2078
      %v2083 = vlaneseq
      %v2084 = vshrl.u32 %v2083, 7
      %v2085 = vsub.s32 0, %v2084
      %v2086 = vrot.slane %v2008, %v2085
      %v2087 = vlaneseq
      %v2088 = vshrl.u32 %v2087, 7
      %v2089 = vsub.s32 0, %v2088
      %v2090 = vrot.slane %v2022, %v2089
      %v2091 = vlaneseq
      %v2092 = vshrl.u32 %v2091, 7
      %v2093 = vsub.s32 0, %v2092
      %v2094 = vrot.slane %v2030, %v2093
      %v2095 = vlaneseq
      %v2096 = vshrl.u32 %v2095, 7
      %v2097 = vsub.s32 0, %v2096
      %v2098 = vrot.slane %v2032, %v2097
      %v2099 = vlaneseq
      %v2100 = vshrl.u32 %v2099, 7
      %v2101 = vsub.s32 0, %v2100
      %v2102 = vrot.slane %v2015, %v2101
      %v2103 = vlaneseq
      %v2104 = vshrl.u32 %v2103, 7
      %v2105 = vsub.s32 0, %v2104
      %v2106 = vrot.slane %v2029, %v2105
      %v2107 = vlaneseq
      %v2108 = vshrl.u32 %v2107, 7
      %v2109 = vsub.s32 0, %v2108
      %v2110 = vrot.slane %v2031, %v2109
      %v2111 = vlaneseq
      %v2112 = vshrl.u32 %v2111, 7
      %v2113 = vsub.s32 0, %v2112
      %v2114 = vrot.slane %v2033, %v2113
      %v2115 = vlaneseq
      %v2116 = vshrl.u32 %v2115, 7
      %v2117 = vsub.s32 0, %v2116
      %v2118 = vrot.slane %v2057, %v2117
      %v2119 = vlaneseq
      %v2120 = vshrl.u32 %v2119, 7
      %v2121 = vsub.s32 0, %v2120
      %v2122 = vrot.slane %v2071, %v2121
      %v2123 = vlaneseq
      %v2124 = vshrl.u32 %v2123, 7
      %v2125 = vsub.s32 0, %v2124
      %v2126 = vrot.slane %v2079, %v2125
      %v2127 = vlaneseq
      %v2128 = vshrl.u32 %v2127, 7
      %v2129 = vsub.s32 0, %v2128
      %v2130 = vrot.slane %v2081, %v2129
      %v2131 = vlaneseq
      %v2132 = vshrl.u32 %v2131, 7
      %v2133 = vsub.s32 0, %v2132
      %v2134 = vrot.slane %v2064, %v2133
      %v2135 = vlaneseq
      %v2136 = vshrl.u32 %v2135, 7
      %v2137 = vsub.s32 0, %v2136
      %v2138 = vrot.slane %v2078, %v2137
      %v2139 = vlaneseq
      %v2140 = vshrl.u32 %v2139, 7
      %v2141 = vsub.s32 0, %v2140
      %v2142 = vrot.slane %v2080, %v2141
      %v2143 = vlaneseq
      %v2144 = vshrl.u32 %v2143, 7
      %v2145 = vsub.s32 0, %v2144
      %v2146 = vrot.slane %v2082, %v2145
      %v2163 = vmul.f32 %v1045, %v2086
      %v2164 = vmul.f32 %v1050, %v2090
      %v2165 = vmul.f32 %v1055, %v2094
      %v2166 = vmul.f32 %v1060, %v2098
      %v2167 = vmul.f32 %v1065, %v2102
      %v2168 = vmul.f32 %v1070, %v2106
      %v2169 = vmul.f32 %v1075, %v2110
      %v2170 = vmul.f32 %v1080, %v2114
      %v2171 = vmul.f32 %v1085, %v2118
      %v2172 = vmul.f32 %v1090, %v2122
      %v2173 = vmul.f32 %v1095, %v2126
      %v2174 = vmul.f32 %v1100, %v2130
      %v2175 = vmul.f32 %v1105, %v2134
      %v2176 = vmul.f32 %v1110, %v2138
      %v2177 = vmul.f32 %v1115, %v2142
      %v2178 = vmul.f32 %v1120, %v2146
      %v2179 = vsel %vm929, %v2163, 0.0
      %2180 = vadd.xlane.f32.xlu0 %v2179
      %v2181 = vpop.xlane.xlu0 %2180
      %v2182 = vsel %vm929, %v2164, 0.0
      %2183 = vadd.xlane.f32.xlu0 %v2182
      %v2184 = vpop.xlane.xlu0 %2183
      %v2185 = vsel %vm929, %v2165, 0.0
      %2186 = vadd.xlane.f32.xlu0 %v2185
      %v2187 = vpop.xlane.xlu0 %2186
      %v2188 = vsel %vm929, %v2166, 0.0
      %2189 = vadd.xlane.f32.xlu0 %v2188
      %v2190 = vpop.xlane.xlu0 %2189
      %v2191 = vsel %vm929, %v2167, 0.0
      %2192 = vadd.xlane.f32.xlu0 %v2191
      %v2193 = vpop.xlane.xlu0 %2192
      %v2194 = vsel %vm929, %v2168, 0.0
      %2195 = vadd.xlane.f32.xlu0 %v2194
      %v2196 = vpop.xlane.xlu0 %2195
      %v2197 = vsel %vm929, %v2169, 0.0
      %2198 = vadd.xlane.f32.xlu0 %v2197
      %v2199 = vpop.xlane.xlu0 %2198
      %v2200 = vsel %vm929, %v2170, 0.0
      %2201 = vadd.xlane.f32.xlu0 %v2200
      %v2202 = vpop.xlane.xlu0 %2201
      %v2203 = vsel %vm929, %v2171, 0.0
      %2204 = vadd.xlane.f32.xlu0 %v2203
      %v2205 = vpop.xlane.xlu0 %2204
      %v2206 = vsel %vm929, %v2172, 0.0
      %2207 = vadd.xlane.f32.xlu0 %v2206
      %v2208 = vpop.xlane.xlu0 %2207
      %v2209 = vsel %vm929, %v2173, 0.0
      %2210 = vadd.xlane.f32.xlu0 %v2209
      %v2211 = vpop.xlane.xlu0 %2210
      %v2212 = vsel %vm929, %v2174, 0.0
      %2213 = vadd.xlane.f32.xlu0 %v2212
      %v2214 = vpop.xlane.xlu0 %2213
      %v2215 = vsel %vm929, %v2175, 0.0
      %2216 = vadd.xlane.f32.xlu0 %v2215
      %v2217 = vpop.xlane.xlu0 %2216
      %v2218 = vsel %vm929, %v2176, 0.0
      %2219 = vadd.xlane.f32.xlu0 %v2218
      %v2220 = vpop.xlane.xlu0 %2219
      %v2221 = vsel %vm929, %v2177, 0.0
      %2222 = vadd.xlane.f32.xlu0 %v2221
      %v2223 = vpop.xlane.xlu0 %2222
      %v2224 = vsel %vm929, %v2178, 0.0
      %2225 = vadd.xlane.f32.xlu0 %v2224
      %v2226 = vpop.xlane.xlu0 %2225
      %v2227 = vmul.f32 %v1975, %v1975
      %v2228 = vmul.f32 %v1980, %v1980
      %v2229 = vsel %vm929, %v2227, 0.0
      %2230 = vadd.xlane.f32.xlu0 %v2229
      %v2231 = vpop.xlane.xlu0 %2230
      %v2232 = vsel %vm929, %v2228, 0.0
      %2233 = vadd.xlane.f32.xlu0 %v2232
      %v2234 = vpop.xlane.xlu0 %2233
      %v2235 = vmul.f32 %v2181, 2.0
      %v2236 = vmul.f32 %v2184, 2.0
      %v2237 = vmul.f32 %v2187, 2.0
      %v2238 = vmul.f32 %v2190, 2.0
      %v2239 = vmul.f32 %v2193, 2.0
      %v2240 = vmul.f32 %v2196, 2.0
      %v2241 = vmul.f32 %v2199, 2.0
      %v2242 = vmul.f32 %v2202, 2.0
      %v2243 = vmul.f32 %v2205, 2.0
      %v2244 = vmul.f32 %v2208, 2.0
      %v2245 = vmul.f32 %v2211, 2.0
      %v2246 = vmul.f32 %v2214, 2.0
      %v2247 = vmul.f32 %v2217, 2.0
      %v2248 = vmul.f32 %v2220, 2.0
      %v2249 = vmul.f32 %v2223, 2.0
      %v2250 = vmul.f32 %v2226, 2.0
      %v2251 = vadd.f32 %v1141, %v2235
      %v2252 = vadd.f32 %v1144, %v2236
      %v2253 = vadd.f32 %v1147, %v2237
      %v2254 = vadd.f32 %v1150, %v2238
      %v2255 = vadd.f32 %v1153, %v2239
      %v2256 = vadd.f32 %v1156, %v2240
      %v2257 = vadd.f32 %v1159, %v2241
      %v2258 = vadd.f32 %v1162, %v2242
      %v2259 = vadd.f32 %v1165, %v2243
      %v2260 = vadd.f32 %v1168, %v2244
      %v2261 = vadd.f32 %v1171, %v2245
      %v2262 = vadd.f32 %v1174, %v2246
      %v2263 = vadd.f32 %v1177, %v2247
      %v2264 = vadd.f32 %v1180, %v2248
      %v2265 = vadd.f32 %v1183, %v2249
      %v2266 = vadd.f32 %v1186, %v2250
      %v2269 = vlaneseq
      %v2270 = vshrl.u32 %v2269, 7
      %v2271 = vsub.s32 0, %v2270
      %v2272 = vrot.slane %v2231, %v2271
      %v2273 = vlaneseq
      %v2274 = vshrl.u32 %v2273, 7
      %v2275 = vsub.s32 1, %v2274
      %v2276 = vrot.slane %v2231, %v2275
      %v2277 = vlaneseq
      %v2278 = vshrl.u32 %v2277, 7
      %v2279 = vsub.s32 2, %v2278
      %v2280 = vrot.slane %v2231, %v2279
      %v2281 = vlaneseq
      %v2282 = vshrl.u32 %v2281, 7
      %v2283 = vsub.s32 3, %v2282
      %v2284 = vrot.slane %v2231, %v2283
      %v2285 = vlaneseq
      %v2286 = vshrl.u32 %v2285, 7
      %v2287 = vsub.s32 4, %v2286
      %v2288 = vrot.slane %v2231, %v2287
      %v2289 = vlaneseq
      %v2290 = vshrl.u32 %v2289, 7
      %v2291 = vsub.s32 5, %v2290
      %v2292 = vrot.slane %v2231, %v2291
      %v2293 = vlaneseq
      %v2294 = vshrl.u32 %v2293, 7
      %v2295 = vsub.s32 6, %v2294
      %v2296 = vrot.slane %v2231, %v2295
      %v2297 = vlaneseq
      %v2298 = vshrl.u32 %v2297, 7
      %v2299 = vsub.s32 7, %v2298
      %v2300 = vrot.slane %v2231, %v2299
      %v2301 = vlaneseq
      %v2302 = vshrl.u32 %v2301, 7
      %v2303 = vsub.s32 0, %v2302
      %v2304 = vrot.slane %v2234, %v2303
      %v2305 = vlaneseq
      %v2306 = vshrl.u32 %v2305, 7
      %v2307 = vsub.s32 1, %v2306
      %v2308 = vrot.slane %v2234, %v2307
      %v2309 = vlaneseq
      %v2310 = vshrl.u32 %v2309, 7
      %v2311 = vsub.s32 2, %v2310
      %v2312 = vrot.slane %v2234, %v2311
      %v2313 = vlaneseq
      %v2314 = vshrl.u32 %v2313, 7
      %v2315 = vsub.s32 3, %v2314
      %v2316 = vrot.slane %v2234, %v2315
      %v2317 = vlaneseq
      %v2318 = vshrl.u32 %v2317, 7
      %v2319 = vsub.s32 4, %v2318
      %v2320 = vrot.slane %v2234, %v2319
      %v2321 = vlaneseq
      %v2322 = vshrl.u32 %v2321, 7
      %v2323 = vsub.s32 5, %v2322
      %v2324 = vrot.slane %v2234, %v2323
      %v2325 = vlaneseq
      %v2326 = vshrl.u32 %v2325, 7
      %v2327 = vsub.s32 6, %v2326
      %v2328 = vrot.slane %v2234, %v2327
      %v2329 = vlaneseq
      %v2330 = vshrl.u32 %v2329, 7
      %v2331 = vsub.s32 7, %v2330
      %v2332 = vrot.slane %v2234, %v2331
      %v2349 = vadd.f32 %v2251, %v2272
      %v2350 = vadd.f32 %v2252, %v2276
      %v2351 = vadd.f32 %v2253, %v2280
      %v2352 = vadd.f32 %v2254, %v2284
      %v2353 = vadd.f32 %v2255, %v2288
      %v2354 = vadd.f32 %v2256, %v2292
      %v2355 = vadd.f32 %v2257, %v2296
      %v2356 = vadd.f32 %v2258, %v2300
      %v2357 = vadd.f32 %v2259, %v2304
      %v2358 = vadd.f32 %v2260, %v2308
      %v2359 = vadd.f32 %v2261, %v2312
      %v2360 = vadd.f32 %v2262, %v2316
      %v2361 = vadd.f32 %v2263, %v2320
      %v2362 = vadd.f32 %v2264, %v2324
      %v2363 = vadd.f32 %v2265, %v2328
      %v2364 = vadd.f32 %v2266, %v2332
      %v2365 = vsub.f32 0.0, %v2349
      %v2366 = vsub.f32 0.0, %v2350
      %v2367 = vsub.f32 0.0, %v2351
      %v2368 = vsub.f32 0.0, %v2352
      %v2369 = vsub.f32 0.0, %v2353
      %v2370 = vsub.f32 0.0, %v2354
      %v2371 = vsub.f32 0.0, %v2355
      %v2372 = vsub.f32 0.0, %v2356
      %v2373 = vsub.f32 0.0, %v2357
      %v2374 = vsub.f32 0.0, %v2358
      %v2375 = vsub.f32 0.0, %v2359
      %v2376 = vsub.f32 0.0, %v2360
      %v2377 = vsub.f32 0.0, %v2361
      %v2378 = vsub.f32 0.0, %v2362
      %v2379 = vsub.f32 0.0, %v2363
      %v2380 = vsub.f32 0.0, %v2364
      %v2383 = vlaneseq
      %v2384 = vshrl.u32 %v2383, 7
      %v2385 = vsub.s32 0, %v2384
      %v2386 = vrot.slane %v730, %v2385
      %2388 = vbcast.lane.b32.xlu0 %v2386, 256
      %v2389 = vpop.permute.xlu0 %2388
      %v2390 = vlaneseq
      %v2391 = vshrl.u32 %v2390, 7
      %v2392 = vsub.s32 1, %v2391
      %v2393 = vrot.slane %v730, %v2392
      %2395 = vbcast.lane.b32.xlu0 %v2393, 256
      %v2396 = vpop.permute.xlu0 %2395
      %v2397 = vlaneseq
      %v2398 = vshrl.u32 %v2397, 7
      %v2399 = vsub.s32 2, %v2398
      %v2400 = vrot.slane %v730, %v2399
      %2402 = vbcast.lane.b32.xlu0 %v2400, 256
      %v2403 = vpop.permute.xlu0 %2402
      %v2404 = vlaneseq
      %v2405 = vshrl.u32 %v2404, 7
      %v2406 = vsub.s32 3, %v2405
      %v2407 = vrot.slane %v730, %v2406
      %2409 = vbcast.lane.b32.xlu0 %v2407, 256
      %v2410 = vpop.permute.xlu0 %2409
      %v2411 = vlaneseq
      %v2412 = vshrl.u32 %v2411, 7
      %v2413 = vsub.s32 4, %v2412
      %v2414 = vrot.slane %v730, %v2413
      %2416 = vbcast.lane.b32.xlu0 %v2414, 256
      %v2417 = vpop.permute.xlu0 %2416
      %v2418 = vlaneseq
      %v2419 = vshrl.u32 %v2418, 7
      %v2420 = vsub.s32 5, %v2419
      %v2421 = vrot.slane %v730, %v2420
      %2423 = vbcast.lane.b32.xlu0 %v2421, 256
      %v2424 = vpop.permute.xlu0 %2423
      %v2425 = vlaneseq
      %v2426 = vshrl.u32 %v2425, 7
      %v2427 = vsub.s32 6, %v2426
      %v2428 = vrot.slane %v730, %v2427
      %2430 = vbcast.lane.b32.xlu0 %v2428, 256
      %v2431 = vpop.permute.xlu0 %2430
      %v2432 = vlaneseq
      %v2433 = vshrl.u32 %v2432, 7
      %v2434 = vsub.s32 7, %v2433
      %v2435 = vrot.slane %v730, %v2434
      %2437 = vbcast.lane.b32.xlu0 %v2435, 256
      %v2438 = vpop.permute.xlu0 %2437
      %v2439 = vlaneseq
      %v2440 = vshrl.u32 %v2439, 7
      %v2441 = vsub.s32 0, %v2440
      %v2442 = vrot.slane %v731, %v2441
      %2444 = vbcast.lane.b32.xlu0 %v2442, 256
      %v2445 = vpop.permute.xlu0 %2444
      %v2446 = vlaneseq
      %v2447 = vshrl.u32 %v2446, 7
      %v2448 = vsub.s32 1, %v2447
      %v2449 = vrot.slane %v731, %v2448
      %2451 = vbcast.lane.b32.xlu0 %v2449, 256
      %v2452 = vpop.permute.xlu0 %2451
      %v2453 = vlaneseq
      %v2454 = vshrl.u32 %v2453, 7
      %v2455 = vsub.s32 2, %v2454
      %v2456 = vrot.slane %v731, %v2455
      %2458 = vbcast.lane.b32.xlu0 %v2456, 256
      %v2459 = vpop.permute.xlu0 %2458
      %v2460 = vlaneseq
      %v2461 = vshrl.u32 %v2460, 7
      %v2462 = vsub.s32 3, %v2461
      %v2463 = vrot.slane %v731, %v2462
      %2465 = vbcast.lane.b32.xlu0 %v2463, 256
      %v2466 = vpop.permute.xlu0 %2465
      %v2467 = vlaneseq
      %v2468 = vshrl.u32 %v2467, 7
      %v2469 = vsub.s32 4, %v2468
      %v2470 = vrot.slane %v731, %v2469
      %2472 = vbcast.lane.b32.xlu0 %v2470, 256
      %v2473 = vpop.permute.xlu0 %2472
      %v2474 = vlaneseq
      %v2475 = vshrl.u32 %v2474, 7
      %v2476 = vsub.s32 5, %v2475
      %v2477 = vrot.slane %v731, %v2476
      %2479 = vbcast.lane.b32.xlu0 %v2477, 256
      %v2480 = vpop.permute.xlu0 %2479
      %v2481 = vlaneseq
      %v2482 = vshrl.u32 %v2481, 7
      %v2483 = vsub.s32 6, %v2482
      %v2484 = vrot.slane %v731, %v2483
      %2486 = vbcast.lane.b32.xlu0 %v2484, 256
      %v2487 = vpop.permute.xlu0 %2486
      %v2488 = vlaneseq
      %v2489 = vshrl.u32 %v2488, 7
      %v2490 = vsub.s32 7, %v2489
      %v2491 = vrot.slane %v731, %v2490
      %2493 = vbcast.lane.b32.xlu0 %v2491, 256
      %v2494 = vpop.permute.xlu0 %2493
      %v2511 = vmul.f32 %v2365, %v2389
      %v2512 = vmul.f32 %v2366, %v2396
      %v2513 = vmul.f32 %v2367, %v2403
      %v2514 = vmul.f32 %v2368, %v2410
      %v2515 = vmul.f32 %v2369, %v2417
      %v2516 = vmul.f32 %v2370, %v2424
      %v2517 = vmul.f32 %v2371, %v2431
      %v2518 = vmul.f32 %v2372, %v2438
      %v2519 = vmul.f32 %v2373, %v2445
      %v2520 = vmul.f32 %v2374, %v2452
      %v2521 = vmul.f32 %v2375, %v2459
      %v2522 = vmul.f32 %v2376, %v2466
      %v2523 = vmul.f32 %v2377, %v2473
      %v2524 = vmul.f32 %v2378, %v2480
      %v2525 = vmul.f32 %v2379, %v2487
      %v2526 = vmul.f32 %v2380, %v2494
      %v2527 = vmul.f32 %v2511, 1.442695
      %v2528 = vpow.pop %v2527
      %v2529 = vmul.f32 %v2512, 1.442695
      %v2530 = vpow.pop %v2529
      %v2531 = vmul.f32 %v2513, 1.442695
      %v2532 = vpow.pop %v2531
      %v2533 = vmul.f32 %v2514, 1.442695
      %v2534 = vpow.pop %v2533
      %v2535 = vmul.f32 %v2515, 1.442695
      %v2536 = vpow.pop %v2535
      %v2537 = vmul.f32 %v2516, 1.442695
      %v2538 = vpow.pop %v2537
      %v2539 = vmul.f32 %v2517, 1.442695
      %v2540 = vpow.pop %v2539
      %v2541 = vmul.f32 %v2518, 1.442695
      %v2542 = vpow.pop %v2541
      %v2543 = vmul.f32 %v2519, 1.442695
      %v2544 = vpow.pop %v2543
      %v2545 = vmul.f32 %v2520, 1.442695
      %v2546 = vpow.pop %v2545
      %v2547 = vmul.f32 %v2521, 1.442695
      %v2548 = vpow.pop %v2547
      %v2549 = vmul.f32 %v2522, 1.442695
      %v2550 = vpow.pop %v2549
      %v2551 = vmul.f32 %v2523, 1.442695
      %v2552 = vpow.pop %v2551
      %v2553 = vmul.f32 %v2524, 1.442695
      %v2554 = vpow.pop %v2553
      %v2555 = vmul.f32 %v2525, 1.442695
      %v2556 = vpow.pop %v2555
      %v2557 = vmul.f32 %v2526, 1.442695
      %v2558 = vpow.pop %v2557
      %2575 = vset.pattern.permute.xlu0 0
      %2576 = vperm.xlu0 %2575, %v2528
      %v2577 = vpop.permute.xlu0 %2576
      %2578 = vset.pattern.permute.xlu0 0
      %2579 = vperm.xlu0 %2578, %v2530
      %v2580 = vpop.permute.xlu0 %2579
      %2581 = vset.pattern.permute.xlu0 0
      %2582 = vperm.xlu0 %2581, %v2532
      %v2583 = vpop.permute.xlu0 %2582
      %2584 = vset.pattern.permute.xlu0 0
      %2585 = vperm.xlu0 %2584, %v2534
      %v2586 = vpop.permute.xlu0 %2585
      %2587 = vset.pattern.permute.xlu0 0
      %2588 = vperm.xlu0 %2587, %v2536
      %v2589 = vpop.permute.xlu0 %2588
      %2590 = vset.pattern.permute.xlu0 0
      %2591 = vperm.xlu0 %2590, %v2538
      %v2592 = vpop.permute.xlu0 %2591
      %2593 = vset.pattern.permute.xlu0 0
      %2594 = vperm.xlu0 %2593, %v2540
      %v2595 = vpop.permute.xlu0 %2594
      %2596 = vset.pattern.permute.xlu0 0
      %2597 = vperm.xlu0 %2596, %v2542
      %v2598 = vpop.permute.xlu0 %2597
      %2599 = vset.pattern.permute.xlu0 0
      %2600 = vperm.xlu0 %2599, %v2544
      %v2601 = vpop.permute.xlu0 %2600
      %2602 = vset.pattern.permute.xlu0 0
      %2603 = vperm.xlu0 %2602, %v2546
      %v2604 = vpop.permute.xlu0 %2603
      %2605 = vset.pattern.permute.xlu0 0
      %2606 = vperm.xlu0 %2605, %v2548
      %v2607 = vpop.permute.xlu0 %2606
      %2608 = vset.pattern.permute.xlu0 0
      %2609 = vperm.xlu0 %2608, %v2550
      %v2610 = vpop.permute.xlu0 %2609
      %2611 = vset.pattern.permute.xlu0 0
      %2612 = vperm.xlu0 %2611, %v2552
      %v2613 = vpop.permute.xlu0 %2612
      %2614 = vset.pattern.permute.xlu0 0
      %2615 = vperm.xlu0 %2614, %v2554
      %v2616 = vpop.permute.xlu0 %2615
      %2617 = vset.pattern.permute.xlu0 0
      %2618 = vperm.xlu0 %2617, %v2556
      %v2619 = vpop.permute.xlu0 %2618
      %2620 = vset.pattern.permute.xlu0 0
      %2621 = vperm.xlu0 %2620, %v2558
      %v2622 = vpop.permute.xlu0 %2621
      %v2623 = vlaneseq
      %v2624 = vand.u32 %v2623, 127
      %v2625 = vlaneseq
      %v2626 = vshrl.u32 %v2625, 7
      %v2627 = vsub.s32 %v2624, %v2626
      %v2628 = vrot.slane %v2577, %v2627
      %v2629 = vlaneseq
      %v2630 = vshrl.u32 %v2629, 7
      %v2631 = vsub.s32 %v2624, %v2630
      %v2632 = vrot.slane %v2580, %v2631
      %v2633 = vlaneseq
      %v2634 = vshrl.u32 %v2633, 7
      %v2635 = vsub.s32 %v2624, %v2634
      %v2636 = vrot.slane %v2583, %v2635
      %v2637 = vlaneseq
      %v2638 = vshrl.u32 %v2637, 7
      %v2639 = vsub.s32 %v2624, %v2638
      %v2640 = vrot.slane %v2586, %v2639
      %v2641 = vlaneseq
      %v2642 = vshrl.u32 %v2641, 7
      %v2643 = vsub.s32 %v2624, %v2642
      %v2644 = vrot.slane %v2589, %v2643
      %v2645 = vlaneseq
      %v2646 = vshrl.u32 %v2645, 7
      %v2647 = vsub.s32 %v2624, %v2646
      %v2648 = vrot.slane %v2592, %v2647
      %v2649 = vlaneseq
      %v2650 = vshrl.u32 %v2649, 7
      %v2651 = vsub.s32 %v2624, %v2650
      %v2652 = vrot.slane %v2595, %v2651
      %v2653 = vlaneseq
      %v2654 = vshrl.u32 %v2653, 7
      %v2655 = vsub.s32 %v2624, %v2654
      %v2656 = vrot.slane %v2598, %v2655
      %v2657 = vlaneseq
      %v2658 = vshrl.u32 %v2657, 7
      %v2659 = vsub.s32 %v2624, %v2658
      %v2660 = vrot.slane %v2601, %v2659
      %v2661 = vlaneseq
      %v2662 = vshrl.u32 %v2661, 7
      %v2663 = vsub.s32 %v2624, %v2662
      %v2664 = vrot.slane %v2604, %v2663
      %v2665 = vlaneseq
      %v2666 = vshrl.u32 %v2665, 7
      %v2667 = vsub.s32 %v2624, %v2666
      %v2668 = vrot.slane %v2607, %v2667
      %v2669 = vlaneseq
      %v2670 = vshrl.u32 %v2669, 7
      %v2671 = vsub.s32 %v2624, %v2670
      %v2672 = vrot.slane %v2610, %v2671
      %v2673 = vlaneseq
      %v2674 = vshrl.u32 %v2673, 7
      %v2675 = vsub.s32 %v2624, %v2674
      %v2676 = vrot.slane %v2613, %v2675
      %v2677 = vlaneseq
      %v2678 = vshrl.u32 %v2677, 7
      %v2679 = vsub.s32 %v2624, %v2678
      %v2680 = vrot.slane %v2616, %v2679
      %v2681 = vlaneseq
      %v2682 = vshrl.u32 %v2681, 7
      %v2683 = vsub.s32 %v2624, %v2682
      %v2684 = vrot.slane %v2619, %v2683
      %v2685 = vlaneseq
      %v2686 = vshrl.u32 %v2685, 7
      %v2687 = vsub.s32 %v2624, %v2686
      %v2688 = vrot.slane %v2622, %v2687
      %vm2689 = vcmask 1041409
      %v2690 = vsel %vm2689, %v2632, %v2628
      %vm2691 = vcmask 1042434
      %v2692 = vsel %vm2691, %v2636, %v2690
      %vm2693 = vcmask 1043459
      %v2694 = vsel %vm2693, %v2640, %v2692
      %vm2695 = vcmask 1044484
      %v2696 = vsel %vm2695, %v2644, %v2694
      %vm2697 = vcmask 1045509
      %v2698 = vsel %vm2697, %v2648, %v2696
      %vm2699 = vcmask 1046534
      %v2700 = vsel %vm2699, %v2652, %v2698
      %vm2701 = vcmask 1047559
      %v2702 = vsel %vm2701, %v2656, %v2700
      %v2703 = vsel %vm2689, %v2664, %v2660
      %v2704 = vsel %vm2691, %v2668, %v2703
      %v2705 = vsel %vm2693, %v2672, %v2704
      %v2706 = vsel %vm2695, %v2676, %v2705
      %v2707 = vsel %vm2697, %v2680, %v2706
      %v2708 = vsel %vm2699, %v2684, %v2707
      %v2709 = vsel %vm2701, %v2688, %v2708
      %vm2712 = vcmask 64512
      %v2713 = vsel %vm2712, %v2702, 0.0
      %2714 = vadd.xlane.f32.xlu0 %v2713
      %v2715 = vpop.xlane.xlu0 %2714
      %v2716 = vsel %vm2712, %v2709, 0.0
      %2717 = vadd.xlane.f32.xlu0 %v2716
      %v2718 = vpop.xlane.xlu0 %2717
      %v2719 = vrcp.pop %v2715
      %v2720 = vrcp.pop %v2718
      %v2723 = vlaneseq
      %v2724 = vshrl.u32 %v2723, 7
      %v2725 = vsub.s32 0, %v2724
      %v2726 = vrot.slane %v2719, %v2725
      %v2727 = vlaneseq
      %v2728 = vshrl.u32 %v2727, 7
      %v2729 = vsub.s32 1, %v2728
      %v2730 = vrot.slane %v2719, %v2729
      %v2731 = vlaneseq
      %v2732 = vshrl.u32 %v2731, 7
      %v2733 = vsub.s32 2, %v2732
      %v2734 = vrot.slane %v2719, %v2733
      %v2735 = vlaneseq
      %v2736 = vshrl.u32 %v2735, 7
      %v2737 = vsub.s32 3, %v2736
      %v2738 = vrot.slane %v2719, %v2737
      %v2739 = vlaneseq
      %v2740 = vshrl.u32 %v2739, 7
      %v2741 = vsub.s32 4, %v2740
      %v2742 = vrot.slane %v2719, %v2741
      %v2743 = vlaneseq
      %v2744 = vshrl.u32 %v2743, 7
      %v2745 = vsub.s32 5, %v2744
      %v2746 = vrot.slane %v2719, %v2745
      %v2747 = vlaneseq
      %v2748 = vshrl.u32 %v2747, 7
      %v2749 = vsub.s32 6, %v2748
      %v2750 = vrot.slane %v2719, %v2749
      %v2751 = vlaneseq
      %v2752 = vshrl.u32 %v2751, 7
      %v2753 = vsub.s32 7, %v2752
      %v2754 = vrot.slane %v2719, %v2753
      %v2755 = vlaneseq
      %v2756 = vshrl.u32 %v2755, 7
      %v2757 = vsub.s32 0, %v2756
      %v2758 = vrot.slane %v2720, %v2757
      %v2759 = vlaneseq
      %v2760 = vshrl.u32 %v2759, 7
      %v2761 = vsub.s32 1, %v2760
      %v2762 = vrot.slane %v2720, %v2761
      %v2763 = vlaneseq
      %v2764 = vshrl.u32 %v2763, 7
      %v2765 = vsub.s32 2, %v2764
      %v2766 = vrot.slane %v2720, %v2765
      %v2767 = vlaneseq
      %v2768 = vshrl.u32 %v2767, 7
      %v2769 = vsub.s32 3, %v2768
      %v2770 = vrot.slane %v2720, %v2769
      %v2771 = vlaneseq
      %v2772 = vshrl.u32 %v2771, 7
      %v2773 = vsub.s32 4, %v2772
      %v2774 = vrot.slane %v2720, %v2773
      %v2775 = vlaneseq
      %v2776 = vshrl.u32 %v2775, 7
      %v2777 = vsub.s32 5, %v2776
      %v2778 = vrot.slane %v2720, %v2777
      %v2779 = vlaneseq
      %v2780 = vshrl.u32 %v2779, 7
      %v2781 = vsub.s32 6, %v2780
      %v2782 = vrot.slane %v2720, %v2781
      %v2783 = vlaneseq
      %v2784 = vshrl.u32 %v2783, 7
      %v2785 = vsub.s32 7, %v2784
      %v2786 = vrot.slane %v2720, %v2785
      %v2803 = vmul.f32 %v2528, %v2726
      %v2804 = vmul.f32 %v2530, %v2730
      %v2805 = vmul.f32 %v2532, %v2734
      %v2806 = vmul.f32 %v2534, %v2738
      %v2807 = vmul.f32 %v2536, %v2742
      %v2808 = vmul.f32 %v2538, %v2746
      %v2809 = vmul.f32 %v2540, %v2750
      %v2810 = vmul.f32 %v2542, %v2754
      %v2811 = vmul.f32 %v2544, %v2758
      %v2812 = vmul.f32 %v2546, %v2762
      %v2813 = vmul.f32 %v2548, %v2766
      %v2814 = vmul.f32 %v2550, %v2770
      %v2815 = vmul.f32 %v2552, %v2774
      %v2816 = vmul.f32 %v2554, %v2778
      %v2817 = vmul.f32 %v2556, %v2782
      %v2818 = vmul.f32 %v2558, %v2786
      %2820 = vset.pattern.permute.xlu0 0
      %2821 = vperm.xlu0 %2820, %v2803
      %v2822 = vpop.permute.xlu0 %2821
      %2825 = vset.pattern.permute.xlu0 0
      %2826 = vperm.xlu0 %2825, %v2804
      %v2827 = vpop.permute.xlu0 %2826
      %2830 = vset.pattern.permute.xlu0 0
      %2831 = vperm.xlu0 %2830, %v2805
      %v2832 = vpop.permute.xlu0 %2831
      %2835 = vset.pattern.permute.xlu0 0
      %2836 = vperm.xlu0 %2835, %v2806
      %v2837 = vpop.permute.xlu0 %2836
      %2840 = vset.pattern.permute.xlu0 0
      %2841 = vperm.xlu0 %2840, %v2807
      %v2842 = vpop.permute.xlu0 %2841
      %2845 = vset.pattern.permute.xlu0 0
      %2846 = vperm.xlu0 %2845, %v2808
      %v2847 = vpop.permute.xlu0 %2846
      %2850 = vset.pattern.permute.xlu0 0
      %2851 = vperm.xlu0 %2850, %v2809
      %v2852 = vpop.permute.xlu0 %2851
      %2855 = vset.pattern.permute.xlu0 0
      %2856 = vperm.xlu0 %2855, %v2810
      %v2857 = vpop.permute.xlu0 %2856
      %2860 = vset.pattern.permute.xlu0 0
      %2861 = vperm.xlu0 %2860, %v2811
      %v2862 = vpop.permute.xlu0 %2861
      %2865 = vset.pattern.permute.xlu0 0
      %2866 = vperm.xlu0 %2865, %v2812
      %v2867 = vpop.permute.xlu0 %2866
      %2870 = vset.pattern.permute.xlu0 0
      %2871 = vperm.xlu0 %2870, %v2813
      %v2872 = vpop.permute.xlu0 %2871
      %2875 = vset.pattern.permute.xlu0 0
      %2876 = vperm.xlu0 %2875, %v2814
      %v2877 = vpop.permute.xlu0 %2876
      %2880 = vset.pattern.permute.xlu0 0
      %2881 = vperm.xlu0 %2880, %v2815
      %v2882 = vpop.permute.xlu0 %2881
      %2885 = vset.pattern.permute.xlu0 0
      %2886 = vperm.xlu0 %2885, %v2816
      %v2887 = vpop.permute.xlu0 %2886
      %2890 = vset.pattern.permute.xlu0 0
      %2891 = vperm.xlu0 %2890, %v2817
      %v2892 = vpop.permute.xlu0 %2891
      %2895 = vset.pattern.permute.xlu0 0
      %2896 = vperm.xlu0 %2895, %v2818
      %v2897 = vpop.permute.xlu0 %2896
      %v2899 = vmul.f32 %v2822, %v1807
      %v2900 = vmul.f32 %v2827, %v1812
      %v2901 = vmul.f32 %v2832, %v1817
      %v2902 = vmul.f32 %v2837, %v1822
      %v2903 = vmul.f32 %v2842, %v1827
      %v2904 = vmul.f32 %v2847, %v1832
      %v2905 = vmul.f32 %v2852, %v1837
      %v2906 = vmul.f32 %v2857, %v1842
      %v2907 = vmul.f32 %v2862, %v1847
      %v2908 = vmul.f32 %v2867, %v1852
      %v2909 = vmul.f32 %v2872, %v1857
      %v2910 = vmul.f32 %v2877, %v1862
      %v2911 = vmul.f32 %v2882, %v1867
      %v2912 = vmul.f32 %v2887, %v1872
      %v2913 = vmul.f32 %v2892, %v1877
      %v2914 = vmul.f32 %v2897, %v1882
      %v2916 = vlaneseq
      %v2917 = vshrl.u32 %v2916, 7
      %v2918 = vsub.s32 0, %v2917
      %v2919 = vrot.slane %v1895, %v2918
      %v2921 = vadd.f32 %v2899, %v2919
      %v2922 = vadd.f32 %v2900, %v2919
      %v2923 = vadd.f32 %v2901, %v2919
      %v2924 = vadd.f32 %v2902, %v2919
      %v2925 = vadd.f32 %v2903, %v2919
      %v2926 = vadd.f32 %v2904, %v2919
      %v2927 = vadd.f32 %v2905, %v2919
      %v2928 = vadd.f32 %v2906, %v2919
      %v2929 = vadd.f32 %v2907, %v2919
      %v2930 = vadd.f32 %v2908, %v2919
      %v2931 = vadd.f32 %v2909, %v2919
      %v2932 = vadd.f32 %v2910, %v2919
      %v2933 = vadd.f32 %v2911, %v2919
      %v2934 = vadd.f32 %v2912, %v2919
      %v2935 = vadd.f32 %v2913, %v2919
      %v2936 = vadd.f32 %v2914, %v2919
      %v2937 = vmax.f32 %v2921, 0.0
      %v2938 = vmax.f32 %v2922, 0.0
      %v2939 = vmax.f32 %v2923, 0.0
      %v2940 = vmax.f32 %v2924, 0.0
      %v2941 = vmax.f32 %v2925, 0.0
      %v2942 = vmax.f32 %v2926, 0.0
      %v2943 = vmax.f32 %v2927, 0.0
      %v2944 = vmax.f32 %v2928, 0.0
      %v2945 = vmax.f32 %v2929, 0.0
      %v2946 = vmax.f32 %v2930, 0.0
      %v2947 = vmax.f32 %v2931, 0.0
      %v2948 = vmax.f32 %v2932, 0.0
      %v2949 = vmax.f32 %v2933, 0.0
      %v2950 = vmax.f32 %v2934, 0.0
      %v2951 = vmax.f32 %v2935, 0.0
      %v2952 = vmax.f32 %v2936, 0.0
      %v2953 = vsel %vm929, %v2937, 0.0
      %v2954 = vrot.slane %v2953, 4
      %v2955 = vadd.f32 %v2953, %v2954
      %v2956 = vrot.slane %v2955, 2
      %v2957 = vadd.f32 %v2955, %v2956
      %v2958 = vrot.slane %v2957, 1
      %v2959 = vadd.f32 %v2957, %v2958
      %v2960 = vsel %vm929, %v2938, 0.0
      %v2961 = vrot.slane %v2960, 4
      %v2962 = vadd.f32 %v2960, %v2961
      %v2963 = vrot.slane %v2962, 2
      %v2964 = vadd.f32 %v2962, %v2963
      %v2965 = vrot.slane %v2964, 1
      %v2966 = vadd.f32 %v2964, %v2965
      %v2967 = vsel %vm929, %v2939, 0.0
      %v2968 = vrot.slane %v2967, 4
      %v2969 = vadd.f32 %v2967, %v2968
      %v2970 = vrot.slane %v2969, 2
      %v2971 = vadd.f32 %v2969, %v2970
      %v2972 = vrot.slane %v2971, 1
      %v2973 = vadd.f32 %v2971, %v2972
      %v2974 = vsel %vm929, %v2940, 0.0
      %v2975 = vrot.slane %v2974, 4
      %v2976 = vadd.f32 %v2974, %v2975
      %v2977 = vrot.slane %v2976, 2
      %v2978 = vadd.f32 %v2976, %v2977
      %v2979 = vrot.slane %v2978, 1
      %v2980 = vadd.f32 %v2978, %v2979
      %v2981 = vsel %vm929, %v2941, 0.0
      %v2982 = vrot.slane %v2981, 4
      %v2983 = vadd.f32 %v2981, %v2982
      %v2984 = vrot.slane %v2983, 2
      %v2985 = vadd.f32 %v2983, %v2984
      %v2986 = vrot.slane %v2985, 1
      %v2987 = vadd.f32 %v2985, %v2986
      %v2988 = vsel %vm929, %v2942, 0.0
      %v2989 = vrot.slane %v2988, 4
      %v2990 = vadd.f32 %v2988, %v2989
      %v2991 = vrot.slane %v2990, 2
      %v2992 = vadd.f32 %v2990, %v2991
      %v2993 = vrot.slane %v2992, 1
      %v2994 = vadd.f32 %v2992, %v2993
      %v2995 = vsel %vm929, %v2943, 0.0
      %v2996 = vrot.slane %v2995, 4
      %v2997 = vadd.f32 %v2995, %v2996
      %v2998 = vrot.slane %v2997, 2
      %v2999 = vadd.f32 %v2997, %v2998
      %v3000 = vrot.slane %v2999, 1
      %v3001 = vadd.f32 %v2999, %v3000
      %v3002 = vsel %vm929, %v2944, 0.0
      %v3003 = vrot.slane %v3002, 4
      %v3004 = vadd.f32 %v3002, %v3003
      %v3005 = vrot.slane %v3004, 2
      %v3006 = vadd.f32 %v3004, %v3005
      %v3007 = vrot.slane %v3006, 1
      %v3008 = vadd.f32 %v3006, %v3007
      %v3009 = vsel %vm929, %v2945, 0.0
      %v3010 = vrot.slane %v3009, 4
      %v3011 = vadd.f32 %v3009, %v3010
      %v3012 = vrot.slane %v3011, 2
      %v3013 = vadd.f32 %v3011, %v3012
      %v3014 = vrot.slane %v3013, 1
      %v3015 = vadd.f32 %v3013, %v3014
      %v3016 = vsel %vm929, %v2946, 0.0
      %v3017 = vrot.slane %v3016, 4
      %v3018 = vadd.f32 %v3016, %v3017
      %v3019 = vrot.slane %v3018, 2
      %v3020 = vadd.f32 %v3018, %v3019
      %v3021 = vrot.slane %v3020, 1
      %v3022 = vadd.f32 %v3020, %v3021
      %v3023 = vsel %vm929, %v2947, 0.0
      %v3024 = vrot.slane %v3023, 4
      %v3025 = vadd.f32 %v3023, %v3024
      %v3026 = vrot.slane %v3025, 2
      %v3027 = vadd.f32 %v3025, %v3026
      %v3028 = vrot.slane %v3027, 1
      %v3029 = vadd.f32 %v3027, %v3028
      %v3030 = vsel %vm929, %v2948, 0.0
      %v3031 = vrot.slane %v3030, 4
      %v3032 = vadd.f32 %v3030, %v3031
      %v3033 = vrot.slane %v3032, 2
      %v3034 = vadd.f32 %v3032, %v3033
      %v3035 = vrot.slane %v3034, 1
      %v3036 = vadd.f32 %v3034, %v3035
      %v3037 = vsel %vm929, %v2949, 0.0
      %v3038 = vrot.slane %v3037, 4
      %v3039 = vadd.f32 %v3037, %v3038
      %v3040 = vrot.slane %v3039, 2
      %v3041 = vadd.f32 %v3039, %v3040
      %v3042 = vrot.slane %v3041, 1
      %v3043 = vadd.f32 %v3041, %v3042
      %v3044 = vsel %vm929, %v2950, 0.0
      %v3045 = vrot.slane %v3044, 4
      %v3046 = vadd.f32 %v3044, %v3045
      %v3047 = vrot.slane %v3046, 2
      %v3048 = vadd.f32 %v3046, %v3047
      %v3049 = vrot.slane %v3048, 1
      %v3050 = vadd.f32 %v3048, %v3049
      %v3051 = vsel %vm929, %v2951, 0.0
      %v3052 = vrot.slane %v3051, 4
      %v3053 = vadd.f32 %v3051, %v3052
      %v3054 = vrot.slane %v3053, 2
      %v3055 = vadd.f32 %v3053, %v3054
      %v3056 = vrot.slane %v3055, 1
      %v3057 = vadd.f32 %v3055, %v3056
      %v3058 = vsel %vm929, %v2952, 0.0
      %v3059 = vrot.slane %v3058, 4
      %v3060 = vadd.f32 %v3058, %v3059
      %v3061 = vrot.slane %v3060, 2
      %v3062 = vadd.f32 %v3060, %v3061
      %v3063 = vrot.slane %v3062, 1
      %v3064 = vadd.f32 %v3062, %v3063
      %v3065 = vsub.f32 0.0, %v2959
      %v3066 = vsub.f32 0.0, %v2966
      %v3067 = vsub.f32 0.0, %v2973
      %v3068 = vsub.f32 0.0, %v2980
      %v3069 = vsub.f32 0.0, %v2987
      %v3070 = vsub.f32 0.0, %v2994
      %v3071 = vsub.f32 0.0, %v3001
      %v3072 = vsub.f32 0.0, %v3008
      %v3073 = vsub.f32 0.0, %v3015
      %v3074 = vsub.f32 0.0, %v3022
      %v3075 = vsub.f32 0.0, %v3029
      %v3076 = vsub.f32 0.0, %v3036
      %v3077 = vsub.f32 0.0, %v3043
      %v3078 = vsub.f32 0.0, %v3050
      %v3079 = vsub.f32 0.0, %v3057
      %v3080 = vsub.f32 0.0, %v3064
      %v3082 = vlaneseq
      %v3083 = vshrl.u32 %v3082, 7
      %v3084 = vsub.s32 0, %v3083
      %v3085 = vrot.slane %v1894, %v3084
      %v3103 = vsel %vm2689, %v3066, %v3065
      %v3104 = vsel %vm2691, %v3067, %v3103
      %v3105 = vsel %vm2693, %v3068, %v3104
      %v3106 = vsel %vm2695, %v3069, %v3105
      %v3107 = vsel %vm2697, %v3070, %v3106
      %v3108 = vsel %vm2699, %v3071, %v3107
      %v3109 = vsel %vm2701, %v3072, %v3108
      %v3110 = vsel %vm2689, %v3074, %v3073
      %v3111 = vsel %vm2691, %v3075, %v3110
      %v3112 = vsel %vm2693, %v3076, %v3111
      %v3113 = vsel %vm2695, %v3077, %v3112
      %v3114 = vsel %vm2697, %v3078, %v3113
      %v3115 = vsel %vm2699, %v3079, %v3114
      %v3116 = vsel %vm2701, %v3080, %v3115
      %v3117 = vsel %vm929, %v3109, 0
      %v3119 = vsel %vm929, %v3116, 0
      %3121 = vmatprep.subr.mxu0 0.0
      %3122 = vmatpush1.msra.mxu0 0.0
      %3123 = vmatprep.subr.mxu0 0.0
      %3124 = vmatpush1.msra.mxu0 0.0
      %3125 = vmatprep.subr.mxu0 0.0
      %3126 = vmatpush1.msra.mxu0 0.0
      %3127 = vmatprep.subr.mxu0 0.0
      %3128 = vmatpush1.msra.mxu0 0.0
      %3129 = vmatprep.subr.mxu0 0.0
      %3130 = vmatpush1.msra.mxu0 0.0
      %3131 = vmatprep.subr.mxu0 0.0
      %3132 = vmatpush1.msra.mxu0 0.0
      %3133 = vmatprep.subr.mxu0 0.0
      %3134 = vmatpush1.msra.mxu0 0.0
      %3135 = vmatprep.subr.mxu0 0.0
      %3136 = vmatpush1.msra.mxu0 0.0
      %3137 = vmatprep.subr.mxu0 0.0
      %3138 = vmatpush1.msra.mxu0 0.0
      %3139 = vmatprep.subr.mxu0 0.0
      %3140 = vmatpush1.msra.mxu0 0.0
      %3141 = vmatprep.subr.mxu0 0.0
      %3142 = vmatpush1.msra.mxu0 0.0
      %3143 = vmatprep.subr.mxu0 0.0
      %3144 = vmatpush1.msra.mxu0 0.0
      %3145 = vmatprep.subr.mxu0 0.0
      %3146 = vmatpush1.msra.mxu0 %v1893
      %3147 = vmatprep.subr.mxu0 0.0
      %3148 = vmatpush1.msra.mxu0 %v1892
      %3149 = vmatprep.subr.mxu0 0.0
      %3150 = vmatpush1.msra.mxu0 %v1891
      %3151 = vmatprep.subr.mxu0 0.0
      %3152 = vmatpush1.msra.mxu0 %v1890
      %3153 = vmatprep.subr.mxu0 0.0
      %3154 = vmatpush2.msra.mxu0 0.0
      %3155 = vmatprep.subr.mxu0 0.0
      %3156 = vmatpush2.msra.mxu0 0.0
      %3157 = vmatprep.subr.mxu0 0.0
      %3158 = vmatpush2.msra.mxu0 0.0
      %3159 = vmatprep.subr.mxu0 0.0
      %3160 = vmatpush2.msra.mxu0 0.0
      %3161 = vmatprep.subr.mxu0 0.0
      %3162 = vmatpush2.msra.mxu0 0.0
      %3163 = vmatprep.subr.mxu0 0.0
      %3164 = vmatpush2.msra.mxu0 0.0
      %3165 = vmatprep.subr.mxu0 0.0
      %3166 = vmatpush2.msra.mxu0 0.0
      %3167 = vmatprep.subr.mxu0 0.0
      %3168 = vmatpush2.msra.mxu0 0.0
      %3169 = vmatprep.subr.mxu0 0.0
      %3170 = vmatpush2.msra.mxu0 0.0
      %3171 = vmatprep.subr.mxu0 0.0
      %3172 = vmatpush2.msra.mxu0 0.0
      %3173 = vmatprep.subr.mxu0 0.0
      %3174 = vmatpush2.msra.mxu0 0.0
      %3175 = vmatprep.subr.mxu0 0.0
      %3176 = vmatpush2.msra.mxu0 0.0
      %3177 = vmatprep.subr.mxu0 0.0
      %3178 = vmatpush2.msra.mxu0 0.0
      %3179 = vmatprep.subr.mxu0 0.0
      %3180 = vmatpush2.msra.mxu0 0.0
      %3181 = vmatprep.subr.mxu0 0.0
      %3182 = vmatpush2.msra.mxu0 0.0
      %3183 = vmatprep.subr.mxu0 0.0
      %3184 = vmatpush2.msra.mxu0 0.0
      %3185 = vmatprep.mubr.f32.mxu0 0.0
      %3186 = vmatmul.mubr.f32.gmra.mxu0 %v3117
      %v3187 = vpop.f32.mrf.mxu0
      %v3188 = vadd.f32 %v3085, %v3187
      %v3189 = vpop.f32.mrf.mxu0
      %3190 = vmatprep.mubr.f32.mxu0 0.0
      %3191 = vmatmul.mubr.f32.gmra.mxu0 %v3119
      %v3192 = vpop.f32.mrf.mxu0
      %v3193 = vadd.f32 %v3085, %v3192
      %v3194 = vpop.f32.mrf.mxu0
      %3195 = vdwg.mxu0
      %v3196 = vxor.u32 %v3188, 2147483648
      %v3197 = vxor.u32 %v3193, 2147483648
      %v3198 = vmul.f32 %v3196, 1.442695
      %v3199 = vpow.pop %v3198
      %v3200 = vmul.f32 %v3197, 1.442695
      %v3201 = vpow.pop %v3200
      %v3202 = vadd.f32 %v3199, 1.0
      %v3203 = vadd.f32 %v3201, 1.0
      %v3204 = vrcp.pop %v3202
      %v3205 = vmul.f32 1.0, %v3204
      %v3206 = vrcp.pop %v3203
      %v3207 = vmul.f32 1.0, %v3206
      %v3208 = vsub.f32 1.0, %v3205
      %v3209 = vsub.f32 1.0, %v3207
      %v3210 = vmul.f32 %v3208, %v821
      %v3211 = vmul.f32 %v3209, %v826
      %v3214 = vmul.f32 %v3205, %v3109
      %v3215 = vmul.f32 %v3207, %v3116
      %v3216 = vadd.f32 %v3210, %v3214
      %v3217 = vadd.f32 %v3211, %v3215
      %v3219 = vsel %vm929, %v3216, 0
      %v3222 = vsel %vm929, %v3217, 0
      %3224 = vmatprep.subr.mxu0 0.0
      %3225 = vmatpush1.msra.mxu0 0.0
      %3226 = vmatprep.subr.mxu0 0.0
      %3227 = vmatpush1.msra.mxu0 0.0
      %3228 = vmatprep.subr.mxu0 0.0
      %3229 = vmatpush1.msra.mxu0 0.0
      %3230 = vmatprep.subr.mxu0 0.0
      %3231 = vmatpush1.msra.mxu0 0.0
      %3232 = vmatprep.subr.mxu0 0.0
      %3233 = vmatpush1.msra.mxu0 0.0
      %3234 = vmatprep.subr.mxu0 0.0
      %3235 = vmatpush1.msra.mxu0 0.0
      %3236 = vmatprep.subr.mxu0 0.0
      %3237 = vmatpush1.msra.mxu0 0.0
      %3238 = vmatprep.subr.mxu0 0.0
      %3239 = vmatpush1.msra.mxu0 0.0
      %3240 = vmatprep.subr.mxu0 0.0
      %3241 = vmatpush1.msra.mxu0 0.0
      %3242 = vmatprep.subr.mxu0 0.0
      %3243 = vmatpush1.msra.mxu0 0.0
      %3244 = vmatprep.subr.mxu0 0.0
      %3245 = vmatpush1.msra.mxu0 0.0
      %3246 = vmatprep.subr.mxu0 0.0
      %3247 = vmatpush1.msra.mxu0 0.0
      %3248 = vmatprep.subr.mxu0 0.0
      %3249 = vmatpush1.msra.mxu0 %v1888
      %3250 = vmatprep.subr.mxu0 0.0
      %3251 = vmatpush1.msra.mxu0 %v1887
      %3252 = vmatprep.subr.mxu0 0.0
      %3253 = vmatpush1.msra.mxu0 %v1886
      %3254 = vmatprep.subr.mxu0 0.0
      %3255 = vmatpush1.msra.mxu0 %v1885
      %3256 = vmatprep.subr.mxu0 0.0
      %3257 = vmatpush2.msra.mxu0 0.0
      %3258 = vmatprep.subr.mxu0 0.0
      %3259 = vmatpush2.msra.mxu0 0.0
      %3260 = vmatprep.subr.mxu0 0.0
      %3261 = vmatpush2.msra.mxu0 0.0
      %3262 = vmatprep.subr.mxu0 0.0
      %3263 = vmatpush2.msra.mxu0 0.0
      %3264 = vmatprep.subr.mxu0 0.0
      %3265 = vmatpush2.msra.mxu0 0.0
      %3266 = vmatprep.subr.mxu0 0.0
      %3267 = vmatpush2.msra.mxu0 0.0
      %3268 = vmatprep.subr.mxu0 0.0
      %3269 = vmatpush2.msra.mxu0 0.0
      %3270 = vmatprep.subr.mxu0 0.0
      %3271 = vmatpush2.msra.mxu0 0.0
      %3272 = vmatprep.subr.mxu0 0.0
      %3273 = vmatpush2.msra.mxu0 0.0
      %3274 = vmatprep.subr.mxu0 0.0
      %3275 = vmatpush2.msra.mxu0 0.0
      %3276 = vmatprep.subr.mxu0 0.0
      %3277 = vmatpush2.msra.mxu0 0.0
      %3278 = vmatprep.subr.mxu0 0.0
      %3279 = vmatpush2.msra.mxu0 0.0
      %3280 = vmatprep.subr.mxu0 0.0
      %3281 = vmatpush2.msra.mxu0 0.0
      %3282 = vmatprep.subr.mxu0 0.0
      %3283 = vmatpush2.msra.mxu0 0.0
      %3284 = vmatprep.subr.mxu0 0.0
      %3285 = vmatpush2.msra.mxu0 0.0
      %3286 = vmatprep.subr.mxu0 0.0
      %3287 = vmatpush2.msra.mxu0 0.0
      %3288 = vmatprep.mubr.f32.mxu0 0.0
      %3289 = vmatmul.mubr.f32.gmra.mxu0 %v3219
      %v3290 = vpop.f32.mrf.mxu0
      %v3291 = vadd.f32 %v1900, %v3290
      %v3292 = vpop.f32.mrf.mxu0
      %3293 = vmatprep.mubr.f32.mxu0 0.0
      %3294 = vmatmul.mubr.f32.gmra.mxu0 %v3222
      %v3295 = vpop.f32.mrf.mxu0
      %v3296 = vadd.f32 %v1900, %v3295
      %v3297 = vpop.f32.mrf.mxu0
      %3298 = vdwg.mxu0
      %v3301 = vcombine.high %v3291, %v3291
      %v3303 = vunpack.c.l.s4 1966171168
      %v3304 = vunpack.c.0.s8 %v3303
      %v3305 = vlaneseq
      %v3306 = vshrl.u32 %v3305, 7
      %v3307 = vsub.s32 %v3304, %v3306
      %v3308 = vrot.slane %v3291, %v3307
      %v3310 = vunpack.c.l.s4 1966171168
      %v3311 = vunpack.c.0.s8 %v3310
      %v3312 = vlaneseq
      %v3313 = vshrl.u32 %v3312, 7
      %v3314 = vsub.s32 %v3311, %v3313
      %v3315 = vrot.slane %v3301, %v3314
      %v3316 = vcombine.high %v3308, %v3308
      %v3317 = vcombine.high %v3315, %v3315
      %v3319 = vunpack.c.l.s4 1966171168
      %v3320 = vunpack.c.0.s8 %v3319
      %v3321 = vlaneseq
      %v3322 = vshrl.u32 %v3321, 7
      %v3323 = vsub.s32 %v3320, %v3322
      %v3324 = vrot.slane %v3308, %v3323
      %v3326 = vunpack.c.l.s4 1966171168
      %v3327 = vunpack.c.0.s8 %v3326
      %v3328 = vlaneseq
      %v3329 = vshrl.u32 %v3328, 7
      %v3330 = vsub.s32 %v3327, %v3329
      %v3331 = vrot.slane %v3315, %v3330
      %v3333 = vunpack.c.l.s4 1966171168
      %v3334 = vunpack.c.0.s8 %v3333
      %v3335 = vlaneseq
      %v3336 = vshrl.u32 %v3335, 7
      %v3337 = vsub.s32 %v3334, %v3336
      %v3338 = vrot.slane %v3316, %v3337
      %v3340 = vunpack.c.l.s4 1966171168
      %v3341 = vunpack.c.0.s8 %v3340
      %v3342 = vlaneseq
      %v3343 = vshrl.u32 %v3342, 7
      %v3344 = vsub.s32 %v3341, %v3343
      %v3345 = vrot.slane %v3317, %v3344
      %v3346 = vcombine.high %v3324, %v3324
      %v3347 = vcombine.high %v3331, %v3331
      %v3348 = vcombine.high %v3338, %v3338
      %v3349 = vcombine.high %v3345, %v3345
      %v3350 = vcombine.high %v3296, %v3296
      %v3352 = vunpack.c.l.s4 1966171168
      %v3353 = vunpack.c.0.s8 %v3352
      %v3354 = vlaneseq
      %v3355 = vshrl.u32 %v3354, 7
      %v3356 = vsub.s32 %v3353, %v3355
      %v3357 = vrot.slane %v3296, %v3356
      %v3359 = vunpack.c.l.s4 1966171168
      %v3360 = vunpack.c.0.s8 %v3359
      %v3361 = vlaneseq
      %v3362 = vshrl.u32 %v3361, 7
      %v3363 = vsub.s32 %v3360, %v3362
      %v3364 = vrot.slane %v3350, %v3363
      %v3365 = vcombine.high %v3357, %v3357
      %v3366 = vcombine.high %v3364, %v3364
      %v3368 = vunpack.c.l.s4 1966171168
      %v3369 = vunpack.c.0.s8 %v3368
      %v3370 = vlaneseq
      %v3371 = vshrl.u32 %v3370, 7
      %v3372 = vsub.s32 %v3369, %v3371
      %v3373 = vrot.slane %v3357, %v3372
      %v3375 = vunpack.c.l.s4 1966171168
      %v3376 = vunpack.c.0.s8 %v3375
      %v3377 = vlaneseq
      %v3378 = vshrl.u32 %v3377, 7
      %v3379 = vsub.s32 %v3376, %v3378
      %v3380 = vrot.slane %v3364, %v3379
      %v3382 = vunpack.c.l.s4 1966171168
      %v3383 = vunpack.c.0.s8 %v3382
      %v3384 = vlaneseq
      %v3385 = vshrl.u32 %v3384, 7
      %v3386 = vsub.s32 %v3383, %v3385
      %v3387 = vrot.slane %v3365, %v3386
      %v3389 = vunpack.c.l.s4 1966171168
      %v3390 = vunpack.c.0.s8 %v3389
      %v3391 = vlaneseq
      %v3392 = vshrl.u32 %v3391, 7
      %v3393 = vsub.s32 %v3390, %v3392
      %v3394 = vrot.slane %v3366, %v3393
      %v3395 = vcombine.high %v3373, %v3373
      %v3396 = vcombine.high %v3380, %v3380
      %v3397 = vcombine.high %v3387, %v3387
      %v3398 = vcombine.high %v3394, %v3394
      %v3399 = vlaneseq
      %v3400 = vshrl.u32 %v3399, 7
      %v3401 = vsub.s32 0, %v3400
      %v3402 = vrot.slane %v3324, %v3401
      %v3403 = vlaneseq
      %v3404 = vshrl.u32 %v3403, 7
      %v3405 = vsub.s32 0, %v3404
      %v3406 = vrot.slane %v3338, %v3405
      %v3407 = vlaneseq
      %v3408 = vshrl.u32 %v3407, 7
      %v3409 = vsub.s32 0, %v3408
      %v3410 = vrot.slane %v3346, %v3409
      %v3411 = vlaneseq
      %v3412 = vshrl.u32 %v3411, 7
      %v3413 = vsub.s32 0, %v3412
      %v3414 = vrot.slane %v3348, %v3413
      %v3415 = vlaneseq
      %v3416 = vshrl.u32 %v3415, 7
      %v3417 = vsub.s32 0, %v3416
      %v3418 = vrot.slane %v3331, %v3417
      %v3419 = vlaneseq
      %v3420 = vshrl.u32 %v3419, 7
      %v3421 = vsub.s32 0, %v3420
      %v3422 = vrot.slane %v3345, %v3421
      %v3423 = vlaneseq
      %v3424 = vshrl.u32 %v3423, 7
      %v3425 = vsub.s32 0, %v3424
      %v3426 = vrot.slane %v3347, %v3425
      %v3427 = vlaneseq
      %v3428 = vshrl.u32 %v3427, 7
      %v3429 = vsub.s32 0, %v3428
      %v3430 = vrot.slane %v3349, %v3429
      %v3431 = vlaneseq
      %v3432 = vshrl.u32 %v3431, 7
      %v3433 = vsub.s32 0, %v3432
      %v3434 = vrot.slane %v3373, %v3433
      %v3435 = vlaneseq
      %v3436 = vshrl.u32 %v3435, 7
      %v3437 = vsub.s32 0, %v3436
      %v3438 = vrot.slane %v3387, %v3437
      %v3439 = vlaneseq
      %v3440 = vshrl.u32 %v3439, 7
      %v3441 = vsub.s32 0, %v3440
      %v3442 = vrot.slane %v3395, %v3441
      %v3443 = vlaneseq
      %v3444 = vshrl.u32 %v3443, 7
      %v3445 = vsub.s32 0, %v3444
      %v3446 = vrot.slane %v3397, %v3445
      %v3447 = vlaneseq
      %v3448 = vshrl.u32 %v3447, 7
      %v3449 = vsub.s32 0, %v3448
      %v3450 = vrot.slane %v3380, %v3449
      %v3451 = vlaneseq
      %v3452 = vshrl.u32 %v3451, 7
      %v3453 = vsub.s32 0, %v3452
      %v3454 = vrot.slane %v3394, %v3453
      %v3455 = vlaneseq
      %v3456 = vshrl.u32 %v3455, 7
      %v3457 = vsub.s32 0, %v3456
      %v3458 = vrot.slane %v3396, %v3457
      %v3459 = vlaneseq
      %v3460 = vshrl.u32 %v3459, 7
      %v3461 = vsub.s32 0, %v3460
      %v3462 = vrot.slane %v3398, %v3461
      %v3479 = vmul.f32 %v1045, %v3402
      %v3480 = vmul.f32 %v1050, %v3406
      %v3481 = vmul.f32 %v1055, %v3410
      %v3482 = vmul.f32 %v1060, %v3414
      %v3483 = vmul.f32 %v1065, %v3418
      %v3484 = vmul.f32 %v1070, %v3422
      %v3485 = vmul.f32 %v1075, %v3426
      %v3486 = vmul.f32 %v1080, %v3430
      %v3487 = vmul.f32 %v1085, %v3434
      %v3488 = vmul.f32 %v1090, %v3438
      %v3489 = vmul.f32 %v1095, %v3442
      %v3490 = vmul.f32 %v1100, %v3446
      %v3491 = vmul.f32 %v1105, %v3450
      %v3492 = vmul.f32 %v1110, %v3454
      %v3493 = vmul.f32 %v1115, %v3458
      %v3494 = vmul.f32 %v1120, %v3462
      %v3495 = vsel %vm929, %v3479, 0.0
      %3496 = vadd.xlane.f32.xlu0 %v3495
      %v3497 = vpop.xlane.xlu0 %3496
      %v3498 = vsel %vm929, %v3480, 0.0
      %3499 = vadd.xlane.f32.xlu0 %v3498
      %v3500 = vpop.xlane.xlu0 %3499
      %v3501 = vsel %vm929, %v3481, 0.0
      %3502 = vadd.xlane.f32.xlu0 %v3501
      %v3503 = vpop.xlane.xlu0 %3502
      %v3504 = vsel %vm929, %v3482, 0.0
      %3505 = vadd.xlane.f32.xlu0 %v3504
      %v3506 = vpop.xlane.xlu0 %3505
      %v3507 = vsel %vm929, %v3483, 0.0
      %3508 = vadd.xlane.f32.xlu0 %v3507
      %v3509 = vpop.xlane.xlu0 %3508
      %v3510 = vsel %vm929, %v3484, 0.0
      %3511 = vadd.xlane.f32.xlu0 %v3510
      %v3512 = vpop.xlane.xlu0 %3511
      %v3513 = vsel %vm929, %v3485, 0.0
      %3514 = vadd.xlane.f32.xlu0 %v3513
      %v3515 = vpop.xlane.xlu0 %3514
      %v3516 = vsel %vm929, %v3486, 0.0
      %3517 = vadd.xlane.f32.xlu0 %v3516
      %v3518 = vpop.xlane.xlu0 %3517
      %v3519 = vsel %vm929, %v3487, 0.0
      %3520 = vadd.xlane.f32.xlu0 %v3519
      %v3521 = vpop.xlane.xlu0 %3520
      %v3522 = vsel %vm929, %v3488, 0.0
      %3523 = vadd.xlane.f32.xlu0 %v3522
      %v3524 = vpop.xlane.xlu0 %3523
      %v3525 = vsel %vm929, %v3489, 0.0
      %3526 = vadd.xlane.f32.xlu0 %v3525
      %v3527 = vpop.xlane.xlu0 %3526
      %v3528 = vsel %vm929, %v3490, 0.0
      %3529 = vadd.xlane.f32.xlu0 %v3528
      %v3530 = vpop.xlane.xlu0 %3529
      %v3531 = vsel %vm929, %v3491, 0.0
      %3532 = vadd.xlane.f32.xlu0 %v3531
      %v3533 = vpop.xlane.xlu0 %3532
      %v3534 = vsel %vm929, %v3492, 0.0
      %3535 = vadd.xlane.f32.xlu0 %v3534
      %v3536 = vpop.xlane.xlu0 %3535
      %v3537 = vsel %vm929, %v3493, 0.0
      %3538 = vadd.xlane.f32.xlu0 %v3537
      %v3539 = vpop.xlane.xlu0 %3538
      %v3540 = vsel %vm929, %v3494, 0.0
      %3541 = vadd.xlane.f32.xlu0 %v3540
      %v3542 = vpop.xlane.xlu0 %3541
      %v3543 = vmul.f32 %v3291, %v3291
      %v3544 = vmul.f32 %v3296, %v3296
      %v3545 = vsel %vm929, %v3543, 0.0
      %3546 = vadd.xlane.f32.xlu0 %v3545
      %v3547 = vpop.xlane.xlu0 %3546
      %v3548 = vsel %vm929, %v3544, 0.0
      %3549 = vadd.xlane.f32.xlu0 %v3548
      %v3550 = vpop.xlane.xlu0 %3549
      %v3551 = vmul.f32 %v3497, 2.0
      %v3552 = vmul.f32 %v3500, 2.0
      %v3553 = vmul.f32 %v3503, 2.0
      %v3554 = vmul.f32 %v3506, 2.0
      %v3555 = vmul.f32 %v3509, 2.0
      %v3556 = vmul.f32 %v3512, 2.0
      %v3557 = vmul.f32 %v3515, 2.0
      %v3558 = vmul.f32 %v3518, 2.0
      %v3559 = vmul.f32 %v3521, 2.0
      %v3560 = vmul.f32 %v3524, 2.0
      %v3561 = vmul.f32 %v3527, 2.0
      %v3562 = vmul.f32 %v3530, 2.0
      %v3563 = vmul.f32 %v3533, 2.0
      %v3564 = vmul.f32 %v3536, 2.0
      %v3565 = vmul.f32 %v3539, 2.0
      %v3566 = vmul.f32 %v3542, 2.0
      %v3567 = vadd.f32 %v1141, %v3551
      %v3568 = vadd.f32 %v1144, %v3552
      %v3569 = vadd.f32 %v1147, %v3553
      %v3570 = vadd.f32 %v1150, %v3554
      %v3571 = vadd.f32 %v1153, %v3555
      %v3572 = vadd.f32 %v1156, %v3556
      %v3573 = vadd.f32 %v1159, %v3557
      %v3574 = vadd.f32 %v1162, %v3558
      %v3575 = vadd.f32 %v1165, %v3559
      %v3576 = vadd.f32 %v1168, %v3560
      %v3577 = vadd.f32 %v1171, %v3561
      %v3578 = vadd.f32 %v1174, %v3562
      %v3579 = vadd.f32 %v1177, %v3563
      %v3580 = vadd.f32 %v1180, %v3564
      %v3581 = vadd.f32 %v1183, %v3565
      %v3582 = vadd.f32 %v1186, %v3566
      %v3585 = vlaneseq
      %v3586 = vshrl.u32 %v3585, 7
      %v3587 = vsub.s32 0, %v3586
      %v3588 = vrot.slane %v3547, %v3587
      %v3589 = vlaneseq
      %v3590 = vshrl.u32 %v3589, 7
      %v3591 = vsub.s32 1, %v3590
      %v3592 = vrot.slane %v3547, %v3591
      %v3593 = vlaneseq
      %v3594 = vshrl.u32 %v3593, 7
      %v3595 = vsub.s32 2, %v3594
      %v3596 = vrot.slane %v3547, %v3595
      %v3597 = vlaneseq
      %v3598 = vshrl.u32 %v3597, 7
      %v3599 = vsub.s32 3, %v3598
      %v3600 = vrot.slane %v3547, %v3599
      %v3601 = vlaneseq
      %v3602 = vshrl.u32 %v3601, 7
      %v3603 = vsub.s32 4, %v3602
      %v3604 = vrot.slane %v3547, %v3603
      %v3605 = vlaneseq
      %v3606 = vshrl.u32 %v3605, 7
      %v3607 = vsub.s32 5, %v3606
      %v3608 = vrot.slane %v3547, %v3607
      %v3609 = vlaneseq
      %v3610 = vshrl.u32 %v3609, 7
      %v3611 = vsub.s32 6, %v3610
      %v3612 = vrot.slane %v3547, %v3611
      %v3613 = vlaneseq
      %v3614 = vshrl.u32 %v3613, 7
      %v3615 = vsub.s32 7, %v3614
      %v3616 = vrot.slane %v3547, %v3615
      %v3617 = vlaneseq
      %v3618 = vshrl.u32 %v3617, 7
      %v3619 = vsub.s32 0, %v3618
      %v3620 = vrot.slane %v3550, %v3619
      %v3621 = vlaneseq
      %v3622 = vshrl.u32 %v3621, 7
      %v3623 = vsub.s32 1, %v3622
      %v3624 = vrot.slane %v3550, %v3623
      %v3625 = vlaneseq
      %v3626 = vshrl.u32 %v3625, 7
      %v3627 = vsub.s32 2, %v3626
      %v3628 = vrot.slane %v3550, %v3627
      %v3629 = vlaneseq
      %v3630 = vshrl.u32 %v3629, 7
      %v3631 = vsub.s32 3, %v3630
      %v3632 = vrot.slane %v3550, %v3631
      %v3633 = vlaneseq
      %v3634 = vshrl.u32 %v3633, 7
      %v3635 = vsub.s32 4, %v3634
      %v3636 = vrot.slane %v3550, %v3635
      %v3637 = vlaneseq
      %v3638 = vshrl.u32 %v3637, 7
      %v3639 = vsub.s32 5, %v3638
      %v3640 = vrot.slane %v3550, %v3639
      %v3641 = vlaneseq
      %v3642 = vshrl.u32 %v3641, 7
      %v3643 = vsub.s32 6, %v3642
      %v3644 = vrot.slane %v3550, %v3643
      %v3645 = vlaneseq
      %v3646 = vshrl.u32 %v3645, 7
      %v3647 = vsub.s32 7, %v3646
      %v3648 = vrot.slane %v3550, %v3647
      %v3665 = vadd.f32 %v3567, %v3588
      %v3666 = vadd.f32 %v3568, %v3592
      %v3667 = vadd.f32 %v3569, %v3596
      %v3668 = vadd.f32 %v3570, %v3600
      %v3669 = vadd.f32 %v3571, %v3604
      %v3670 = vadd.f32 %v3572, %v3608
      %v3671 = vadd.f32 %v3573, %v3612
      %v3672 = vadd.f32 %v3574, %v3616
      %v3673 = vadd.f32 %v3575, %v3620
      %v3674 = vadd.f32 %v3576, %v3624
      %v3675 = vadd.f32 %v3577, %v3628
      %v3676 = vadd.f32 %v3578, %v3632
      %v3677 = vadd.f32 %v3579, %v3636
      %v3678 = vadd.f32 %v3580, %v3640
      %v3679 = vadd.f32 %v3581, %v3644
      %v3680 = vadd.f32 %v3582, %v3648
      %v3681 = vsub.f32 0.0, %v3665
      %v3682 = vsub.f32 0.0, %v3666
      %v3683 = vsub.f32 0.0, %v3667
      %v3684 = vsub.f32 0.0, %v3668
      %v3685 = vsub.f32 0.0, %v3669
      %v3686 = vsub.f32 0.0, %v3670
      %v3687 = vsub.f32 0.0, %v3671
      %v3688 = vsub.f32 0.0, %v3672
      %v3689 = vsub.f32 0.0, %v3673
      %v3690 = vsub.f32 0.0, %v3674
      %v3691 = vsub.f32 0.0, %v3675
      %v3692 = vsub.f32 0.0, %v3676
      %v3693 = vsub.f32 0.0, %v3677
      %v3694 = vsub.f32 0.0, %v3678
      %v3695 = vsub.f32 0.0, %v3679
      %v3696 = vsub.f32 0.0, %v3680
      %v3697 = vmul.f32 %v3681, %v2389
      %v3698 = vmul.f32 %v3682, %v2396
      %v3699 = vmul.f32 %v3683, %v2403
      %v3700 = vmul.f32 %v3684, %v2410
      %v3701 = vmul.f32 %v3685, %v2417
      %v3702 = vmul.f32 %v3686, %v2424
      %v3703 = vmul.f32 %v3687, %v2431
      %v3704 = vmul.f32 %v3688, %v2438
      %v3705 = vmul.f32 %v3689, %v2445
      %v3706 = vmul.f32 %v3690, %v2452
      %v3707 = vmul.f32 %v3691, %v2459
      %v3708 = vmul.f32 %v3692, %v2466
      %v3709 = vmul.f32 %v3693, %v2473
      %v3710 = vmul.f32 %v3694, %v2480
      %v3711 = vmul.f32 %v3695, %v2487
      %v3712 = vmul.f32 %v3696, %v2494
      %v3713 = vmul.f32 %v3697, 1.442695
      %v3714 = vpow.pop %v3713
      %v3715 = vmul.f32 %v3698, 1.442695
      %v3716 = vpow.pop %v3715
      %v3717 = vmul.f32 %v3699, 1.442695
      %v3718 = vpow.pop %v3717
      %v3719 = vmul.f32 %v3700, 1.442695
      %v3720 = vpow.pop %v3719
      %v3721 = vmul.f32 %v3701, 1.442695
      %v3722 = vpow.pop %v3721
      %v3723 = vmul.f32 %v3702, 1.442695
      %v3724 = vpow.pop %v3723
      %v3725 = vmul.f32 %v3703, 1.442695
      %v3726 = vpow.pop %v3725
      %v3727 = vmul.f32 %v3704, 1.442695
      %v3728 = vpow.pop %v3727
      %v3729 = vmul.f32 %v3705, 1.442695
      %v3730 = vpow.pop %v3729
      %v3731 = vmul.f32 %v3706, 1.442695
      %v3732 = vpow.pop %v3731
      %v3733 = vmul.f32 %v3707, 1.442695
      %v3734 = vpow.pop %v3733
      %v3735 = vmul.f32 %v3708, 1.442695
      %v3736 = vpow.pop %v3735
      %v3737 = vmul.f32 %v3709, 1.442695
      %v3738 = vpow.pop %v3737
      %v3739 = vmul.f32 %v3710, 1.442695
      %v3740 = vpow.pop %v3739
      %v3741 = vmul.f32 %v3711, 1.442695
      %v3742 = vpow.pop %v3741
      %v3743 = vmul.f32 %v3712, 1.442695
      %v3744 = vpow.pop %v3743
      %3761 = vset.pattern.permute.xlu0 0
      %3762 = vperm.xlu0 %3761, %v3714
      %v3763 = vpop.permute.xlu0 %3762
      %3764 = vset.pattern.permute.xlu0 0
      %3765 = vperm.xlu0 %3764, %v3716
      %v3766 = vpop.permute.xlu0 %3765
      %3767 = vset.pattern.permute.xlu0 0
      %3768 = vperm.xlu0 %3767, %v3718
      %v3769 = vpop.permute.xlu0 %3768
      %3770 = vset.pattern.permute.xlu0 0
      %3771 = vperm.xlu0 %3770, %v3720
      %v3772 = vpop.permute.xlu0 %3771
      %3773 = vset.pattern.permute.xlu0 0
      %3774 = vperm.xlu0 %3773, %v3722
      %v3775 = vpop.permute.xlu0 %3774
      %3776 = vset.pattern.permute.xlu0 0
      %3777 = vperm.xlu0 %3776, %v3724
      %v3778 = vpop.permute.xlu0 %3777
      %3779 = vset.pattern.permute.xlu0 0
      %3780 = vperm.xlu0 %3779, %v3726
      %v3781 = vpop.permute.xlu0 %3780
      %3782 = vset.pattern.permute.xlu0 0
      %3783 = vperm.xlu0 %3782, %v3728
      %v3784 = vpop.permute.xlu0 %3783
      %3785 = vset.pattern.permute.xlu0 0
      %3786 = vperm.xlu0 %3785, %v3730
      %v3787 = vpop.permute.xlu0 %3786
      %3788 = vset.pattern.permute.xlu0 0
      %3789 = vperm.xlu0 %3788, %v3732
      %v3790 = vpop.permute.xlu0 %3789
      %3791 = vset.pattern.permute.xlu0 0
      %3792 = vperm.xlu0 %3791, %v3734
      %v3793 = vpop.permute.xlu0 %3792
      %3794 = vset.pattern.permute.xlu0 0
      %3795 = vperm.xlu0 %3794, %v3736
      %v3796 = vpop.permute.xlu0 %3795
      %3797 = vset.pattern.permute.xlu0 0
      %3798 = vperm.xlu0 %3797, %v3738
      %v3799 = vpop.permute.xlu0 %3798
      %3800 = vset.pattern.permute.xlu0 0
      %3801 = vperm.xlu0 %3800, %v3740
      %v3802 = vpop.permute.xlu0 %3801
      %3803 = vset.pattern.permute.xlu0 0
      %3804 = vperm.xlu0 %3803, %v3742
      %v3805 = vpop.permute.xlu0 %3804
      %3806 = vset.pattern.permute.xlu0 0
      %3807 = vperm.xlu0 %3806, %v3744
      %v3808 = vpop.permute.xlu0 %3807
      %v3809 = vlaneseq
      %v3810 = vshrl.u32 %v3809, 7
      %v3811 = vsub.s32 %v2624, %v3810
      %v3812 = vrot.slane %v3763, %v3811
      %v3813 = vlaneseq
      %v3814 = vshrl.u32 %v3813, 7
      %v3815 = vsub.s32 %v2624, %v3814
      %v3816 = vrot.slane %v3766, %v3815
      %v3817 = vlaneseq
      %v3818 = vshrl.u32 %v3817, 7
      %v3819 = vsub.s32 %v2624, %v3818
      %v3820 = vrot.slane %v3769, %v3819
      %v3821 = vlaneseq
      %v3822 = vshrl.u32 %v3821, 7
      %v3823 = vsub.s32 %v2624, %v3822
      %v3824 = vrot.slane %v3772, %v3823
      %v3825 = vlaneseq
      %v3826 = vshrl.u32 %v3825, 7
      %v3827 = vsub.s32 %v2624, %v3826
      %v3828 = vrot.slane %v3775, %v3827
      %v3829 = vlaneseq
      %v3830 = vshrl.u32 %v3829, 7
      %v3831 = vsub.s32 %v2624, %v3830
      %v3832 = vrot.slane %v3778, %v3831
      %v3833 = vlaneseq
      %v3834 = vshrl.u32 %v3833, 7
      %v3835 = vsub.s32 %v2624, %v3834
      %v3836 = vrot.slane %v3781, %v3835
      %v3837 = vlaneseq
      %v3838 = vshrl.u32 %v3837, 7
      %v3839 = vsub.s32 %v2624, %v3838
      %v3840 = vrot.slane %v3784, %v3839
      %v3841 = vlaneseq
      %v3842 = vshrl.u32 %v3841, 7
      %v3843 = vsub.s32 %v2624, %v3842
      %v3844 = vrot.slane %v3787, %v3843
      %v3845 = vlaneseq
      %v3846 = vshrl.u32 %v3845, 7
      %v3847 = vsub.s32 %v2624, %v3846
      %v3848 = vrot.slane %v3790, %v3847
      %v3849 = vlaneseq
      %v3850 = vshrl.u32 %v3849, 7
      %v3851 = vsub.s32 %v2624, %v3850
      %v3852 = vrot.slane %v3793, %v3851
      %v3853 = vlaneseq
      %v3854 = vshrl.u32 %v3853, 7
      %v3855 = vsub.s32 %v2624, %v3854
      %v3856 = vrot.slane %v3796, %v3855
      %v3857 = vlaneseq
      %v3858 = vshrl.u32 %v3857, 7
      %v3859 = vsub.s32 %v2624, %v3858
      %v3860 = vrot.slane %v3799, %v3859
      %v3861 = vlaneseq
      %v3862 = vshrl.u32 %v3861, 7
      %v3863 = vsub.s32 %v2624, %v3862
      %v3864 = vrot.slane %v3802, %v3863
      %v3865 = vlaneseq
      %v3866 = vshrl.u32 %v3865, 7
      %v3867 = vsub.s32 %v2624, %v3866
      %v3868 = vrot.slane %v3805, %v3867
      %v3869 = vlaneseq
      %v3870 = vshrl.u32 %v3869, 7
      %v3871 = vsub.s32 %v2624, %v3870
      %v3872 = vrot.slane %v3808, %v3871
      %v3873 = vsel %vm2689, %v3816, %v3812
      %v3874 = vsel %vm2691, %v3820, %v3873
      %v3875 = vsel %vm2693, %v3824, %v3874
      %v3876 = vsel %vm2695, %v3828, %v3875
      %v3877 = vsel %vm2697, %v3832, %v3876
      %v3878 = vsel %vm2699, %v3836, %v3877
      %v3879 = vsel %vm2701, %v3840, %v3878
      %v3880 = vsel %vm2689, %v3848, %v3844
      %v3881 = vsel %vm2691, %v3852, %v3880
      %v3882 = vsel %vm2693, %v3856, %v3881
      %v3883 = vsel %vm2695, %v3860, %v3882
      %v3884 = vsel %vm2697, %v3864, %v3883
      %v3885 = vsel %vm2699, %v3868, %v3884
      %v3886 = vsel %vm2701, %v3872, %v3885
      %v3889 = vsel %vm2712, %v3879, 0.0
      %3890 = vadd.xlane.f32.xlu0 %v3889
      %v3891 = vpop.xlane.xlu0 %3890
      %v3892 = vsel %vm2712, %v3886, 0.0
      %3893 = vadd.xlane.f32.xlu0 %v3892
      %v3894 = vpop.xlane.xlu0 %3893
      %v3895 = vrcp.pop %v3891
      %v3896 = vrcp.pop %v3894
      %v3899 = vlaneseq
      %v3900 = vshrl.u32 %v3899, 7
      %v3901 = vsub.s32 0, %v3900
      %v3902 = vrot.slane %v3895, %v3901
      %v3903 = vlaneseq
      %v3904 = vshrl.u32 %v3903, 7
      %v3905 = vsub.s32 1, %v3904
      %v3906 = vrot.slane %v3895, %v3905
      %v3907 = vlaneseq
      %v3908 = vshrl.u32 %v3907, 7
      %v3909 = vsub.s32 2, %v3908
      %v3910 = vrot.slane %v3895, %v3909
      %v3911 = vlaneseq
      %v3912 = vshrl.u32 %v3911, 7
      %v3913 = vsub.s32 3, %v3912
      %v3914 = vrot.slane %v3895, %v3913
      %v3915 = vlaneseq
      %v3916 = vshrl.u32 %v3915, 7
      %v3917 = vsub.s32 4, %v3916
      %v3918 = vrot.slane %v3895, %v3917
      %v3919 = vlaneseq
      %v3920 = vshrl.u32 %v3919, 7
      %v3921 = vsub.s32 5, %v3920
      %v3922 = vrot.slane %v3895, %v3921
      %v3923 = vlaneseq
      %v3924 = vshrl.u32 %v3923, 7
      %v3925 = vsub.s32 6, %v3924
      %v3926 = vrot.slane %v3895, %v3925
      %v3927 = vlaneseq
      %v3928 = vshrl.u32 %v3927, 7
      %v3929 = vsub.s32 7, %v3928
      %v3930 = vrot.slane %v3895, %v3929
      %v3931 = vlaneseq
      %v3932 = vshrl.u32 %v3931, 7
      %v3933 = vsub.s32 0, %v3932
      %v3934 = vrot.slane %v3896, %v3933
      %v3935 = vlaneseq
      %v3936 = vshrl.u32 %v3935, 7
      %v3937 = vsub.s32 1, %v3936
      %v3938 = vrot.slane %v3896, %v3937
      %v3939 = vlaneseq
      %v3940 = vshrl.u32 %v3939, 7
      %v3941 = vsub.s32 2, %v3940
      %v3942 = vrot.slane %v3896, %v3941
      %v3943 = vlaneseq
      %v3944 = vshrl.u32 %v3943, 7
      %v3945 = vsub.s32 3, %v3944
      %v3946 = vrot.slane %v3896, %v3945
      %v3947 = vlaneseq
      %v3948 = vshrl.u32 %v3947, 7
      %v3949 = vsub.s32 4, %v3948
      %v3950 = vrot.slane %v3896, %v3949
      %v3951 = vlaneseq
      %v3952 = vshrl.u32 %v3951, 7
      %v3953 = vsub.s32 5, %v3952
      %v3954 = vrot.slane %v3896, %v3953
      %v3955 = vlaneseq
      %v3956 = vshrl.u32 %v3955, 7
      %v3957 = vsub.s32 6, %v3956
      %v3958 = vrot.slane %v3896, %v3957
      %v3959 = vlaneseq
      %v3960 = vshrl.u32 %v3959, 7
      %v3961 = vsub.s32 7, %v3960
      %v3962 = vrot.slane %v3896, %v3961
      %v3979 = vmul.f32 %v3714, %v3902
      %v3980 = vmul.f32 %v3716, %v3906
      %v3981 = vmul.f32 %v3718, %v3910
      %v3982 = vmul.f32 %v3720, %v3914
      %v3983 = vmul.f32 %v3722, %v3918
      %v3984 = vmul.f32 %v3724, %v3922
      %v3985 = vmul.f32 %v3726, %v3926
      %v3986 = vmul.f32 %v3728, %v3930
      %v3987 = vmul.f32 %v3730, %v3934
      %v3988 = vmul.f32 %v3732, %v3938
      %v3989 = vmul.f32 %v3734, %v3942
      %v3990 = vmul.f32 %v3736, %v3946
      %v3991 = vmul.f32 %v3738, %v3950
      %v3992 = vmul.f32 %v3740, %v3954
      %v3993 = vmul.f32 %v3742, %v3958
      %v3994 = vmul.f32 %v3744, %v3962
      %3996 = vset.pattern.permute.xlu0 0
      %3997 = vperm.xlu0 %3996, %v3979
      %v3998 = vpop.permute.xlu0 %3997
      %4001 = vset.pattern.permute.xlu0 0
      %4002 = vperm.xlu0 %4001, %v3980
      %v4003 = vpop.permute.xlu0 %4002
      %4006 = vset.pattern.permute.xlu0 0
      %4007 = vperm.xlu0 %4006, %v3981
      %v4008 = vpop.permute.xlu0 %4007
      %4011 = vset.pattern.permute.xlu0 0
      %4012 = vperm.xlu0 %4011, %v3982
      %v4013 = vpop.permute.xlu0 %4012
      %4016 = vset.pattern.permute.xlu0 0
      %4017 = vperm.xlu0 %4016, %v3983
      %v4018 = vpop.permute.xlu0 %4017
      %4021 = vset.pattern.permute.xlu0 0
      %4022 = vperm.xlu0 %4021, %v3984
      %v4023 = vpop.permute.xlu0 %4022
      %4026 = vset.pattern.permute.xlu0 0
      %4027 = vperm.xlu0 %4026, %v3985
      %v4028 = vpop.permute.xlu0 %4027
      %4031 = vset.pattern.permute.xlu0 0
      %4032 = vperm.xlu0 %4031, %v3986
      %v4033 = vpop.permute.xlu0 %4032
      %4036 = vset.pattern.permute.xlu0 0
      %4037 = vperm.xlu0 %4036, %v3987
      %v4038 = vpop.permute.xlu0 %4037
      %4041 = vset.pattern.permute.xlu0 0
      %4042 = vperm.xlu0 %4041, %v3988
      %v4043 = vpop.permute.xlu0 %4042
      %4046 = vset.pattern.permute.xlu0 0
      %4047 = vperm.xlu0 %4046, %v3989
      %v4048 = vpop.permute.xlu0 %4047
      %4051 = vset.pattern.permute.xlu0 0
      %4052 = vperm.xlu0 %4051, %v3990
      %v4053 = vpop.permute.xlu0 %4052
      %4056 = vset.pattern.permute.xlu0 0
      %4057 = vperm.xlu0 %4056, %v3991
      %v4058 = vpop.permute.xlu0 %4057
      %4061 = vset.pattern.permute.xlu0 0
      %4062 = vperm.xlu0 %4061, %v3992
      %v4063 = vpop.permute.xlu0 %4062
      %4066 = vset.pattern.permute.xlu0 0
      %4067 = vperm.xlu0 %4066, %v3993
      %v4068 = vpop.permute.xlu0 %4067
      %4071 = vset.pattern.permute.xlu0 0
      %4072 = vperm.xlu0 %4071, %v3994
      %v4073 = vpop.permute.xlu0 %4072
      %v4075 = vmul.f32 %v3998, %v1807
      %v4076 = vmul.f32 %v4003, %v1812
      %v4077 = vmul.f32 %v4008, %v1817
      %v4078 = vmul.f32 %v4013, %v1822
      %v4079 = vmul.f32 %v4018, %v1827
      %v4080 = vmul.f32 %v4023, %v1832
      %v4081 = vmul.f32 %v4028, %v1837
      %v4082 = vmul.f32 %v4033, %v1842
      %v4083 = vmul.f32 %v4038, %v1847
      %v4084 = vmul.f32 %v4043, %v1852
      %v4085 = vmul.f32 %v4048, %v1857
      %v4086 = vmul.f32 %v4053, %v1862
      %v4087 = vmul.f32 %v4058, %v1867
      %v4088 = vmul.f32 %v4063, %v1872
      %v4089 = vmul.f32 %v4068, %v1877
      %v4090 = vmul.f32 %v4073, %v1882
      %v4091 = vadd.f32 %v4075, %v2919
      %v4092 = vadd.f32 %v4076, %v2919
      %v4093 = vadd.f32 %v4077, %v2919
      %v4094 = vadd.f32 %v4078, %v2919
      %v4095 = vadd.f32 %v4079, %v2919
      %v4096 = vadd.f32 %v4080, %v2919
      %v4097 = vadd.f32 %v4081, %v2919
      %v4098 = vadd.f32 %v4082, %v2919
      %v4099 = vadd.f32 %v4083, %v2919
      %v4100 = vadd.f32 %v4084, %v2919
      %v4101 = vadd.f32 %v4085, %v2919
      %v4102 = vadd.f32 %v4086, %v2919
      %v4103 = vadd.f32 %v4087, %v2919
      %v4104 = vadd.f32 %v4088, %v2919
      %v4105 = vadd.f32 %v4089, %v2919
      %v4106 = vadd.f32 %v4090, %v2919
      %v4107 = vmax.f32 %v4091, 0.0
      %v4108 = vmax.f32 %v4092, 0.0
      %v4109 = vmax.f32 %v4093, 0.0
      %v4110 = vmax.f32 %v4094, 0.0
      %v4111 = vmax.f32 %v4095, 0.0
      %v4112 = vmax.f32 %v4096, 0.0
      %v4113 = vmax.f32 %v4097, 0.0
      %v4114 = vmax.f32 %v4098, 0.0
      %v4115 = vmax.f32 %v4099, 0.0
      %v4116 = vmax.f32 %v4100, 0.0
      %v4117 = vmax.f32 %v4101, 0.0
      %v4118 = vmax.f32 %v4102, 0.0
      %v4119 = vmax.f32 %v4103, 0.0
      %v4120 = vmax.f32 %v4104, 0.0
      %v4121 = vmax.f32 %v4105, 0.0
      %v4122 = vmax.f32 %v4106, 0.0
      %v4123 = vsel %vm929, %v4107, 0.0
      %v4124 = vrot.slane %v4123, 4
      %v4125 = vadd.f32 %v4123, %v4124
      %v4126 = vrot.slane %v4125, 2
      %v4127 = vadd.f32 %v4125, %v4126
      %v4128 = vrot.slane %v4127, 1
      %v4129 = vadd.f32 %v4127, %v4128
      %v4130 = vsel %vm929, %v4108, 0.0
      %v4131 = vrot.slane %v4130, 4
      %v4132 = vadd.f32 %v4130, %v4131
      %v4133 = vrot.slane %v4132, 2
      %v4134 = vadd.f32 %v4132, %v4133
      %v4135 = vrot.slane %v4134, 1
      %v4136 = vadd.f32 %v4134, %v4135
      %v4137 = vsel %vm929, %v4109, 0.0
      %v4138 = vrot.slane %v4137, 4
      %v4139 = vadd.f32 %v4137, %v4138
      %v4140 = vrot.slane %v4139, 2
      %v4141 = vadd.f32 %v4139, %v4140
      %v4142 = vrot.slane %v4141, 1
      %v4143 = vadd.f32 %v4141, %v4142
      %v4144 = vsel %vm929, %v4110, 0.0
      %v4145 = vrot.slane %v4144, 4
      %v4146 = vadd.f32 %v4144, %v4145
      %v4147 = vrot.slane %v4146, 2
      %v4148 = vadd.f32 %v4146, %v4147
      %v4149 = vrot.slane %v4148, 1
      %v4150 = vadd.f32 %v4148, %v4149
      %v4151 = vsel %vm929, %v4111, 0.0
      %v4152 = vrot.slane %v4151, 4
      %v4153 = vadd.f32 %v4151, %v4152
      %v4154 = vrot.slane %v4153, 2
      %v4155 = vadd.f32 %v4153, %v4154
      %v4156 = vrot.slane %v4155, 1
      %v4157 = vadd.f32 %v4155, %v4156
      %v4158 = vsel %vm929, %v4112, 0.0
      %v4159 = vrot.slane %v4158, 4
      %v4160 = vadd.f32 %v4158, %v4159
      %v4161 = vrot.slane %v4160, 2
      %v4162 = vadd.f32 %v4160, %v4161
      %v4163 = vrot.slane %v4162, 1
      %v4164 = vadd.f32 %v4162, %v4163
      %v4165 = vsel %vm929, %v4113, 0.0
      %v4166 = vrot.slane %v4165, 4
      %v4167 = vadd.f32 %v4165, %v4166
      %v4168 = vrot.slane %v4167, 2
      %v4169 = vadd.f32 %v4167, %v4168
      %v4170 = vrot.slane %v4169, 1
      %v4171 = vadd.f32 %v4169, %v4170
      %v4172 = vsel %vm929, %v4114, 0.0
      %v4173 = vrot.slane %v4172, 4
      %v4174 = vadd.f32 %v4172, %v4173
      %v4175 = vrot.slane %v4174, 2
      %v4176 = vadd.f32 %v4174, %v4175
      %v4177 = vrot.slane %v4176, 1
      %v4178 = vadd.f32 %v4176, %v4177
      %v4179 = vsel %vm929, %v4115, 0.0
      %v4180 = vrot.slane %v4179, 4
      %v4181 = vadd.f32 %v4179, %v4180
      %v4182 = vrot.slane %v4181, 2
      %v4183 = vadd.f32 %v4181, %v4182
      %v4184 = vrot.slane %v4183, 1
      %v4185 = vadd.f32 %v4183, %v4184
      %v4186 = vsel %vm929, %v4116, 0.0
      %v4187 = vrot.slane %v4186, 4
      %v4188 = vadd.f32 %v4186, %v4187
      %v4189 = vrot.slane %v4188, 2
      %v4190 = vadd.f32 %v4188, %v4189
      %v4191 = vrot.slane %v4190, 1
      %v4192 = vadd.f32 %v4190, %v4191
      %v4193 = vsel %vm929, %v4117, 0.0
      %v4194 = vrot.slane %v4193, 4
      %v4195 = vadd.f32 %v4193, %v4194
      %v4196 = vrot.slane %v4195, 2
      %v4197 = vadd.f32 %v4195, %v4196
      %v4198 = vrot.slane %v4197, 1
      %v4199 = vadd.f32 %v4197, %v4198
      %v4200 = vsel %vm929, %v4118, 0.0
      %v4201 = vrot.slane %v4200, 4
      %v4202 = vadd.f32 %v4200, %v4201
      %v4203 = vrot.slane %v4202, 2
      %v4204 = vadd.f32 %v4202, %v4203
      %v4205 = vrot.slane %v4204, 1
      %v4206 = vadd.f32 %v4204, %v4205
      %v4207 = vsel %vm929, %v4119, 0.0
      %v4208 = vrot.slane %v4207, 4
      %v4209 = vadd.f32 %v4207, %v4208
      %v4210 = vrot.slane %v4209, 2
      %v4211 = vadd.f32 %v4209, %v4210
      %v4212 = vrot.slane %v4211, 1
      %v4213 = vadd.f32 %v4211, %v4212
      %v4214 = vsel %vm929, %v4120, 0.0
      %v4215 = vrot.slane %v4214, 4
      %v4216 = vadd.f32 %v4214, %v4215
      %v4217 = vrot.slane %v4216, 2
      %v4218 = vadd.f32 %v4216, %v4217
      %v4219 = vrot.slane %v4218, 1
      %v4220 = vadd.f32 %v4218, %v4219
      %v4221 = vsel %vm929, %v4121, 0.0
      %v4222 = vrot.slane %v4221, 4
      %v4223 = vadd.f32 %v4221, %v4222
      %v4224 = vrot.slane %v4223, 2
      %v4225 = vadd.f32 %v4223, %v4224
      %v4226 = vrot.slane %v4225, 1
      %v4227 = vadd.f32 %v4225, %v4226
      %v4228 = vsel %vm929, %v4122, 0.0
      %v4229 = vrot.slane %v4228, 4
      %v4230 = vadd.f32 %v4228, %v4229
      %v4231 = vrot.slane %v4230, 2
      %v4232 = vadd.f32 %v4230, %v4231
      %v4233 = vrot.slane %v4232, 1
      %v4234 = vadd.f32 %v4232, %v4233
      %v4235 = vsub.f32 0.0, %v4129
      %v4236 = vsub.f32 0.0, %v4136
      %v4237 = vsub.f32 0.0, %v4143
      %v4238 = vsub.f32 0.0, %v4150
      %v4239 = vsub.f32 0.0, %v4157
      %v4240 = vsub.f32 0.0, %v4164
      %v4241 = vsub.f32 0.0, %v4171
      %v4242 = vsub.f32 0.0, %v4178
      %v4243 = vsub.f32 0.0, %v4185
      %v4244 = vsub.f32 0.0, %v4192
      %v4245 = vsub.f32 0.0, %v4199
      %v4246 = vsub.f32 0.0, %v4206
      %v4247 = vsub.f32 0.0, %v4213
      %v4248 = vsub.f32 0.0, %v4220
      %v4249 = vsub.f32 0.0, %v4227
      %v4250 = vsub.f32 0.0, %v4234
      %v4267 = vsel %vm2689, %v4236, %v4235
      %v4268 = vsel %vm2691, %v4237, %v4267
      %v4269 = vsel %vm2693, %v4238, %v4268
      %v4270 = vsel %vm2695, %v4239, %v4269
      %v4271 = vsel %vm2697, %v4240, %v4270
      %v4272 = vsel %vm2699, %v4241, %v4271
      %v4273 = vsel %vm2701, %v4242, %v4272
      %v4274 = vsel %vm2689, %v4244, %v4243
      %v4275 = vsel %vm2691, %v4245, %v4274
      %v4276 = vsel %vm2693, %v4246, %v4275
      %v4277 = vsel %vm2695, %v4247, %v4276
      %v4278 = vsel %vm2697, %v4248, %v4277
      %v4279 = vsel %vm2699, %v4249, %v4278
      %v4280 = vsel %vm2701, %v4250, %v4279
      %v4281 = vsel %vm929, %v4273, 0
      %v4283 = vsel %vm929, %v4280, 0
      %4285 = vmatprep.subr.mxu0 0.0
      %4286 = vmatpush1.msra.mxu0 0.0
      %4287 = vmatprep.subr.mxu0 0.0
      %4288 = vmatpush1.msra.mxu0 0.0
      %4289 = vmatprep.subr.mxu0 0.0
      %4290 = vmatpush1.msra.mxu0 0.0
      %4291 = vmatprep.subr.mxu0 0.0
      %4292 = vmatpush1.msra.mxu0 0.0
      %4293 = vmatprep.subr.mxu0 0.0
      %4294 = vmatpush1.msra.mxu0 0.0
      %4295 = vmatprep.subr.mxu0 0.0
      %4296 = vmatpush1.msra.mxu0 0.0
      %4297 = vmatprep.subr.mxu0 0.0
      %4298 = vmatpush1.msra.mxu0 0.0
      %4299 = vmatprep.subr.mxu0 0.0
      %4300 = vmatpush1.msra.mxu0 0.0
      %4301 = vmatprep.subr.mxu0 0.0
      %4302 = vmatpush1.msra.mxu0 0.0
      %4303 = vmatprep.subr.mxu0 0.0
      %4304 = vmatpush1.msra.mxu0 0.0
      %4305 = vmatprep.subr.mxu0 0.0
      %4306 = vmatpush1.msra.mxu0 0.0
      %4307 = vmatprep.subr.mxu0 0.0
      %4308 = vmatpush1.msra.mxu0 0.0
      %4309 = vmatprep.subr.mxu0 0.0
      %4310 = vmatpush1.msra.mxu0 %v1893
      %4311 = vmatprep.subr.mxu0 0.0
      %4312 = vmatpush1.msra.mxu0 %v1892
      %4313 = vmatprep.subr.mxu0 0.0
      %4314 = vmatpush1.msra.mxu0 %v1891
      %4315 = vmatprep.subr.mxu0 0.0
      %4316 = vmatpush1.msra.mxu0 %v1890
      %4317 = vmatprep.subr.mxu0 0.0
      %4318 = vmatpush2.msra.mxu0 0.0
      %4319 = vmatprep.subr.mxu0 0.0
      %4320 = vmatpush2.msra.mxu0 0.0
      %4321 = vmatprep.subr.mxu0 0.0
      %4322 = vmatpush2.msra.mxu0 0.0
      %4323 = vmatprep.subr.mxu0 0.0
      %4324 = vmatpush2.msra.mxu0 0.0
      %4325 = vmatprep.subr.mxu0 0.0
      %4326 = vmatpush2.msra.mxu0 0.0
      %4327 = vmatprep.subr.mxu0 0.0
      %4328 = vmatpush2.msra.mxu0 0.0
      %4329 = vmatprep.subr.mxu0 0.0
      %4330 = vmatpush2.msra.mxu0 0.0
      %4331 = vmatprep.subr.mxu0 0.0
      %4332 = vmatpush2.msra.mxu0 0.0
      %4333 = vmatprep.subr.mxu0 0.0
      %4334 = vmatpush2.msra.mxu0 0.0
      %4335 = vmatprep.subr.mxu0 0.0
      %4336 = vmatpush2.msra.mxu0 0.0
      %4337 = vmatprep.subr.mxu0 0.0
      %4338 = vmatpush2.msra.mxu0 0.0
      %4339 = vmatprep.subr.mxu0 0.0
      %4340 = vmatpush2.msra.mxu0 0.0
      %4341 = vmatprep.subr.mxu0 0.0
      %4342 = vmatpush2.msra.mxu0 0.0
      %4343 = vmatprep.subr.mxu0 0.0
      %4344 = vmatpush2.msra.mxu0 0.0
      %4345 = vmatprep.subr.mxu0 0.0
      %4346 = vmatpush2.msra.mxu0 0.0
      %4347 = vmatprep.subr.mxu0 0.0
      %4348 = vmatpush2.msra.mxu0 0.0
      %4349 = vmatprep.mubr.f32.mxu0 0.0
      %4350 = vmatmul.mubr.f32.gmra.mxu0 %v4281
      %v4351 = vpop.f32.mrf.mxu0
      %v4352 = vadd.f32 %v3085, %v4351
      %v4353 = vpop.f32.mrf.mxu0
      %4354 = vmatprep.mubr.f32.mxu0 0.0
      %4355 = vmatmul.mubr.f32.gmra.mxu0 %v4283
      %v4356 = vpop.f32.mrf.mxu0
      %v4357 = vadd.f32 %v3085, %v4356
      %v4358 = vpop.f32.mrf.mxu0
      %4359 = vdwg.mxu0
      %v4360 = vxor.u32 %v4352, 2147483648
      %v4361 = vxor.u32 %v4357, 2147483648
      %v4362 = vmul.f32 %v4360, 1.442695
      %v4363 = vpow.pop %v4362
      %v4364 = vmul.f32 %v4361, 1.442695
      %v4365 = vpow.pop %v4364
      %v4366 = vadd.f32 %v4363, 1.0
      %v4367 = vadd.f32 %v4365, 1.0
      %v4368 = vrcp.pop %v4366
      %v4369 = vmul.f32 1.0, %v4368
      %v4370 = vrcp.pop %v4367
      %v4371 = vmul.f32 1.0, %v4370
      %v4372 = vsub.f32 1.0, %v4369
      %v4373 = vsub.f32 1.0, %v4371
      %v4374 = vmul.f32 %v4372, %v3216
      %v4375 = vmul.f32 %v4373, %v3217
      %v4378 = vmul.f32 %v4369, %v4273
      %v4379 = vmul.f32 %v4371, %v4280
      %v4380 = vadd.f32 %v4374, %v4378
      %v4381 = vadd.f32 %v4375, %v4379
      %v4383 = vsel %vm929, %v4380, 0
      %v4386 = vsel %vm929, %v4381, 0
      %4388 = vmatprep.subr.mxu0 0.0
      %4389 = vmatpush1.msra.mxu0 0.0
      %4390 = vmatprep.subr.mxu0 0.0
      %4391 = vmatpush1.msra.mxu0 0.0
      %4392 = vmatprep.subr.mxu0 0.0
      %4393 = vmatpush1.msra.mxu0 0.0
      %4394 = vmatprep.subr.mxu0 0.0
      %4395 = vmatpush1.msra.mxu0 0.0
      %4396 = vmatprep.subr.mxu0 0.0
      %4397 = vmatpush1.msra.mxu0 0.0
      %4398 = vmatprep.subr.mxu0 0.0
      %4399 = vmatpush1.msra.mxu0 0.0
      %4400 = vmatprep.subr.mxu0 0.0
      %4401 = vmatpush1.msra.mxu0 0.0
      %4402 = vmatprep.subr.mxu0 0.0
      %4403 = vmatpush1.msra.mxu0 0.0
      %4404 = vmatprep.subr.mxu0 0.0
      %4405 = vmatpush1.msra.mxu0 0.0
      %4406 = vmatprep.subr.mxu0 0.0
      %4407 = vmatpush1.msra.mxu0 0.0
      %4408 = vmatprep.subr.mxu0 0.0
      %4409 = vmatpush1.msra.mxu0 0.0
      %4410 = vmatprep.subr.mxu0 0.0
      %4411 = vmatpush1.msra.mxu0 0.0
      %4412 = vmatprep.subr.mxu0 0.0
      %4413 = vmatpush1.msra.mxu0 %v1888
      %4414 = vmatprep.subr.mxu0 0.0
      %4415 = vmatpush1.msra.mxu0 %v1887
      %4416 = vmatprep.subr.mxu0 0.0
      %4417 = vmatpush1.msra.mxu0 %v1886
      %4418 = vmatprep.subr.mxu0 0.0
      %4419 = vmatpush1.msra.mxu0 %v1885
      %4420 = vmatprep.subr.mxu0 0.0
      %4421 = vmatpush2.msra.mxu0 0.0
      %4422 = vmatprep.subr.mxu0 0.0
      %4423 = vmatpush2.msra.mxu0 0.0
      %4424 = vmatprep.subr.mxu0 0.0
      %4425 = vmatpush2.msra.mxu0 0.0
      %4426 = vmatprep.subr.mxu0 0.0
      %4427 = vmatpush2.msra.mxu0 0.0
      %4428 = vmatprep.subr.mxu0 0.0
      %4429 = vmatpush2.msra.mxu0 0.0
      %4430 = vmatprep.subr.mxu0 0.0
      %4431 = vmatpush2.msra.mxu0 0.0
      %4432 = vmatprep.subr.mxu0 0.0
      %4433 = vmatpush2.msra.mxu0 0.0
      %4434 = vmatprep.subr.mxu0 0.0
      %4435 = vmatpush2.msra.mxu0 0.0
      %4436 = vmatprep.subr.mxu0 0.0
      %4437 = vmatpush2.msra.mxu0 0.0
      %4438 = vmatprep.subr.mxu0 0.0
      %4439 = vmatpush2.msra.mxu0 0.0
      %4440 = vmatprep.subr.mxu0 0.0
      %4441 = vmatpush2.msra.mxu0 0.0
      %4442 = vmatprep.subr.mxu0 0.0
      %4443 = vmatpush2.msra.mxu0 0.0
      %4444 = vmatprep.subr.mxu0 0.0
      %4445 = vmatpush2.msra.mxu0 0.0
      %4446 = vmatprep.subr.mxu0 0.0
      %4447 = vmatpush2.msra.mxu0 0.0
      %4448 = vmatprep.subr.mxu0 0.0
      %4449 = vmatpush2.msra.mxu0 0.0
      %4450 = vmatprep.subr.mxu0 0.0
      %4451 = vmatpush2.msra.mxu0 0.0
      %4452 = vmatprep.mubr.f32.mxu0 0.0
      %4453 = vmatmul.mubr.f32.gmra.mxu0 %v4383
      %v4454 = vpop.f32.mrf.mxu0
      %v4455 = vadd.f32 %v1900, %v4454
      %v4456 = vpop.f32.mrf.mxu0
      %4457 = vmatprep.mubr.f32.mxu0 0.0
      %4458 = vmatmul.mubr.f32.gmra.mxu0 %v4386
      %v4459 = vpop.f32.mrf.mxu0
      %v4460 = vadd.f32 %v1900, %v4459
      %v4461 = vpop.f32.mrf.mxu0
      %4462 = vdwg.mxu0
      %v4465 = vcombine.high %v4455, %v4455
      %v4467 = vunpack.c.l.s4 1966171168
      %v4468 = vunpack.c.0.s8 %v4467
      %v4469 = vlaneseq
      %v4470 = vshrl.u32 %v4469, 7
      %v4471 = vsub.s32 %v4468, %v4470
      %v4472 = vrot.slane %v4455, %v4471
      %v4474 = vunpack.c.l.s4 1966171168
      %v4475 = vunpack.c.0.s8 %v4474
      %v4476 = vlaneseq
      %v4477 = vshrl.u32 %v4476, 7
      %v4478 = vsub.s32 %v4475, %v4477
      %v4479 = vrot.slane %v4465, %v4478
      %v4480 = vcombine.high %v4472, %v4472
      %v4481 = vcombine.high %v4479, %v4479
      %v4483 = vunpack.c.l.s4 1966171168
      %v4484 = vunpack.c.0.s8 %v4483
      %v4485 = vlaneseq
      %v4486 = vshrl.u32 %v4485, 7
      %v4487 = vsub.s32 %v4484, %v4486
      %v4488 = vrot.slane %v4472, %v4487
      %v4490 = vunpack.c.l.s4 1966171168
      %v4491 = vunpack.c.0.s8 %v4490
      %v4492 = vlaneseq
      %v4493 = vshrl.u32 %v4492, 7
      %v4494 = vsub.s32 %v4491, %v4493
      %v4495 = vrot.slane %v4479, %v4494
      %v4497 = vunpack.c.l.s4 1966171168
      %v4498 = vunpack.c.0.s8 %v4497
      %v4499 = vlaneseq
      %v4500 = vshrl.u32 %v4499, 7
      %v4501 = vsub.s32 %v4498, %v4500
      %v4502 = vrot.slane %v4480, %v4501
      %v4504 = vunpack.c.l.s4 1966171168
      %v4505 = vunpack.c.0.s8 %v4504
      %v4506 = vlaneseq
      %v4507 = vshrl.u32 %v4506, 7
      %v4508 = vsub.s32 %v4505, %v4507
      %v4509 = vrot.slane %v4481, %v4508
      %v4510 = vcombine.high %v4488, %v4488
      %v4511 = vcombine.high %v4495, %v4495
      %v4512 = vcombine.high %v4502, %v4502
      %v4513 = vcombine.high %v4509, %v4509
      %v4514 = vcombine.high %v4460, %v4460
      %v4516 = vunpack.c.l.s4 1966171168
      %v4517 = vunpack.c.0.s8 %v4516
      %v4518 = vlaneseq
      %v4519 = vshrl.u32 %v4518, 7
      %v4520 = vsub.s32 %v4517, %v4519
      %v4521 = vrot.slane %v4460, %v4520
      %v4523 = vunpack.c.l.s4 1966171168
      %v4524 = vunpack.c.0.s8 %v4523
      %v4525 = vlaneseq
      %v4526 = vshrl.u32 %v4525, 7
      %v4527 = vsub.s32 %v4524, %v4526
      %v4528 = vrot.slane %v4514, %v4527
      %v4529 = vcombine.high %v4521, %v4521
      %v4530 = vcombine.high %v4528, %v4528
      %v4532 = vunpack.c.l.s4 1966171168
      %v4533 = vunpack.c.0.s8 %v4532
      %v4534 = vlaneseq
      %v4535 = vshrl.u32 %v4534, 7
      %v4536 = vsub.s32 %v4533, %v4535
      %v4537 = vrot.slane %v4521, %v4536
      %v4539 = vunpack.c.l.s4 1966171168
      %v4540 = vunpack.c.0.s8 %v4539
      %v4541 = vlaneseq
      %v4542 = vshrl.u32 %v4541, 7
      %v4543 = vsub.s32 %v4540, %v4542
      %v4544 = vrot.slane %v4528, %v4543
      %v4546 = vunpack.c.l.s4 1966171168
      %v4547 = vunpack.c.0.s8 %v4546
      %v4548 = vlaneseq
      %v4549 = vshrl.u32 %v4548, 7
      %v4550 = vsub.s32 %v4547, %v4549
      %v4551 = vrot.slane %v4529, %v4550
      %v4553 = vunpack.c.l.s4 1966171168
      %v4554 = vunpack.c.0.s8 %v4553
      %v4555 = vlaneseq
      %v4556 = vshrl.u32 %v4555, 7
      %v4557 = vsub.s32 %v4554, %v4556
      %v4558 = vrot.slane %v4530, %v4557
      %v4559 = vcombine.high %v4537, %v4537
      %v4560 = vcombine.high %v4544, %v4544
      %v4561 = vcombine.high %v4551, %v4551
      %v4562 = vcombine.high %v4558, %v4558
      %v4563 = vlaneseq
      %v4564 = vshrl.u32 %v4563, 7
      %v4565 = vsub.s32 0, %v4564
      %v4566 = vrot.slane %v4488, %v4565
      %v4567 = vlaneseq
      %v4568 = vshrl.u32 %v4567, 7
      %v4569 = vsub.s32 0, %v4568
      %v4570 = vrot.slane %v4502, %v4569
      %v4571 = vlaneseq
      %v4572 = vshrl.u32 %v4571, 7
      %v4573 = vsub.s32 0, %v4572
      %v4574 = vrot.slane %v4510, %v4573
      %v4575 = vlaneseq
      %v4576 = vshrl.u32 %v4575, 7
      %v4577 = vsub.s32 0, %v4576
      %v4578 = vrot.slane %v4512, %v4577
      %v4579 = vlaneseq
      %v4580 = vshrl.u32 %v4579, 7
      %v4581 = vsub.s32 0, %v4580
      %v4582 = vrot.slane %v4495, %v4581
      %v4583 = vlaneseq
      %v4584 = vshrl.u32 %v4583, 7
      %v4585 = vsub.s32 0, %v4584
      %v4586 = vrot.slane %v4509, %v4585
      %v4587 = vlaneseq
      %v4588 = vshrl.u32 %v4587, 7
      %v4589 = vsub.s32 0, %v4588
      %v4590 = vrot.slane %v4511, %v4589
      %v4591 = vlaneseq
      %v4592 = vshrl.u32 %v4591, 7
      %v4593 = vsub.s32 0, %v4592
      %v4594 = vrot.slane %v4513, %v4593
      %v4595 = vlaneseq
      %v4596 = vshrl.u32 %v4595, 7
      %v4597 = vsub.s32 0, %v4596
      %v4598 = vrot.slane %v4537, %v4597
      %v4599 = vlaneseq
      %v4600 = vshrl.u32 %v4599, 7
      %v4601 = vsub.s32 0, %v4600
      %v4602 = vrot.slane %v4551, %v4601
      %v4603 = vlaneseq
      %v4604 = vshrl.u32 %v4603, 7
      %v4605 = vsub.s32 0, %v4604
      %v4606 = vrot.slane %v4559, %v4605
      %v4607 = vlaneseq
      %v4608 = vshrl.u32 %v4607, 7
      %v4609 = vsub.s32 0, %v4608
      %v4610 = vrot.slane %v4561, %v4609
      %v4611 = vlaneseq
      %v4612 = vshrl.u32 %v4611, 7
      %v4613 = vsub.s32 0, %v4612
      %v4614 = vrot.slane %v4544, %v4613
      %v4615 = vlaneseq
      %v4616 = vshrl.u32 %v4615, 7
      %v4617 = vsub.s32 0, %v4616
      %v4618 = vrot.slane %v4558, %v4617
      %v4619 = vlaneseq
      %v4620 = vshrl.u32 %v4619, 7
      %v4621 = vsub.s32 0, %v4620
      %v4622 = vrot.slane %v4560, %v4621
      %v4623 = vlaneseq
      %v4624 = vshrl.u32 %v4623, 7
      %v4625 = vsub.s32 0, %v4624
      %v4626 = vrot.slane %v4562, %v4625
      %v4643 = vmul.f32 %v1045, %v4566
      %v4644 = vmul.f32 %v1050, %v4570
      %v4645 = vmul.f32 %v1055, %v4574
      %v4646 = vmul.f32 %v1060, %v4578
      %v4647 = vmul.f32 %v1065, %v4582
      %v4648 = vmul.f32 %v1070, %v4586
      %v4649 = vmul.f32 %v1075, %v4590
      %v4650 = vmul.f32 %v1080, %v4594
      %v4651 = vmul.f32 %v1085, %v4598
      %v4652 = vmul.f32 %v1090, %v4602
      %v4653 = vmul.f32 %v1095, %v4606
      %v4654 = vmul.f32 %v1100, %v4610
      %v4655 = vmul.f32 %v1105, %v4614
      %v4656 = vmul.f32 %v1110, %v4618
      %v4657 = vmul.f32 %v1115, %v4622
      %v4658 = vmul.f32 %v1120, %v4626
      %v4659 = vsel %vm929, %v4643, 0.0
      %4660 = vadd.xlane.f32.xlu0 %v4659
      %v4661 = vpop.xlane.xlu0 %4660
      %v4662 = vsel %vm929, %v4644, 0.0
      %4663 = vadd.xlane.f32.xlu0 %v4662
      %v4664 = vpop.xlane.xlu0 %4663
      %v4665 = vsel %vm929, %v4645, 0.0
      %4666 = vadd.xlane.f32.xlu0 %v4665
      %v4667 = vpop.xlane.xlu0 %4666
      %v4668 = vsel %vm929, %v4646, 0.0
      %4669 = vadd.xlane.f32.xlu0 %v4668
      %v4670 = vpop.xlane.xlu0 %4669
      %v4671 = vsel %vm929, %v4647, 0.0
      %4672 = vadd.xlane.f32.xlu0 %v4671
      %v4673 = vpop.xlane.xlu0 %4672
      %v4674 = vsel %vm929, %v4648, 0.0
      %4675 = vadd.xlane.f32.xlu0 %v4674
      %v4676 = vpop.xlane.xlu0 %4675
      %v4677 = vsel %vm929, %v4649, 0.0
      %4678 = vadd.xlane.f32.xlu0 %v4677
      %v4679 = vpop.xlane.xlu0 %4678
      %v4680 = vsel %vm929, %v4650, 0.0
      %4681 = vadd.xlane.f32.xlu0 %v4680
      %v4682 = vpop.xlane.xlu0 %4681
      %v4683 = vsel %vm929, %v4651, 0.0
      %4684 = vadd.xlane.f32.xlu0 %v4683
      %v4685 = vpop.xlane.xlu0 %4684
      %v4686 = vsel %vm929, %v4652, 0.0
      %4687 = vadd.xlane.f32.xlu0 %v4686
      %v4688 = vpop.xlane.xlu0 %4687
      %v4689 = vsel %vm929, %v4653, 0.0
      %4690 = vadd.xlane.f32.xlu0 %v4689
      %v4691 = vpop.xlane.xlu0 %4690
      %v4692 = vsel %vm929, %v4654, 0.0
      %4693 = vadd.xlane.f32.xlu0 %v4692
      %v4694 = vpop.xlane.xlu0 %4693
      %v4695 = vsel %vm929, %v4655, 0.0
      %4696 = vadd.xlane.f32.xlu0 %v4695
      %v4697 = vpop.xlane.xlu0 %4696
      %v4698 = vsel %vm929, %v4656, 0.0
      %4699 = vadd.xlane.f32.xlu0 %v4698
      %v4700 = vpop.xlane.xlu0 %4699
      %v4701 = vsel %vm929, %v4657, 0.0
      %4702 = vadd.xlane.f32.xlu0 %v4701
      %v4703 = vpop.xlane.xlu0 %4702
      %v4704 = vsel %vm929, %v4658, 0.0
      %4705 = vadd.xlane.f32.xlu0 %v4704
      %v4706 = vpop.xlane.xlu0 %4705
      %v4707 = vmul.f32 %v4455, %v4455
      %v4708 = vmul.f32 %v4460, %v4460
      %v4709 = vsel %vm929, %v4707, 0.0
      %4710 = vadd.xlane.f32.xlu0 %v4709
      %v4711 = vpop.xlane.xlu0 %4710
      %v4712 = vsel %vm929, %v4708, 0.0
      %4713 = vadd.xlane.f32.xlu0 %v4712
      %v4714 = vpop.xlane.xlu0 %4713
      %v4715 = vmul.f32 %v4661, 2.0
      %v4716 = vmul.f32 %v4664, 2.0
      %v4717 = vmul.f32 %v4667, 2.0
      %v4718 = vmul.f32 %v4670, 2.0
      %v4719 = vmul.f32 %v4673, 2.0
      %v4720 = vmul.f32 %v4676, 2.0
      %v4721 = vmul.f32 %v4679, 2.0
      %v4722 = vmul.f32 %v4682, 2.0
      %v4723 = vmul.f32 %v4685, 2.0
      %v4724 = vmul.f32 %v4688, 2.0
      %v4725 = vmul.f32 %v4691, 2.0
      %v4726 = vmul.f32 %v4694, 2.0
      %v4727 = vmul.f32 %v4697, 2.0
      %v4728 = vmul.f32 %v4700, 2.0
      %v4729 = vmul.f32 %v4703, 2.0
      %v4730 = vmul.f32 %v4706, 2.0
      %v4731 = vadd.f32 %v1141, %v4715
      %v4732 = vadd.f32 %v1144, %v4716
      %v4733 = vadd.f32 %v1147, %v4717
      %v4734 = vadd.f32 %v1150, %v4718
      %v4735 = vadd.f32 %v1153, %v4719
      %v4736 = vadd.f32 %v1156, %v4720
      %v4737 = vadd.f32 %v1159, %v4721
      %v4738 = vadd.f32 %v1162, %v4722
      %v4739 = vadd.f32 %v1165, %v4723
      %v4740 = vadd.f32 %v1168, %v4724
      %v4741 = vadd.f32 %v1171, %v4725
      %v4742 = vadd.f32 %v1174, %v4726
      %v4743 = vadd.f32 %v1177, %v4727
      %v4744 = vadd.f32 %v1180, %v4728
      %v4745 = vadd.f32 %v1183, %v4729
      %v4746 = vadd.f32 %v1186, %v4730
      %v4749 = vlaneseq
      %v4750 = vshrl.u32 %v4749, 7
      %v4751 = vsub.s32 0, %v4750
      %v4752 = vrot.slane %v4711, %v4751
      %v4753 = vlaneseq
      %v4754 = vshrl.u32 %v4753, 7
      %v4755 = vsub.s32 1, %v4754
      %v4756 = vrot.slane %v4711, %v4755
      %v4757 = vlaneseq
      %v4758 = vshrl.u32 %v4757, 7
      %v4759 = vsub.s32 2, %v4758
      %v4760 = vrot.slane %v4711, %v4759
      %v4761 = vlaneseq
      %v4762 = vshrl.u32 %v4761, 7
      %v4763 = vsub.s32 3, %v4762
      %v4764 = vrot.slane %v4711, %v4763
      %v4765 = vlaneseq
      %v4766 = vshrl.u32 %v4765, 7
      %v4767 = vsub.s32 4, %v4766
      %v4768 = vrot.slane %v4711, %v4767
      %v4769 = vlaneseq
      %v4770 = vshrl.u32 %v4769, 7
      %v4771 = vsub.s32 5, %v4770
      %v4772 = vrot.slane %v4711, %v4771
      %v4773 = vlaneseq
      %v4774 = vshrl.u32 %v4773, 7
      %v4775 = vsub.s32 6, %v4774
      %v4776 = vrot.slane %v4711, %v4775
      %v4777 = vlaneseq
      %v4778 = vshrl.u32 %v4777, 7
      %v4779 = vsub.s32 7, %v4778
      %v4780 = vrot.slane %v4711, %v4779
      %v4781 = vlaneseq
      %v4782 = vshrl.u32 %v4781, 7
      %v4783 = vsub.s32 0, %v4782
      %v4784 = vrot.slane %v4714, %v4783
      %v4785 = vlaneseq
      %v4786 = vshrl.u32 %v4785, 7
      %v4787 = vsub.s32 1, %v4786
      %v4788 = vrot.slane %v4714, %v4787
      %v4789 = vlaneseq
      %v4790 = vshrl.u32 %v4789, 7
      %v4791 = vsub.s32 2, %v4790
      %v4792 = vrot.slane %v4714, %v4791
      %v4793 = vlaneseq
      %v4794 = vshrl.u32 %v4793, 7
      %v4795 = vsub.s32 3, %v4794
      %v4796 = vrot.slane %v4714, %v4795
      %v4797 = vlaneseq
      %v4798 = vshrl.u32 %v4797, 7
      %v4799 = vsub.s32 4, %v4798
      %v4800 = vrot.slane %v4714, %v4799
      %v4801 = vlaneseq
      %v4802 = vshrl.u32 %v4801, 7
      %v4803 = vsub.s32 5, %v4802
      %v4804 = vrot.slane %v4714, %v4803
      %v4805 = vlaneseq
      %v4806 = vshrl.u32 %v4805, 7
      %v4807 = vsub.s32 6, %v4806
      %v4808 = vrot.slane %v4714, %v4807
      %v4809 = vlaneseq
      %v4810 = vshrl.u32 %v4809, 7
      %v4811 = vsub.s32 7, %v4810
      %v4812 = vrot.slane %v4714, %v4811
      %v4829 = vadd.f32 %v4731, %v4752
      %v4830 = vadd.f32 %v4732, %v4756
      %v4831 = vadd.f32 %v4733, %v4760
      %v4832 = vadd.f32 %v4734, %v4764
      %v4833 = vadd.f32 %v4735, %v4768
      %v4834 = vadd.f32 %v4736, %v4772
      %v4835 = vadd.f32 %v4737, %v4776
      %v4836 = vadd.f32 %v4738, %v4780
      %v4837 = vadd.f32 %v4739, %v4784
      %v4838 = vadd.f32 %v4740, %v4788
      %v4839 = vadd.f32 %v4741, %v4792
      %v4840 = vadd.f32 %v4742, %v4796
      %v4841 = vadd.f32 %v4743, %v4800
      %v4842 = vadd.f32 %v4744, %v4804
      %v4843 = vadd.f32 %v4745, %v4808
      %v4844 = vadd.f32 %v4746, %v4812
      %v4845 = vsub.f32 0.0, %v4829
      %v4846 = vsub.f32 0.0, %v4830
      %v4847 = vsub.f32 0.0, %v4831
      %v4848 = vsub.f32 0.0, %v4832
      %v4849 = vsub.f32 0.0, %v4833
      %v4850 = vsub.f32 0.0, %v4834
      %v4851 = vsub.f32 0.0, %v4835
      %v4852 = vsub.f32 0.0, %v4836
      %v4853 = vsub.f32 0.0, %v4837
      %v4854 = vsub.f32 0.0, %v4838
      %v4855 = vsub.f32 0.0, %v4839
      %v4856 = vsub.f32 0.0, %v4840
      %v4857 = vsub.f32 0.0, %v4841
      %v4858 = vsub.f32 0.0, %v4842
      %v4859 = vsub.f32 0.0, %v4843
      %v4860 = vsub.f32 0.0, %v4844
      %v4861 = vmul.f32 %v4845, %v2389
      %v4862 = vmul.f32 %v4846, %v2396
      %v4863 = vmul.f32 %v4847, %v2403
      %v4864 = vmul.f32 %v4848, %v2410
      %v4865 = vmul.f32 %v4849, %v2417
      %v4866 = vmul.f32 %v4850, %v2424
      %v4867 = vmul.f32 %v4851, %v2431
      %v4868 = vmul.f32 %v4852, %v2438
      %v4869 = vmul.f32 %v4853, %v2445
      %v4870 = vmul.f32 %v4854, %v2452
      %v4871 = vmul.f32 %v4855, %v2459
      %v4872 = vmul.f32 %v4856, %v2466
      %v4873 = vmul.f32 %v4857, %v2473
      %v4874 = vmul.f32 %v4858, %v2480
      %v4875 = vmul.f32 %v4859, %v2487
      %v4876 = vmul.f32 %v4860, %v2494
      %v4877 = vmul.f32 %v4861, 1.442695
      %v4878 = vpow.pop %v4877
      %v4879 = vmul.f32 %v4862, 1.442695
      %v4880 = vpow.pop %v4879
      %v4881 = vmul.f32 %v4863, 1.442695
      %v4882 = vpow.pop %v4881
      %v4883 = vmul.f32 %v4864, 1.442695
      %v4884 = vpow.pop %v4883
      %v4885 = vmul.f32 %v4865, 1.442695
      %v4886 = vpow.pop %v4885
      %v4887 = vmul.f32 %v4866, 1.442695
      %v4888 = vpow.pop %v4887
      %v4889 = vmul.f32 %v4867, 1.442695
      %v4890 = vpow.pop %v4889
      %v4891 = vmul.f32 %v4868, 1.442695
      %v4892 = vpow.pop %v4891
      %v4893 = vmul.f32 %v4869, 1.442695
      %v4894 = vpow.pop %v4893
      %v4895 = vmul.f32 %v4870, 1.442695
      %v4896 = vpow.pop %v4895
      %v4897 = vmul.f32 %v4871, 1.442695
      %v4898 = vpow.pop %v4897
      %v4899 = vmul.f32 %v4872, 1.442695
      %v4900 = vpow.pop %v4899
      %v4901 = vmul.f32 %v4873, 1.442695
      %v4902 = vpow.pop %v4901
      %v4903 = vmul.f32 %v4874, 1.442695
      %v4904 = vpow.pop %v4903
      %v4905 = vmul.f32 %v4875, 1.442695
      %v4906 = vpow.pop %v4905
      %v4907 = vmul.f32 %v4876, 1.442695
      %v4908 = vpow.pop %v4907
      %4925 = vset.pattern.permute.xlu0 0
      %4926 = vperm.xlu0 %4925, %v4878
      %v4927 = vpop.permute.xlu0 %4926
      %4928 = vset.pattern.permute.xlu0 0
      %4929 = vperm.xlu0 %4928, %v4880
      %v4930 = vpop.permute.xlu0 %4929
      %4931 = vset.pattern.permute.xlu0 0
      %4932 = vperm.xlu0 %4931, %v4882
      %v4933 = vpop.permute.xlu0 %4932
      %4934 = vset.pattern.permute.xlu0 0
      %4935 = vperm.xlu0 %4934, %v4884
      %v4936 = vpop.permute.xlu0 %4935
      %4937 = vset.pattern.permute.xlu0 0
      %4938 = vperm.xlu0 %4937, %v4886
      %v4939 = vpop.permute.xlu0 %4938
      %4940 = vset.pattern.permute.xlu0 0
      %4941 = vperm.xlu0 %4940, %v4888
      %v4942 = vpop.permute.xlu0 %4941
      %4943 = vset.pattern.permute.xlu0 0
      %4944 = vperm.xlu0 %4943, %v4890
      %v4945 = vpop.permute.xlu0 %4944
      %4946 = vset.pattern.permute.xlu0 0
      %4947 = vperm.xlu0 %4946, %v4892
      %v4948 = vpop.permute.xlu0 %4947
      %4949 = vset.pattern.permute.xlu0 0
      %4950 = vperm.xlu0 %4949, %v4894
      %v4951 = vpop.permute.xlu0 %4950
      %4952 = vset.pattern.permute.xlu0 0
      %4953 = vperm.xlu0 %4952, %v4896
      %v4954 = vpop.permute.xlu0 %4953
      %4955 = vset.pattern.permute.xlu0 0
      %4956 = vperm.xlu0 %4955, %v4898
      %v4957 = vpop.permute.xlu0 %4956
      %4958 = vset.pattern.permute.xlu0 0
      %4959 = vperm.xlu0 %4958, %v4900
      %v4960 = vpop.permute.xlu0 %4959
      %4961 = vset.pattern.permute.xlu0 0
      %4962 = vperm.xlu0 %4961, %v4902
      %v4963 = vpop.permute.xlu0 %4962
      %4964 = vset.pattern.permute.xlu0 0
      %4965 = vperm.xlu0 %4964, %v4904
      %v4966 = vpop.permute.xlu0 %4965
      %4967 = vset.pattern.permute.xlu0 0
      %4968 = vperm.xlu0 %4967, %v4906
      %v4969 = vpop.permute.xlu0 %4968
      %4970 = vset.pattern.permute.xlu0 0
      %4971 = vperm.xlu0 %4970, %v4908
      %v4972 = vpop.permute.xlu0 %4971
      %v4973 = vlaneseq
      %v4974 = vshrl.u32 %v4973, 7
      %v4975 = vsub.s32 %v2624, %v4974
      %v4976 = vrot.slane %v4927, %v4975
      %v4977 = vlaneseq
      %v4978 = vshrl.u32 %v4977, 7
      %v4979 = vsub.s32 %v2624, %v4978
      %v4980 = vrot.slane %v4930, %v4979
      %v4981 = vlaneseq
      %v4982 = vshrl.u32 %v4981, 7
      %v4983 = vsub.s32 %v2624, %v4982
      %v4984 = vrot.slane %v4933, %v4983
      %v4985 = vlaneseq
      %v4986 = vshrl.u32 %v4985, 7
      %v4987 = vsub.s32 %v2624, %v4986
      %v4988 = vrot.slane %v4936, %v4987
      %v4989 = vlaneseq
      %v4990 = vshrl.u32 %v4989, 7
      %v4991 = vsub.s32 %v2624, %v4990
      %v4992 = vrot.slane %v4939, %v4991
      %v4993 = vlaneseq
      %v4994 = vshrl.u32 %v4993, 7
      %v4995 = vsub.s32 %v2624, %v4994
      %v4996 = vrot.slane %v4942, %v4995
      %v4997 = vlaneseq
      %v4998 = vshrl.u32 %v4997, 7
      %v4999 = vsub.s32 %v2624, %v4998
      %v5000 = vrot.slane %v4945, %v4999
      %v5001 = vlaneseq
      %v5002 = vshrl.u32 %v5001, 7
      %v5003 = vsub.s32 %v2624, %v5002
      %v5004 = vrot.slane %v4948, %v5003
      %v5005 = vlaneseq
      %v5006 = vshrl.u32 %v5005, 7
      %v5007 = vsub.s32 %v2624, %v5006
      %v5008 = vrot.slane %v4951, %v5007
      %v5009 = vlaneseq
      %v5010 = vshrl.u32 %v5009, 7
      %v5011 = vsub.s32 %v2624, %v5010
      %v5012 = vrot.slane %v4954, %v5011
      %v5013 = vlaneseq
      %v5014 = vshrl.u32 %v5013, 7
      %v5015 = vsub.s32 %v2624, %v5014
      %v5016 = vrot.slane %v4957, %v5015
      %v5017 = vlaneseq
      %v5018 = vshrl.u32 %v5017, 7
      %v5019 = vsub.s32 %v2624, %v5018
      %v5020 = vrot.slane %v4960, %v5019
      %v5021 = vlaneseq
      %v5022 = vshrl.u32 %v5021, 7
      %v5023 = vsub.s32 %v2624, %v5022
      %v5024 = vrot.slane %v4963, %v5023
      %v5025 = vlaneseq
      %v5026 = vshrl.u32 %v5025, 7
      %v5027 = vsub.s32 %v2624, %v5026
      %v5028 = vrot.slane %v4966, %v5027
      %v5029 = vlaneseq
      %v5030 = vshrl.u32 %v5029, 7
      %v5031 = vsub.s32 %v2624, %v5030
      %v5032 = vrot.slane %v4969, %v5031
      %v5033 = vlaneseq
      %v5034 = vshrl.u32 %v5033, 7
      %v5035 = vsub.s32 %v2624, %v5034
      %v5036 = vrot.slane %v4972, %v5035
      %v5037 = vsel %vm2689, %v4980, %v4976
      %v5038 = vsel %vm2691, %v4984, %v5037
      %v5039 = vsel %vm2693, %v4988, %v5038
      %v5040 = vsel %vm2695, %v4992, %v5039
      %v5041 = vsel %vm2697, %v4996, %v5040
      %v5042 = vsel %vm2699, %v5000, %v5041
      %v5043 = vsel %vm2701, %v5004, %v5042
      %v5044 = vsel %vm2689, %v5012, %v5008
      %v5045 = vsel %vm2691, %v5016, %v5044
      %v5046 = vsel %vm2693, %v5020, %v5045
      %v5047 = vsel %vm2695, %v5024, %v5046
      %v5048 = vsel %vm2697, %v5028, %v5047
      %v5049 = vsel %vm2699, %v5032, %v5048
      %v5050 = vsel %vm2701, %v5036, %v5049
      %v5053 = vsel %vm2712, %v5043, 0.0
      %5054 = vadd.xlane.f32.xlu0 %v5053
      %v5055 = vpop.xlane.xlu0 %5054
      %v5056 = vsel %vm2712, %v5050, 0.0
      %5057 = vadd.xlane.f32.xlu0 %v5056
      %v5058 = vpop.xlane.xlu0 %5057
      %v5059 = vrcp.pop %v5055
      %v5060 = vrcp.pop %v5058
      %v5063 = vlaneseq
      %v5064 = vshrl.u32 %v5063, 7
      %v5065 = vsub.s32 0, %v5064
      %v5066 = vrot.slane %v5059, %v5065
      %v5067 = vlaneseq
      %v5068 = vshrl.u32 %v5067, 7
      %v5069 = vsub.s32 1, %v5068
      %v5070 = vrot.slane %v5059, %v5069
      %v5071 = vlaneseq
      %v5072 = vshrl.u32 %v5071, 7
      %v5073 = vsub.s32 2, %v5072
      %v5074 = vrot.slane %v5059, %v5073
      %v5075 = vlaneseq
      %v5076 = vshrl.u32 %v5075, 7
      %v5077 = vsub.s32 3, %v5076
      %v5078 = vrot.slane %v5059, %v5077
      %v5079 = vlaneseq
      %v5080 = vshrl.u32 %v5079, 7
      %v5081 = vsub.s32 4, %v5080
      %v5082 = vrot.slane %v5059, %v5081
      %v5083 = vlaneseq
      %v5084 = vshrl.u32 %v5083, 7
      %v5085 = vsub.s32 5, %v5084
      %v5086 = vrot.slane %v5059, %v5085
      %v5087 = vlaneseq
      %v5088 = vshrl.u32 %v5087, 7
      %v5089 = vsub.s32 6, %v5088
      %v5090 = vrot.slane %v5059, %v5089
      %v5091 = vlaneseq
      %v5092 = vshrl.u32 %v5091, 7
      %v5093 = vsub.s32 7, %v5092
      %v5094 = vrot.slane %v5059, %v5093
      %v5095 = vlaneseq
      %v5096 = vshrl.u32 %v5095, 7
      %v5097 = vsub.s32 0, %v5096
      %v5098 = vrot.slane %v5060, %v5097
      %v5099 = vlaneseq
      %v5100 = vshrl.u32 %v5099, 7
      %v5101 = vsub.s32 1, %v5100
      %v5102 = vrot.slane %v5060, %v5101
      %v5103 = vlaneseq
      %v5104 = vshrl.u32 %v5103, 7
      %v5105 = vsub.s32 2, %v5104
      %v5106 = vrot.slane %v5060, %v5105
      %v5107 = vlaneseq
      %v5108 = vshrl.u32 %v5107, 7
      %v5109 = vsub.s32 3, %v5108
      %v5110 = vrot.slane %v5060, %v5109
      %v5111 = vlaneseq
      %v5112 = vshrl.u32 %v5111, 7
      %v5113 = vsub.s32 4, %v5112
      %v5114 = vrot.slane %v5060, %v5113
      %v5115 = vlaneseq
      %v5116 = vshrl.u32 %v5115, 7
      %v5117 = vsub.s32 5, %v5116
      %v5118 = vrot.slane %v5060, %v5117
      %v5119 = vlaneseq
      %v5120 = vshrl.u32 %v5119, 7
      %v5121 = vsub.s32 6, %v5120
      %v5122 = vrot.slane %v5060, %v5121
      %v5123 = vlaneseq
      %v5124 = vshrl.u32 %v5123, 7
      %v5125 = vsub.s32 7, %v5124
      %v5126 = vrot.slane %v5060, %v5125
      %v5143 = vmul.f32 %v4878, %v5066
      %v5144 = vmul.f32 %v4880, %v5070
      %v5145 = vmul.f32 %v4882, %v5074
      %v5146 = vmul.f32 %v4884, %v5078
      %v5147 = vmul.f32 %v4886, %v5082
      %v5148 = vmul.f32 %v4888, %v5086
      %v5149 = vmul.f32 %v4890, %v5090
      %v5150 = vmul.f32 %v4892, %v5094
      %v5151 = vmul.f32 %v4894, %v5098
      %v5152 = vmul.f32 %v4896, %v5102
      %v5153 = vmul.f32 %v4898, %v5106
      %v5154 = vmul.f32 %v4900, %v5110
      %v5155 = vmul.f32 %v4902, %v5114
      %v5156 = vmul.f32 %v4904, %v5118
      %v5157 = vmul.f32 %v4906, %v5122
      %v5158 = vmul.f32 %v4908, %v5126
      %5160 = vset.pattern.permute.xlu0 0
      %5161 = vperm.xlu0 %5160, %v5143
      %v5162 = vpop.permute.xlu0 %5161
      %5165 = vset.pattern.permute.xlu0 0
      %5166 = vperm.xlu0 %5165, %v5144
      %v5167 = vpop.permute.xlu0 %5166
      %5170 = vset.pattern.permute.xlu0 0
      %5171 = vperm.xlu0 %5170, %v5145
      %v5172 = vpop.permute.xlu0 %5171
      %5175 = vset.pattern.permute.xlu0 0
      %5176 = vperm.xlu0 %5175, %v5146
      %v5177 = vpop.permute.xlu0 %5176
      %5180 = vset.pattern.permute.xlu0 0
      %5181 = vperm.xlu0 %5180, %v5147
      %v5182 = vpop.permute.xlu0 %5181
      %5185 = vset.pattern.permute.xlu0 0
      %5186 = vperm.xlu0 %5185, %v5148
      %v5187 = vpop.permute.xlu0 %5186
      %5190 = vset.pattern.permute.xlu0 0
      %5191 = vperm.xlu0 %5190, %v5149
      %v5192 = vpop.permute.xlu0 %5191
      %5195 = vset.pattern.permute.xlu0 0
      %5196 = vperm.xlu0 %5195, %v5150
      %v5197 = vpop.permute.xlu0 %5196
      %5200 = vset.pattern.permute.xlu0 0
      %5201 = vperm.xlu0 %5200, %v5151
      %v5202 = vpop.permute.xlu0 %5201
      %5205 = vset.pattern.permute.xlu0 0
      %5206 = vperm.xlu0 %5205, %v5152
      %v5207 = vpop.permute.xlu0 %5206
      %5210 = vset.pattern.permute.xlu0 0
      %5211 = vperm.xlu0 %5210, %v5153
      %v5212 = vpop.permute.xlu0 %5211
      %5215 = vset.pattern.permute.xlu0 0
      %5216 = vperm.xlu0 %5215, %v5154
      %v5217 = vpop.permute.xlu0 %5216
      %5220 = vset.pattern.permute.xlu0 0
      %5221 = vperm.xlu0 %5220, %v5155
      %v5222 = vpop.permute.xlu0 %5221
      %5225 = vset.pattern.permute.xlu0 0
      %5226 = vperm.xlu0 %5225, %v5156
      %v5227 = vpop.permute.xlu0 %5226
      %5230 = vset.pattern.permute.xlu0 0
      %5231 = vperm.xlu0 %5230, %v5157
      %v5232 = vpop.permute.xlu0 %5231
      %5235 = vset.pattern.permute.xlu0 0
      %5236 = vperm.xlu0 %5235, %v5158
      %v5237 = vpop.permute.xlu0 %5236
      %v5239 = vmul.f32 %v5162, %v1807
      %v5240 = vmul.f32 %v5167, %v1812
      %v5241 = vmul.f32 %v5172, %v1817
      %v5242 = vmul.f32 %v5177, %v1822
      %v5243 = vmul.f32 %v5182, %v1827
      %v5244 = vmul.f32 %v5187, %v1832
      %v5245 = vmul.f32 %v5192, %v1837
      %v5246 = vmul.f32 %v5197, %v1842
      %v5247 = vmul.f32 %v5202, %v1847
      %v5248 = vmul.f32 %v5207, %v1852
      %v5249 = vmul.f32 %v5212, %v1857
      %v5250 = vmul.f32 %v5217, %v1862
      %v5251 = vmul.f32 %v5222, %v1867
      %v5252 = vmul.f32 %v5227, %v1872
      %v5253 = vmul.f32 %v5232, %v1877
      %v5254 = vmul.f32 %v5237, %v1882
      %v5255 = vadd.f32 %v5239, %v2919
      %v5256 = vadd.f32 %v5240, %v2919
      %v5257 = vadd.f32 %v5241, %v2919
      %v5258 = vadd.f32 %v5242, %v2919
      %v5259 = vadd.f32 %v5243, %v2919
      %v5260 = vadd.f32 %v5244, %v2919
      %v5261 = vadd.f32 %v5245, %v2919
      %v5262 = vadd.f32 %v5246, %v2919
      %v5263 = vadd.f32 %v5247, %v2919
      %v5264 = vadd.f32 %v5248, %v2919
      %v5265 = vadd.f32 %v5249, %v2919
      %v5266 = vadd.f32 %v5250, %v2919
      %v5267 = vadd.f32 %v5251, %v2919
      %v5268 = vadd.f32 %v5252, %v2919
      %v5269 = vadd.f32 %v5253, %v2919
      %v5270 = vadd.f32 %v5254, %v2919
      %v5271 = vmax.f32 %v5255, 0.0
      %v5272 = vmax.f32 %v5256, 0.0
      %v5273 = vmax.f32 %v5257, 0.0
      %v5274 = vmax.f32 %v5258, 0.0
      %v5275 = vmax.f32 %v5259, 0.0
      %v5276 = vmax.f32 %v5260, 0.0
      %v5277 = vmax.f32 %v5261, 0.0
      %v5278 = vmax.f32 %v5262, 0.0
      %v5279 = vmax.f32 %v5263, 0.0
      %v5280 = vmax.f32 %v5264, 0.0
      %v5281 = vmax.f32 %v5265, 0.0
      %v5282 = vmax.f32 %v5266, 0.0
      %v5283 = vmax.f32 %v5267, 0.0
      %v5284 = vmax.f32 %v5268, 0.0
      %v5285 = vmax.f32 %v5269, 0.0
      %v5286 = vmax.f32 %v5270, 0.0
      %v5287 = vsel %vm929, %v5271, 0.0
      %v5288 = vrot.slane %v5287, 4
      %v5289 = vadd.f32 %v5287, %v5288
      %v5290 = vrot.slane %v5289, 2
      %v5291 = vadd.f32 %v5289, %v5290
      %v5292 = vrot.slane %v5291, 1
      %v5293 = vadd.f32 %v5291, %v5292
      %v5294 = vsel %vm929, %v5272, 0.0
      %v5295 = vrot.slane %v5294, 4
      %v5296 = vadd.f32 %v5294, %v5295
      %v5297 = vrot.slane %v5296, 2
      %v5298 = vadd.f32 %v5296, %v5297
      %v5299 = vrot.slane %v5298, 1
      %v5300 = vadd.f32 %v5298, %v5299
      %v5301 = vsel %vm929, %v5273, 0.0
      %v5302 = vrot.slane %v5301, 4
      %v5303 = vadd.f32 %v5301, %v5302
      %v5304 = vrot.slane %v5303, 2
      %v5305 = vadd.f32 %v5303, %v5304
      %v5306 = vrot.slane %v5305, 1
      %v5307 = vadd.f32 %v5305, %v5306
      %v5308 = vsel %vm929, %v5274, 0.0
      %v5309 = vrot.slane %v5308, 4
      %v5310 = vadd.f32 %v5308, %v5309
      %v5311 = vrot.slane %v5310, 2
      %v5312 = vadd.f32 %v5310, %v5311
      %v5313 = vrot.slane %v5312, 1
      %v5314 = vadd.f32 %v5312, %v5313
      %v5315 = vsel %vm929, %v5275, 0.0
      %v5316 = vrot.slane %v5315, 4
      %v5317 = vadd.f32 %v5315, %v5316
      %v5318 = vrot.slane %v5317, 2
      %v5319 = vadd.f32 %v5317, %v5318
      %v5320 = vrot.slane %v5319, 1
      %v5321 = vadd.f32 %v5319, %v5320
      %v5322 = vsel %vm929, %v5276, 0.0
      %v5323 = vrot.slane %v5322, 4
      %v5324 = vadd.f32 %v5322, %v5323
      %v5325 = vrot.slane %v5324, 2
      %v5326 = vadd.f32 %v5324, %v5325
      %v5327 = vrot.slane %v5326, 1
      %v5328 = vadd.f32 %v5326, %v5327
      %v5329 = vsel %vm929, %v5277, 0.0
      %v5330 = vrot.slane %v5329, 4
      %v5331 = vadd.f32 %v5329, %v5330
      %v5332 = vrot.slane %v5331, 2
      %v5333 = vadd.f32 %v5331, %v5332
      %v5334 = vrot.slane %v5333, 1
      %v5335 = vadd.f32 %v5333, %v5334
      %v5336 = vsel %vm929, %v5278, 0.0
      %v5337 = vrot.slane %v5336, 4
      %v5338 = vadd.f32 %v5336, %v5337
      %v5339 = vrot.slane %v5338, 2
      %v5340 = vadd.f32 %v5338, %v5339
      %v5341 = vrot.slane %v5340, 1
      %v5342 = vadd.f32 %v5340, %v5341
      %v5343 = vsel %vm929, %v5279, 0.0
      %v5344 = vrot.slane %v5343, 4
      %v5345 = vadd.f32 %v5343, %v5344
      %v5346 = vrot.slane %v5345, 2
      %v5347 = vadd.f32 %v5345, %v5346
      %v5348 = vrot.slane %v5347, 1
      %v5349 = vadd.f32 %v5347, %v5348
      %v5350 = vsel %vm929, %v5280, 0.0
      %v5351 = vrot.slane %v5350, 4
      %v5352 = vadd.f32 %v5350, %v5351
      %v5353 = vrot.slane %v5352, 2
      %v5354 = vadd.f32 %v5352, %v5353
      %v5355 = vrot.slane %v5354, 1
      %v5356 = vadd.f32 %v5354, %v5355
      %v5357 = vsel %vm929, %v5281, 0.0
      %v5358 = vrot.slane %v5357, 4
      %v5359 = vadd.f32 %v5357, %v5358
      %v5360 = vrot.slane %v5359, 2
      %v5361 = vadd.f32 %v5359, %v5360
      %v5362 = vrot.slane %v5361, 1
      %v5363 = vadd.f32 %v5361, %v5362
      %v5364 = vsel %vm929, %v5282, 0.0
      %v5365 = vrot.slane %v5364, 4
      %v5366 = vadd.f32 %v5364, %v5365
      %v5367 = vrot.slane %v5366, 2
      %v5368 = vadd.f32 %v5366, %v5367
      %v5369 = vrot.slane %v5368, 1
      %v5370 = vadd.f32 %v5368, %v5369
      %v5371 = vsel %vm929, %v5283, 0.0
      %v5372 = vrot.slane %v5371, 4
      %v5373 = vadd.f32 %v5371, %v5372
      %v5374 = vrot.slane %v5373, 2
      %v5375 = vadd.f32 %v5373, %v5374
      %v5376 = vrot.slane %v5375, 1
      %v5377 = vadd.f32 %v5375, %v5376
      %v5378 = vsel %vm929, %v5284, 0.0
      %v5379 = vrot.slane %v5378, 4
      %v5380 = vadd.f32 %v5378, %v5379
      %v5381 = vrot.slane %v5380, 2
      %v5382 = vadd.f32 %v5380, %v5381
      %v5383 = vrot.slane %v5382, 1
      %v5384 = vadd.f32 %v5382, %v5383
      %v5385 = vsel %vm929, %v5285, 0.0
      %v5386 = vrot.slane %v5385, 4
      %v5387 = vadd.f32 %v5385, %v5386
      %v5388 = vrot.slane %v5387, 2
      %v5389 = vadd.f32 %v5387, %v5388
      %v5390 = vrot.slane %v5389, 1
      %v5391 = vadd.f32 %v5389, %v5390
      %v5392 = vsel %vm929, %v5286, 0.0
      %v5393 = vrot.slane %v5392, 4
      %v5394 = vadd.f32 %v5392, %v5393
      %v5395 = vrot.slane %v5394, 2
      %v5396 = vadd.f32 %v5394, %v5395
      %v5397 = vrot.slane %v5396, 1
      %v5398 = vadd.f32 %v5396, %v5397
      %v5399 = vsub.f32 0.0, %v5293
      %v5400 = vsub.f32 0.0, %v5300
      %v5401 = vsub.f32 0.0, %v5307
      %v5402 = vsub.f32 0.0, %v5314
      %v5403 = vsub.f32 0.0, %v5321
      %v5404 = vsub.f32 0.0, %v5328
      %v5405 = vsub.f32 0.0, %v5335
      %v5406 = vsub.f32 0.0, %v5342
      %v5407 = vsub.f32 0.0, %v5349
      %v5408 = vsub.f32 0.0, %v5356
      %v5409 = vsub.f32 0.0, %v5363
      %v5410 = vsub.f32 0.0, %v5370
      %v5411 = vsub.f32 0.0, %v5377
      %v5412 = vsub.f32 0.0, %v5384
      %v5413 = vsub.f32 0.0, %v5391
      %v5414 = vsub.f32 0.0, %v5398
      %v5431 = vsel %vm2689, %v5400, %v5399
      %v5432 = vsel %vm2691, %v5401, %v5431
      %v5433 = vsel %vm2693, %v5402, %v5432
      %v5434 = vsel %vm2695, %v5403, %v5433
      %v5435 = vsel %vm2697, %v5404, %v5434
      %v5436 = vsel %vm2699, %v5405, %v5435
      %v5437 = vsel %vm2701, %v5406, %v5436
      %v5438 = vsel %vm2689, %v5408, %v5407
      %v5439 = vsel %vm2691, %v5409, %v5438
      %v5440 = vsel %vm2693, %v5410, %v5439
      %v5441 = vsel %vm2695, %v5411, %v5440
      %v5442 = vsel %vm2697, %v5412, %v5441
      %v5443 = vsel %vm2699, %v5413, %v5442
      %v5444 = vsel %vm2701, %v5414, %v5443
      %5447 = vst.msk [vmem:[%s692] sm:$0xff] %vm929, %v5437
      %5448 = vst.msk [vmem:[%s692 + $0x8] sm:$0xff] %vm929, %v5444
      %s5449 = smul.u32 2, %s30
      %p5450 = scmp.lt.s32.totalorder %s5449, 7
      %s5451 = scalar_select %p5450, %s5449, 7
      %s5452 = smul.addr %s5451, 8
      %s5453 = scalar_lea.vmem %s19, %s5452
      // Predicated region
      $region97: #{tpu_custom_call.1} parent=95 // pred_check
        %p5454 = pneg %p472
      $region98: #{tpu_custom_call.1} parent=95 // pred_check_branch
        %5456 = sbr.rel (%p5454) target = $region100
      $region99: #{tpu_custom_call.1} parent=95 // pred_region
        %s5457 = smul.u32 2, %s30
      $region100: #{tpu_custom_call.1} parent=95 // pred_fallthru
        _
    $region96: #{tpu_custom_call.1} parent=5 // pred_fallthru
      _
    %p5458 = scmp.le.s32.totalorder 2, %s25
    // Predicated region
    $region101: #{tpu_custom_call.1} parent=5 // pred_check
      %p5459 = pneg %p5458
    $region102: #{tpu_custom_call.1} parent=5 // pred_check_branch
      %5461 = sbr.rel (%p5459) target = $region104
    $region103: #{tpu_custom_call.1} parent=5 // pred_region
      %s5462 = ssub.s32 %s25, 2
      // Predicated region
      $region105: #{tpu_custom_call.1} parent=103 // pred_check
        %p5463 = pneg %p478
      $region106: #{tpu_custom_call.1} parent=103 // pred_check_branch
        %5465 = sbr.rel (%p5463) target = $region108
      $region107: #{tpu_custom_call.1} parent=103 // pred_region
        %s5466 = smul.u32 2, %s31
        %p5467 = scmp.lt.s32.totalorder %s5466, 7
        %s5468 = scalar_select %p5467, %s5466, 7
        %s5469 = smul.addr %s5468, 8
        %s5470 = scalar_lea.vmem %s19, %s5469
      $region108: #{tpu_custom_call.1} parent=103 // pred_fallthru
        _
    $region104: #{tpu_custom_call.1} parent=5 // pred_fallthru
      _
  $region6: #{tpu_custom_call.1} parent=0 // loop_footer
    %s29 = sadd.s32 1, %s25
  $region7: #{tpu_custom_call.1} parent=0 // loop_footer_branch
    %24 = sbr.rel target = $region3
  $region8: #{tpu_custom_call.1} parent=0 // loop_exit
    _

</llo_original>
